<compile_context>
chip_gen: v7x
topology: tpu7x:2x2x1
jax: 0.10.0
libtpu: 0.0.40
codegen_flags: <defaults>
</compile_context>

<pallas_src>
import functools

import jax
import jax.numpy as jnp
from jax.experimental import pallas as pl
from jax.experimental.pallas import tpu as pltpu

# ---------------------------------------------------------------------------
# Layout constants
# ---------------------------------------------------------------------------
CIN = 3                 # input channels
F1, F1P = 6, 8          # conv1 out channels (real / lane-padded)
J1, J1P = 14, 16        # conv1 pooled width (real / padded)
F2, F2P = 16, 16        # conv2 out channels
J2, J2P = 5, 8          # conv2 pooled width (real / padded)
NP = 128                # padded FC width
L1 = 2 * J1P * F1P      # 256: conv1 matmul output lanes, (w-parity, j, f)
L2 = 2 * J2P * F2P      # 256: conv2 matmul output lanes, (w-parity, j3, g)
H1 = J1P * F1P          # 128: one w-parity half of conv1 output / P1 lanes
H2 = J2P * F2P          # 128: one w-parity half of conv2 output / P2 lanes
NB = 8                  # images per grid step (stacked along matmul rows)


# ---------------------------------------------------------------------------
# Fused kernel (NB images per grid step)
# ---------------------------------------------------------------------------
def _lenet_kernel(x_ref, m1_ref, m2_ref, fc1_ref, fc2_ref, fc3_ref,
                  sc1_ref, sh1_ref, sc2_ref, sh2_ref,
                  sc3_ref, sh3_ref, sc4_ref, sh4_ref, b3_ref, out_ref):
    f32 = jnp.float32
    bf16 = jnp.bfloat16

    # ---- stage 1: conv1(5x5, 3->6) + bn1 + relu + maxpool2x2 -------------------
    # x_ref[r, i*NB + n, :] holds image n's input row h = 4*i + r with lanes (w*3 + c).
    # Conv output rows h = 4*i2 + 2*q + a; pooled rows i = 2*i2 + q.
    p1 = []                                              # P1[q]: [7*NB, 128], rows (i2,n)
    for q in (0, 1):
        corners = []
        for a in (0, 1):                                 # H pooling parity
            acc = None
            for kh in range(5):
                v = 2 * q + a + kh                       # needed input row = 4*i2 + v
                lhs = x_ref[v & 3,
                            (v >> 2) * NB:((v >> 2) + 7) * NB, :].astype(bf16)  # [56, 96]
                t = jnp.dot(lhs, m1_ref[kh], preferred_element_type=f32)        # [56, 256]
                acc = t if acc is None else acc + t
            corners.append(acc * sc1_ref[...] + sh1_ref[...])                   # folded BN
        t = jnp.maximum(corners[0], corners[1])           # pool over H parity
        t = jnp.maximum(t[:, :H1], t[:, H1:])             # pool over W parity (128-aligned)
        p1.append(jnp.maximum(t, 0.0))                    # relu -> [56, 128] f32

    # ---- stage 2: conv2(5x5, 6->16) + bn2 + relu + maxpool2x2 ------------------
    corners = []
    for a in (0, 1):
        acc = None
        for kh in range(5):
            v = a + kh                                    # needed P1 row = 2*i3 + v
            lhs = p1[v & 1][(v >> 1) * NB:((v >> 1) + 5) * NB, :].astype(bf16)  # [40, 128]
            t = jnp.dot(lhs, m2_ref[kh], preferred_element_type=f32)            # [40, 256]
            acc = t if acc is None else acc + t
        corners.append(acc * sc2_ref[...] + sh2_ref[...])
    t = jnp.maximum(corners[0], corners[1])
    t = jnp.maximum(t[:, :H2], t[:, H2:])
    p2 = jnp.maximum(t, 0.0)                              # [40, 128], rows (i3,n), lanes (j3,g)

    # ---- stage 3: fc1 + bn3 + relu (flatten handled by the weight layout) ------
    acc = None
    for i3 in range(5):
        t = jnp.dot(p2[i3 * NB:(i3 + 1) * NB, :].astype(bf16),
                    fc1_ref[i3 * H2:(i3 + 1) * H2, :],
                    preferred_element_type=f32)           # [NB, 128]
        acc = t if acc is None else acc + t
    h = jnp.maximum(acc * sc3_ref[...] + sh3_ref[...], 0.0)

    # ---- stage 4: fc2 + bn4 + relu; dropout is identity in eval mode -----------
    h = jnp.dot(h.astype(bf16), fc2_ref[...], preferred_element_type=f32)
    h = jnp.maximum(h * sc4_ref[...] + sh4_ref[...], 0.0)

    # ---- stage 5: fc3 + bias -> logits (lane-dense 128-wide store) -------------
    out_ref[...] = jnp.dot(h.astype(bf16), fc3_ref[...],
                           preferred_element_type=f32) + b3_ref[...]


# ---------------------------------------------------------------------------
# Host-side weight preparation (plain JAX, traced once under jit)
# ---------------------------------------------------------------------------
def fold_bn(bias, gamma, beta, mean, var, eps=1e-5):
    """Fold conv/linear bias + eval-mode BatchNorm into per-channel scale/shift."""
    scale = gamma / jnp.sqrt(var + eps)
    shift = beta + (bias - mean) * scale
    return scale, shift


def _pad_lanes(v, n):
    return jnp.zeros((1, n), jnp.float32).at[0, :v.shape[0]].set(v.astype(jnp.float32))


def _conv1_matrices(w1):
    """[5, 96, 256] block-Toeplitz matrices: rows (w*3+c), cols (wpar, j, f)."""
    w1p = jnp.zeros((F1P, CIN, 5, 5), jnp.float32).at[:F1].set(w1.astype(jnp.float32))
    wout = 2 * jnp.arange(J1P)[None, None, :] + jnp.arange(2)[None, :, None]   # [1,2,16]
    kw = jnp.arange(32)[:, None, None] - wout                                  # [32,2,16]
    valid = (kw >= 0) & (kw <= 4)
    a = w1p[:, :, :, jnp.clip(kw, 0, 4)] * valid[None, None, None]   # [f,c,kh,w,wpar,j]
    a = a.transpose(2, 3, 1, 4, 5, 0)                                # [kh,w,c,wpar,j,f]
    return a.reshape(5, 32 * CIN, L1)


def _conv2_matrices(w2):
    """[5, 128, 256] block-Toeplitz matrices: rows (j, f), cols (wpar, j3, g)."""
    w2p = jnp.zeros((F2P, F1P, 5, 5), jnp.float32).at[:F2, :F1].set(w2.astype(jnp.float32))
    wout = 2 * jnp.arange(J2P)[None, None, :] + jnp.arange(2)[None, :, None]   # [1,2,8]
    kw = jnp.arange(J1P)[:, None, None] - wout                                 # [16,2,8]
    valid = (kw >= 0) & (kw <= 4)
    a = w2p[:, :, :, jnp.clip(kw, 0, 4)] * valid[None, None, None]   # [g,f,kh,j,wpar,j3]
    a = a.transpose(2, 3, 1, 4, 5, 0)                                # [kh,j,f,wpar,j3,g]
    return a.reshape(5, H1, L2)


def _fc1_matrix(fc1_w):
    """[640, 128]: row = i3*128 + j3*16 + g (matches P2 layout), col = output unit."""
    w = fc1_w.astype(jnp.float32).reshape(120, F2, J2, J2)   # [n, g, i3, j3] (torch flatten)
    w = w.transpose(2, 3, 1, 0)                              # [i3, j3, g, n]
    full = jnp.zeros((J2, J2P, F2P, NP), jnp.float32).at[:, :J2, :F2, :120].set(w)
    return full.reshape(J2 * H2, NP)


def _fc_pad(w, k, n):
    """Torch linear weight [out, in] -> zero-padded transposed [k, n]."""
    return jnp.zeros((k, n), jnp.float32).at[:w.shape[1], :w.shape[0]].set(
        w.astype(jnp.float32).T)


def prepare_kernel_inputs(params):
    bf16 = jnp.bfloat16
    s1, t1 = fold_bn(params["conv1_b"], params["bn1_gamma"], params["bn1_beta"],
                     params["bn1_mean"], params["bn1_var"])
    s2, t2 = fold_bn(params["conv2_b"], params["bn2_gamma"], params["bn2_beta"],
                     params["bn2_mean"], params["bn2_var"])
    s3, t3 = fold_bn(params["fc1_b"], params["bn3_gamma"], params["bn3_beta"],
                     params["bn3_mean"], params["bn3_var"])
    s4, t4 = fold_bn(params["fc2_b"], params["bn4_gamma"], params["bn4_beta"],
                     params["bn4_mean"], params["bn4_var"])
    s1p, t1p = jnp.pad(s1, (0, F1P - F1)), jnp.pad(t1, (0, F1P - F1))
    return dict(
        m1=_conv1_matrices(params["conv1_w"]).astype(bf16),
        m2=_conv2_matrices(params["conv2_w"]).astype(bf16),
        fc1=_fc1_matrix(params["fc1_w"]).astype(bf16),
        fc2=_fc_pad(params["fc2_w"], NP, NP).astype(bf16),
        fc3=_fc_pad(params["fc3_w"], NP, NP).astype(bf16),
        sc1=jnp.tile(s1p, 2 * J1P)[None].astype(jnp.float32),
        sh1=jnp.tile(t1p, 2 * J1P)[None].astype(jnp.float32),
        sc2=jnp.tile(s2, 2 * J2P)[None].astype(jnp.float32),
        sh2=jnp.tile(t2, 2 * J2P)[None].astype(jnp.float32),
        sc3=_pad_lanes(s3, NP), sh3=_pad_lanes(t3, NP),
        sc4=_pad_lanes(s4, NP), sh4=_pad_lanes(t4, NP),
        b3=_pad_lanes(params["fc3_b"], NP),
    )


# ---------------------------------------------------------------------------
# Forward pass
# ---------------------------------------------------------------------------
@functools.partial(jax.jit, static_argnames=("n_classes",))
def lenet_forward(x_nchw, params, n_classes=10):
    B = x_nchw.shape[0]
    nblk = -(-B // NB)
    bpad = nblk * NB

    # NCHW -> [nblk*4 (blk, h mod 4), 8*NB (h//4, image), w*3 + c]:
    # the mod-4 split makes every in-kernel conv read and both pooling parities
    # contiguous, sublane-aligned slices; NB images interleave along matmul rows.
    x = jnp.transpose(x_nchw, (0, 2, 3, 1)).astype(jnp.float32)     # [B, 32, 32, 3]
    x = x.reshape(B, 8, 4, 32 * CIN)                                # (b, i, r, lanes)
    x = jnp.pad(x, ((0, bpad - B), (0, 0), (0, 0), (0, 0)))
    x = x.reshape(nblk, NB, 8, 4, 32 * CIN).transpose(0, 3, 2, 1, 4)  # (blk, r, i, n, lanes)
    x = x.reshape(nblk * 4, 8 * NB, 32 * CIN)

    ins = prepare_kernel_inputs(params)
    rep2 = lambda b: (0, 0)
    rep3 = lambda b: (0, 0, 0)

    out = pl.pallas_call(
        _lenet_kernel,
        out_shape=jax.ShapeDtypeStruct((bpad, NP), jnp.float32),
        grid=(nblk,),
        in_specs=[
            pl.BlockSpec((4, 8 * NB, 32 * CIN), lambda b: (b, 0, 0)),   # image block
            pl.BlockSpec((5, 32 * CIN, L1), rep3),                      # conv1 Toeplitz
            pl.BlockSpec((5, H1, L2), rep3),                            # conv2 Toeplitz
            pl.BlockSpec((J2 * H2, NP), rep2),                          # fc1
            pl.BlockSpec((NP, NP), rep2),                               # fc2
            pl.BlockSpec((NP, NP), rep2),                               # fc3
            pl.BlockSpec((1, L1), rep2), pl.BlockSpec((1, L1), rep2),   # bn1 scale/shift
            pl.BlockSpec((1, L2), rep2), pl.BlockSpec((1, L2), rep2),   # bn2 scale/shift
            pl.BlockSpec((1, NP), rep2), pl.BlockSpec((1, NP), rep2),   # bn3 scale/shift
            pl.BlockSpec((1, NP), rep2), pl.BlockSpec((1, NP), rep2),   # bn4 scale/shift
            pl.BlockSpec((1, NP), rep2),                                # fc3 bias
        ],
        out_specs=pl.BlockSpec((NB, NP), lambda b: (b, 0)),
        compiler_params=pltpu.CompilerParams(dimension_semantics=("parallel",)),
    )(x, ins["m1"], ins["m2"], ins["fc1"], ins["fc2"], ins["fc3"],
      ins["sc1"], ins["sh1"], ins["sc2"], ins["sh2"],
      ins["sc3"], ins["sh3"], ins["sc4"], ins["sh4"], ins["b3"])
    return out[:B, :n_classes]


# ---------------------------------------------------------------------------
# Pure-JAX reference (eval-mode LeNet) and parameter init
# ---------------------------------------------------------------------------
def lenet_reference(x_nchw, params, eps=1e-5):
    x = x_nchw.astype(jnp.float32)

    def conv(x, w, b):
        y = jax.lax.conv_general_dilated(
            x, w.astype(jnp.float32), (1, 1), "VALID",
            dimension_numbers=("NCHW", "OIHW", "NCHW"))
        return y + b[None, :, None, None]

    def bn(x, pre):
        g, bt, m, v = (params[pre + "_gamma"], params[pre + "_beta"],
                       params[pre + "_mean"], params[pre + "_var"])
        shp = [1] * x.ndim
        shp[1] = -1
        return (x - m.reshape(shp)) / jnp.sqrt(v.reshape(shp) + eps) * g.reshape(shp) \
            + bt.reshape(shp)

    def pool(x):
        return jax.lax.reduce_window(x, -jnp.inf, jax.lax.max,
                                     (1, 1, 2, 2), (1, 1, 2, 2), "VALID")

    y = pool(jax.nn.relu(bn(conv(x, params["conv1_w"], params["conv1_b"]), "bn1")))
    y = pool(jax.nn.relu(bn(conv(y, params["conv2_w"], params["conv2_b"]), "bn2")))
    y = y.reshape(y.shape[0], -1)
    y = jax.nn.relu(bn(y @ params["fc1_w"].T + params["fc1_b"], "bn3"))
    y = jax.nn.relu(bn(y @ params["fc2_w"].T + params["fc2_b"], "bn4"))
    return y @ params["fc3_w"].T + params["fc3_b"]      # dropout: eval-mode identity


def init_params(key, n_classes=10):
    f32 = jnp.float32
    kw_, kb_ = jax.random.split(key)
    ks = jax.random.split(kw_, 10)

    def w(k, shape, s=0.1):
        return (s * jax.random.normal(k, shape)).astype(f32)

    params = {
        "conv1_w": w(ks[0], (6, 3, 5, 5)), "conv1_b": w(ks[1], (6,)),
        "conv2_w": w(ks[2], (16, 6, 5, 5)), "conv2_b": w(ks[3], (16,)),
        "fc1_w": w(ks[4], (120, 400)), "fc1_b": w(ks[5], (120,)),
        "fc2_w": w(ks[6], (84, 120)), "fc2_b": w(ks[7], (84,)),
        "fc3_w": w(ks[8], (n_classes, 84)), "fc3_b": w(ks[9], (n_classes,)),
    }
    for kk, (name, c) in zip(jax.random.split(kb_, 4),
                             (("bn1", 6), ("bn2", 16), ("bn3", 120), ("bn4", 84))):
        k1, k2, k3, k4 = jax.random.split(kk, 4)
        params[f"{name}_gamma"] = (1.0 + 0.1 * jax.random.normal(k1, (c,))).astype(f32)
        params[f"{name}_beta"] = (0.1 * jax.random.normal(k2, (c,))).astype(f32)
        params[f"{name}_mean"] = (0.1 * jax.random.normal(k3, (c,))).astype(f32)
        params[f"{name}_var"] = jnp.exp(0.2 * jax.random.normal(k4, (c,))).astype(f32)
    return params


if __name__ == "__main__":
    n_classes = 10
    key = jax.random.PRNGKey(0)
    k_param, k_x = jax.random.split(key)
    params = init_params(k_param, n_classes=n_classes)
    x = jax.random.normal(k_x, (2, 3, 32, 32), dtype=jnp.float32)   # PyTorch NCHW input

    logits = lenet_forward(x, params, n_classes=n_classes)
    jax.block_until_ready(logits)
    assert logits.shape == (2, n_classes)

    ref = lenet_reference(x, params)
    ref_scale = float(jnp.max(jnp.abs(ref)))
    err = float(jnp.max(jnp.abs(logits - ref)))
    assert err <= 0.06 * max(1.0, ref_scale), \
        f"mismatch vs reference: max|err|={err}, ref scale={ref_scale}"
    print("KERNEL_OK")
</pallas_src>

<mosaic_0001>
module attributes {stable_mosaic.version = 11 : i64} {
  func.func @_lenet_kernel(%arg0: i32, %arg1: memref<4x64x96xf32, #tpu.memory_space<vmem>>, %arg2: memref<5x96x256xbf16, #tpu.memory_space<vmem>>, %arg3: memref<5x128x256xbf16, #tpu.memory_space<vmem>>, %arg4: memref<640x128xbf16, #tpu.memory_space<vmem>>, %arg5: memref<128x128xbf16, #tpu.memory_space<vmem>>, %arg6: memref<128x128xbf16, #tpu.memory_space<vmem>>, %arg7: memref<1x256xf32, #tpu.memory_space<vmem>>, %arg8: memref<1x256xf32, #tpu.memory_space<vmem>>, %arg9: memref<1x256xf32, #tpu.memory_space<vmem>>, %arg10: memref<1x256xf32, #tpu.memory_space<vmem>>, %arg11: memref<1x128xf32, #tpu.memory_space<vmem>>, %arg12: memref<1x128xf32, #tpu.memory_space<vmem>>, %arg13: memref<1x128xf32, #tpu.memory_space<vmem>>, %arg14: memref<1x128xf32, #tpu.memory_space<vmem>>, %arg15: memref<1x128xf32, #tpu.memory_space<vmem>>, %arg16: memref<8x128xf32, #tpu.memory_space<vmem>>) attributes {dimension_semantics = [#tpu.dimension_semantics<parallel>], iteration_bounds = array<i64: 1>, scalar_prefetch = 0 : i64, scratch_operands = 0 : i64, tpu.core_type = #tpu.core_type<tc>, window_params = [{transform_indices = @transform_0, window_bounds = array<i64: 4, 64, 96>}, {pipeline_mode = #tpu.pipeline_mode<synchronous>, transform_indices = @transform_1, window_bounds = array<i64: 5, 96, 256>}, {pipeline_mode = #tpu.pipeline_mode<synchronous>, transform_indices = @transform_2, window_bounds = array<i64: 5, 128, 256>}, {pipeline_mode = #tpu.pipeline_mode<synchronous>, transform_indices = @transform_3, window_bounds = array<i64: 640, 128>}, {pipeline_mode = #tpu.pipeline_mode<synchronous>, transform_indices = @transform_4, window_bounds = array<i64: 128, 128>}, {pipeline_mode = #tpu.pipeline_mode<synchronous>, transform_indices = @transform_5, window_bounds = array<i64: 128, 128>}, {pipeline_mode = #tpu.pipeline_mode<synchronous>, transform_indices = @transform_6, window_bounds = array<i64: 1, 256>}, {pipeline_mode = #tpu.pipeline_mode<synchronous>, transform_indices = @transform_7, window_bounds = array<i64: 1, 256>}, {pipeline_mode = #tpu.pipeline_mode<synchronous>, transform_indices = @transform_8, window_bounds = array<i64: 1, 256>}, {pipeline_mode = #tpu.pipeline_mode<synchronous>, transform_indices = @transform_9, window_bounds = array<i64: 1, 256>}, {pipeline_mode = #tpu.pipeline_mode<synchronous>, transform_indices = @transform_10, window_bounds = array<i64: 1, 128>}, {pipeline_mode = #tpu.pipeline_mode<synchronous>, transform_indices = @transform_11, window_bounds = array<i64: 1, 128>}, {pipeline_mode = #tpu.pipeline_mode<synchronous>, transform_indices = @transform_12, window_bounds = array<i64: 1, 128>}, {pipeline_mode = #tpu.pipeline_mode<synchronous>, transform_indices = @transform_13, window_bounds = array<i64: 1, 128>}, {pipeline_mode = #tpu.pipeline_mode<synchronous>, transform_indices = @transform_14, window_bounds = array<i64: 1, 128>}, {transform_indices = @transform_15, window_bounds = array<i64: 8, 128>}]} {
    %c0 = arith.constant 0 : index
    %c0_0 = arith.constant 0 : index
    %c0_1 = arith.constant 0 : index
    %0 = vector.load %arg1[%c0, %c0_0, %c0_1] : memref<4x64x96xf32, #tpu.memory_space<vmem>>, vector<1x56x96xf32>
    %1 = vector.shape_cast %0 : vector<1x56x96xf32> to vector<56x96xf32>
    %2 = arith.truncf %1 : vector<56x96xf32> to vector<56x96xbf16>
    %c0_2 = arith.constant 0 : index
    %c0_3 = arith.constant 0 : index
    %c0_4 = arith.constant 0 : index
    %3 = vector.load %arg2[%c0_2, %c0_3, %c0_4] : memref<5x96x256xbf16, #tpu.memory_space<vmem>>, vector<1x96x256xbf16>
    %4 = vector.shape_cast %3 : vector<1x96x256xbf16> to vector<96x256xbf16>
    %cst = arith.constant dense<0.000000e+00> : vector<56x256xf32>
    %5 = tpu.matmul %2, %4, %cst {dimension_numbers = #tpu.dot_dimension_numbers<[1], [0], [0], [1], [0, 0, 1, 1], [], []>} : vector<56x96xbf16>, vector<96x256xbf16>, vector<56x256xf32> -> vector<56x256xf32>
    %c1 = arith.constant 1 : index
    %c0_5 = arith.constant 0 : index
    %c0_6 = arith.constant 0 : index
    %6 = vector.load %arg1[%c1, %c0_5, %c0_6] : memref<4x64x96xf32, #tpu.memory_space<vmem>>, vector<1x56x96xf32>
    %7 = vector.shape_cast %6 : vector<1x56x96xf32> to vector<56x96xf32>
    %8 = arith.truncf %7 : vector<56x96xf32> to vector<56x96xbf16>
    %c1_7 = arith.constant 1 : index
    %c0_8 = arith.constant 0 : index
    %c0_9 = arith.constant 0 : index
    %9 = vector.load %arg2[%c1_7, %c0_8, %c0_9] : memref<5x96x256xbf16, #tpu.memory_space<vmem>>, vector<1x96x256xbf16>
    %10 = vector.shape_cast %9 : vector<1x96x256xbf16> to vector<96x256xbf16>
    %cst_10 = arith.constant dense<0.000000e+00> : vector<56x256xf32>
    %11 = tpu.matmul %8, %10, %cst_10 {dimension_numbers = #tpu.dot_dimension_numbers<[1], [0], [0], [1], [0, 0, 1, 1], [], []>} : vector<56x96xbf16>, vector<96x256xbf16>, vector<56x256xf32> -> vector<56x256xf32>
    %12 = arith.addf %5, %11 : vector<56x256xf32>
    %c2 = arith.constant 2 : index
    %c0_11 = arith.constant 0 : index
    %c0_12 = arith.constant 0 : index
    %13 = vector.load %arg1[%c2, %c0_11, %c0_12] : memref<4x64x96xf32, #tpu.memory_space<vmem>>, vector<1x56x96xf32>
    %14 = vector.shape_cast %13 : vector<1x56x96xf32> to vector<56x96xf32>
    %15 = arith.truncf %14 : vector<56x96xf32> to vector<56x96xbf16>
    %c2_13 = arith.constant 2 : index
    %c0_14 = arith.constant 0 : index
    %c0_15 = arith.constant 0 : index
    %16 = vector.load %arg2[%c2_13, %c0_14, %c0_15] : memref<5x96x256xbf16, #tpu.memory_space<vmem>>, vector<1x96x256xbf16>
    %17 = vector.shape_cast %16 : vector<1x96x256xbf16> to vector<96x256xbf16>
    %cst_16 = arith.constant dense<0.000000e+00> : vector<56x256xf32>
    %18 = tpu.matmul %15, %17, %cst_16 {dimension_numbers = #tpu.dot_dimension_numbers<[1], [0], [0], [1], [0, 0, 1, 1], [], []>} : vector<56x96xbf16>, vector<96x256xbf16>, vector<56x256xf32> -> vector<56x256xf32>
    %19 = arith.addf %12, %18 : vector<56x256xf32>
    %c3 = arith.constant 3 : index
    %c0_17 = arith.constant 0 : index
    %c0_18 = arith.constant 0 : index
    %20 = vector.load %arg1[%c3, %c0_17, %c0_18] : memref<4x64x96xf32, #tpu.memory_space<vmem>>, vector<1x56x96xf32>
    %21 = vector.shape_cast %20 : vector<1x56x96xf32> to vector<56x96xf32>
    %22 = arith.truncf %21 : vector<56x96xf32> to vector<56x96xbf16>
    %c3_19 = arith.constant 3 : index
    %c0_20 = arith.constant 0 : index
    %c0_21 = arith.constant 0 : index
    %23 = vector.load %arg2[%c3_19, %c0_20, %c0_21] : memref<5x96x256xbf16, #tpu.memory_space<vmem>>, vector<1x96x256xbf16>
    %24 = vector.shape_cast %23 : vector<1x96x256xbf16> to vector<96x256xbf16>
    %cst_22 = arith.constant dense<0.000000e+00> : vector<56x256xf32>
    %25 = tpu.matmul %22, %24, %cst_22 {dimension_numbers = #tpu.dot_dimension_numbers<[1], [0], [0], [1], [0, 0, 1, 1], [], []>} : vector<56x96xbf16>, vector<96x256xbf16>, vector<56x256xf32> -> vector<56x256xf32>
    %26 = arith.addf %19, %25 : vector<56x256xf32>
    %c0_23 = arith.constant 0 : index
    %c8 = arith.constant 8 : index
    %c0_24 = arith.constant 0 : index
    %27 = vector.load %arg1[%c0_23, %c8, %c0_24] : memref<4x64x96xf32, #tpu.memory_space<vmem>>, vector<1x56x96xf32>
    %28 = vector.shape_cast %27 : vector<1x56x96xf32> to vector<56x96xf32>
    %29 = arith.truncf %28 : vector<56x96xf32> to vector<56x96xbf16>
    %c4 = arith.constant 4 : index
    %c0_25 = arith.constant 0 : index
    %c0_26 = arith.constant 0 : index
    %30 = vector.load %arg2[%c4, %c0_25, %c0_26] : memref<5x96x256xbf16, #tpu.memory_space<vmem>>, vector<1x96x256xbf16>
    %31 = vector.shape_cast %30 : vector<1x96x256xbf16> to vector<96x256xbf16>
    %cst_27 = arith.constant dense<0.000000e+00> : vector<56x256xf32>
    %32 = tpu.matmul %29, %31, %cst_27 {dimension_numbers = #tpu.dot_dimension_numbers<[1], [0], [0], [1], [0, 0, 1, 1], [], []>} : vector<56x96xbf16>, vector<96x256xbf16>, vector<56x256xf32> -> vector<56x256xf32>
    %33 = arith.addf %26, %32 : vector<56x256xf32>
    %c0_28 = arith.constant 0 : index
    %c0_29 = arith.constant 0 : index
    %34 = vector.load %arg7[%c0_28, %c0_29] : memref<1x256xf32, #tpu.memory_space<vmem>>, vector<1x256xf32>
    %35 = vector.broadcast %34 : vector<1x256xf32> to vector<56x256xf32>
    %36 = arith.mulf %33, %35 : vector<56x256xf32>
    %c0_30 = arith.constant 0 : index
    %c0_31 = arith.constant 0 : index
    %37 = vector.load %arg8[%c0_30, %c0_31] : memref<1x256xf32, #tpu.memory_space<vmem>>, vector<1x256xf32>
    %38 = vector.broadcast %37 : vector<1x256xf32> to vector<56x256xf32>
    %39 = arith.addf %36, %38 : vector<56x256xf32>
    %c1_32 = arith.constant 1 : index
    %c0_33 = arith.constant 0 : index
    %c0_34 = arith.constant 0 : index
    %40 = vector.load %arg1[%c1_32, %c0_33, %c0_34] : memref<4x64x96xf32, #tpu.memory_space<vmem>>, vector<1x56x96xf32>
    %41 = vector.shape_cast %40 : vector<1x56x96xf32> to vector<56x96xf32>
    %42 = arith.truncf %41 : vector<56x96xf32> to vector<56x96xbf16>
    %c0_35 = arith.constant 0 : index
    %c0_36 = arith.constant 0 : index
    %c0_37 = arith.constant 0 : index
    %43 = vector.load %arg2[%c0_35, %c0_36, %c0_37] : memref<5x96x256xbf16, #tpu.memory_space<vmem>>, vector<1x96x256xbf16>
    %44 = vector.shape_cast %43 : vector<1x96x256xbf16> to vector<96x256xbf16>
    %cst_38 = arith.constant dense<0.000000e+00> : vector<56x256xf32>
    %45 = tpu.matmul %42, %44, %cst_38 {dimension_numbers = #tpu.dot_dimension_numbers<[1], [0], [0], [1], [0, 0, 1, 1], [], []>} : vector<56x96xbf16>, vector<96x256xbf16>, vector<56x256xf32> -> vector<56x256xf32>
    %c2_39 = arith.constant 2 : index
    %c0_40 = arith.constant 0 : index
    %c0_41 = arith.constant 0 : index
    %46 = vector.load %arg1[%c2_39, %c0_40, %c0_41] : memref<4x64x96xf32, #tpu.memory_space<vmem>>, vector<1x56x96xf32>
    %47 = vector.shape_cast %46 : vector<1x56x96xf32> to vector<56x96xf32>
    %48 = arith.truncf %47 : vector<56x96xf32> to vector<56x96xbf16>
    %c1_42 = arith.constant 1 : index
    %c0_43 = arith.constant 0 : index
    %c0_44 = arith.constant 0 : index
    %49 = vector.load %arg2[%c1_42, %c0_43, %c0_44] : memref<5x96x256xbf16, #tpu.memory_space<vmem>>, vector<1x96x256xbf16>
    %50 = vector.shape_cast %49 : vector<1x96x256xbf16> to vector<96x256xbf16>
    %cst_45 = arith.constant dense<0.000000e+00> : vector<56x256xf32>
    %51 = tpu.matmul %48, %50, %cst_45 {dimension_numbers = #tpu.dot_dimension_numbers<[1], [0], [0], [1], [0, 0, 1, 1], [], []>} : vector<56x96xbf16>, vector<96x256xbf16>, vector<56x256xf32> -> vector<56x256xf32>
    %52 = arith.addf %45, %51 : vector<56x256xf32>
    %c3_46 = arith.constant 3 : index
    %c0_47 = arith.constant 0 : index
    %c0_48 = arith.constant 0 : index
    %53 = vector.load %arg1[%c3_46, %c0_47, %c0_48] : memref<4x64x96xf32, #tpu.memory_space<vmem>>, vector<1x56x96xf32>
    %54 = vector.shape_cast %53 : vector<1x56x96xf32> to vector<56x96xf32>
    %55 = arith.truncf %54 : vector<56x96xf32> to vector<56x96xbf16>
    %c2_49 = arith.constant 2 : index
    %c0_50 = arith.constant 0 : index
    %c0_51 = arith.constant 0 : index
    %56 = vector.load %arg2[%c2_49, %c0_50, %c0_51] : memref<5x96x256xbf16, #tpu.memory_space<vmem>>, vector<1x96x256xbf16>
    %57 = vector.shape_cast %56 : vector<1x96x256xbf16> to vector<96x256xbf16>
    %cst_52 = arith.constant dense<0.000000e+00> : vector<56x256xf32>
    %58 = tpu.matmul %55, %57, %cst_52 {dimension_numbers = #tpu.dot_dimension_numbers<[1], [0], [0], [1], [0, 0, 1, 1], [], []>} : vector<56x96xbf16>, vector<96x256xbf16>, vector<56x256xf32> -> vector<56x256xf32>
    %59 = arith.addf %52, %58 : vector<56x256xf32>
    %c0_53 = arith.constant 0 : index
    %c8_54 = arith.constant 8 : index
    %c0_55 = arith.constant 0 : index
    %60 = vector.load %arg1[%c0_53, %c8_54, %c0_55] : memref<4x64x96xf32, #tpu.memory_space<vmem>>, vector<1x56x96xf32>
    %61 = vector.shape_cast %60 : vector<1x56x96xf32> to vector<56x96xf32>
    %62 = arith.truncf %61 : vector<56x96xf32> to vector<56x96xbf16>
    %c3_56 = arith.constant 3 : index
    %c0_57 = arith.constant 0 : index
    %c0_58 = arith.constant 0 : index
    %63 = vector.load %arg2[%c3_56, %c0_57, %c0_58] : memref<5x96x256xbf16, #tpu.memory_space<vmem>>, vector<1x96x256xbf16>
    %64 = vector.shape_cast %63 : vector<1x96x256xbf16> to vector<96x256xbf16>
    %cst_59 = arith.constant dense<0.000000e+00> : vector<56x256xf32>
    %65 = tpu.matmul %62, %64, %cst_59 {dimension_numbers = #tpu.dot_dimension_numbers<[1], [0], [0], [1], [0, 0, 1, 1], [], []>} : vector<56x96xbf16>, vector<96x256xbf16>, vector<56x256xf32> -> vector<56x256xf32>
    %66 = arith.addf %59, %65 : vector<56x256xf32>
    %c1_60 = arith.constant 1 : index
    %c8_61 = arith.constant 8 : index
    %c0_62 = arith.constant 0 : index
    %67 = vector.load %arg1[%c1_60, %c8_61, %c0_62] : memref<4x64x96xf32, #tpu.memory_space<vmem>>, vector<1x56x96xf32>
    %68 = vector.shape_cast %67 : vector<1x56x96xf32> to vector<56x96xf32>
    %69 = arith.truncf %68 : vector<56x96xf32> to vector<56x96xbf16>
    %c4_63 = arith.constant 4 : index
    %c0_64 = arith.constant 0 : index
    %c0_65 = arith.constant 0 : index
    %70 = vector.load %arg2[%c4_63, %c0_64, %c0_65] : memref<5x96x256xbf16, #tpu.memory_space<vmem>>, vector<1x96x256xbf16>
    %71 = vector.shape_cast %70 : vector<1x96x256xbf16> to vector<96x256xbf16>
    %cst_66 = arith.constant dense<0.000000e+00> : vector<56x256xf32>
    %72 = tpu.matmul %69, %71, %cst_66 {dimension_numbers = #tpu.dot_dimension_numbers<[1], [0], [0], [1], [0, 0, 1, 1], [], []>} : vector<56x96xbf16>, vector<96x256xbf16>, vector<56x256xf32> -> vector<56x256xf32>
    %73 = arith.addf %66, %72 : vector<56x256xf32>
    %c0_67 = arith.constant 0 : index
    %c0_68 = arith.constant 0 : index
    %74 = vector.load %arg7[%c0_67, %c0_68] : memref<1x256xf32, #tpu.memory_space<vmem>>, vector<1x256xf32>
    %75 = vector.broadcast %74 : vector<1x256xf32> to vector<56x256xf32>
    %76 = arith.mulf %73, %75 : vector<56x256xf32>
    %c0_69 = arith.constant 0 : index
    %c0_70 = arith.constant 0 : index
    %77 = vector.load %arg8[%c0_69, %c0_70] : memref<1x256xf32, #tpu.memory_space<vmem>>, vector<1x256xf32>
    %78 = vector.broadcast %77 : vector<1x256xf32> to vector<56x256xf32>
    %79 = arith.addf %76, %78 : vector<56x256xf32>
    %80 = arith.maximumf %39, %79 : vector<56x256xf32>
    %81 = vector.extract_strided_slice %80 {offsets = [0, 0], sizes = [56, 128], strides = [1, 1]} : vector<56x256xf32> to vector<56x128xf32>
    %82 = vector.extract_strided_slice %80 {offsets = [0, 128], sizes = [56, 128], strides = [1, 1]} : vector<56x256xf32> to vector<56x128xf32>
    %83 = arith.maximumf %81, %82 : vector<56x128xf32>
    %cst_71 = arith.constant 0.000000e+00 : f32
    %84 = vector.broadcast %cst_71 : f32 to vector<56x128xf32>
    %85 = arith.maximumf %83, %84 : vector<56x128xf32>
    %c2_72 = arith.constant 2 : index
    %c0_73 = arith.constant 0 : index
    %c0_74 = arith.constant 0 : index
    %86 = vector.load %arg1[%c2_72, %c0_73, %c0_74] : memref<4x64x96xf32, #tpu.memory_space<vmem>>, vector<1x56x96xf32>
    %87 = vector.shape_cast %86 : vector<1x56x96xf32> to vector<56x96xf32>
    %88 = arith.truncf %87 : vector<56x96xf32> to vector<56x96xbf16>
    %c0_75 = arith.constant 0 : index
    %c0_76 = arith.constant 0 : index
    %c0_77 = arith.constant 0 : index
    %89 = vector.load %arg2[%c0_75, %c0_76, %c0_77] : memref<5x96x256xbf16, #tpu.memory_space<vmem>>, vector<1x96x256xbf16>
    %90 = vector.shape_cast %89 : vector<1x96x256xbf16> to vector<96x256xbf16>
    %cst_78 = arith.constant dense<0.000000e+00> : vector<56x256xf32>
    %91 = tpu.matmul %88, %90, %cst_78 {dimension_numbers = #tpu.dot_dimension_numbers<[1], [0], [0], [1], [0, 0, 1, 1], [], []>} : vector<56x96xbf16>, vector<96x256xbf16>, vector<56x256xf32> -> vector<56x256xf32>
    %c3_79 = arith.constant 3 : index
    %c0_80 = arith.constant 0 : index
    %c0_81 = arith.constant 0 : index
    %92 = vector.load %arg1[%c3_79, %c0_80, %c0_81] : memref<4x64x96xf32, #tpu.memory_space<vmem>>, vector<1x56x96xf32>
    %93 = vector.shape_cast %92 : vector<1x56x96xf32> to vector<56x96xf32>
    %94 = arith.truncf %93 : vector<56x96xf32> to vector<56x96xbf16>
    %c1_82 = arith.constant 1 : index
    %c0_83 = arith.constant 0 : index
    %c0_84 = arith.constant 0 : index
    %95 = vector.load %arg2[%c1_82, %c0_83, %c0_84] : memref<5x96x256xbf16, #tpu.memory_space<vmem>>, vector<1x96x256xbf16>
    %96 = vector.shape_cast %95 : vector<1x96x256xbf16> to vector<96x256xbf16>
    %cst_85 = arith.constant dense<0.000000e+00> : vector<56x256xf32>
    %97 = tpu.matmul %94, %96, %cst_85 {dimension_numbers = #tpu.dot_dimension_numbers<[1], [0], [0], [1], [0, 0, 1, 1], [], []>} : vector<56x96xbf16>, vector<96x256xbf16>, vector<56x256xf32> -> vector<56x256xf32>
    %98 = arith.addf %91, %97 : vector<56x256xf32>
    %c0_86 = arith.constant 0 : index
    %c8_87 = arith.constant 8 : index
    %c0_88 = arith.constant 0 : index
    %99 = vector.load %arg1[%c0_86, %c8_87, %c0_88] : memref<4x64x96xf32, #tpu.memory_space<vmem>>, vector<1x56x96xf32>
    %100 = vector.shape_cast %99 : vector<1x56x96xf32> to vector<56x96xf32>
    %101 = arith.truncf %100 : vector<56x96xf32> to vector<56x96xbf16>
    %c2_89 = arith.constant 2 : index
    %c0_90 = arith.constant 0 : index
    %c0_91 = arith.constant 0 : index
    %102 = vector.load %arg2[%c2_89, %c0_90, %c0_91] : memref<5x96x256xbf16, #tpu.memory_space<vmem>>, vector<1x96x256xbf16>
    %103 = vector.shape_cast %102 : vector<1x96x256xbf16> to vector<96x256xbf16>
    %cst_92 = arith.constant dense<0.000000e+00> : vector<56x256xf32>
    %104 = tpu.matmul %101, %103, %cst_92 {dimension_numbers = #tpu.dot_dimension_numbers<[1], [0], [0], [1], [0, 0, 1, 1], [], []>} : vector<56x96xbf16>, vector<96x256xbf16>, vector<56x256xf32> -> vector<56x256xf32>
    %105 = arith.addf %98, %104 : vector<56x256xf32>
    %c1_93 = arith.constant 1 : index
    %c8_94 = arith.constant 8 : index
    %c0_95 = arith.constant 0 : index
    %106 = vector.load %arg1[%c1_93, %c8_94, %c0_95] : memref<4x64x96xf32, #tpu.memory_space<vmem>>, vector<1x56x96xf32>
    %107 = vector.shape_cast %106 : vector<1x56x96xf32> to vector<56x96xf32>
    %108 = arith.truncf %107 : vector<56x96xf32> to vector<56x96xbf16>
    %c3_96 = arith.constant 3 : index
    %c0_97 = arith.constant 0 : index
    %c0_98 = arith.constant 0 : index
    %109 = vector.load %arg2[%c3_96, %c0_97, %c0_98] : memref<5x96x256xbf16, #tpu.memory_space<vmem>>, vector<1x96x256xbf16>
    %110 = vector.shape_cast %109 : vector<1x96x256xbf16> to vector<96x256xbf16>
    %cst_99 = arith.constant dense<0.000000e+00> : vector<56x256xf32>
    %111 = tpu.matmul %108, %110, %cst_99 {dimension_numbers = #tpu.dot_dimension_numbers<[1], [0], [0], [1], [0, 0, 1, 1], [], []>} : vector<56x96xbf16>, vector<96x256xbf16>, vector<56x256xf32> -> vector<56x256xf32>
    %112 = arith.addf %105, %111 : vector<56x256xf32>
    %c2_100 = arith.constant 2 : index
    %c8_101 = arith.constant 8 : index
    %c0_102 = arith.constant 0 : index
    %113 = vector.load %arg1[%c2_100, %c8_101, %c0_102] : memref<4x64x96xf32, #tpu.memory_space<vmem>>, vector<1x56x96xf32>
    %114 = vector.shape_cast %113 : vector<1x56x96xf32> to vector<56x96xf32>
    %115 = arith.truncf %114 : vector<56x96xf32> to vector<56x96xbf16>
    %c4_103 = arith.constant 4 : index
    %c0_104 = arith.constant 0 : index
    %c0_105 = arith.constant 0 : index
    %116 = vector.load %arg2[%c4_103, %c0_104, %c0_105] : memref<5x96x256xbf16, #tpu.memory_space<vmem>>, vector<1x96x256xbf16>
    %117 = vector.shape_cast %116 : vector<1x96x256xbf16> to vector<96x256xbf16>
    %cst_106 = arith.constant dense<0.000000e+00> : vector<56x256xf32>
    %118 = tpu.matmul %115, %117, %cst_106 {dimension_numbers = #tpu.dot_dimension_numbers<[1], [0], [0], [1], [0, 0, 1, 1], [], []>} : vector<56x96xbf16>, vector<96x256xbf16>, vector<56x256xf32> -> vector<56x256xf32>
    %119 = arith.addf %112, %118 : vector<56x256xf32>
    %c0_107 = arith.constant 0 : index
    %c0_108 = arith.constant 0 : index
    %120 = vector.load %arg7[%c0_107, %c0_108] : memref<1x256xf32, #tpu.memory_space<vmem>>, vector<1x256xf32>
    %121 = vector.broadcast %120 : vector<1x256xf32> to vector<56x256xf32>
    %122 = arith.mulf %119, %121 : vector<56x256xf32>
    %c0_109 = arith.constant 0 : index
    %c0_110 = arith.constant 0 : index
    %123 = vector.load %arg8[%c0_109, %c0_110] : memref<1x256xf32, #tpu.memory_space<vmem>>, vector<1x256xf32>
    %124 = vector.broadcast %123 : vector<1x256xf32> to vector<56x256xf32>
    %125 = arith.addf %122, %124 : vector<56x256xf32>
    %c3_111 = arith.constant 3 : index
    %c0_112 = arith.constant 0 : index
    %c0_113 = arith.constant 0 : index
    %126 = vector.load %arg1[%c3_111, %c0_112, %c0_113] : memref<4x64x96xf32, #tpu.memory_space<vmem>>, vector<1x56x96xf32>
    %127 = vector.shape_cast %126 : vector<1x56x96xf32> to vector<56x96xf32>
    %128 = arith.truncf %127 : vector<56x96xf32> to vector<56x96xbf16>
    %c0_114 = arith.constant 0 : index
    %c0_115 = arith.constant 0 : index
    %c0_116 = arith.constant 0 : index
    %129 = vector.load %arg2[%c0_114, %c0_115, %c0_116] : memref<5x96x256xbf16, #tpu.memory_space<vmem>>, vector<1x96x256xbf16>
    %130 = vector.shape_cast %129 : vector<1x96x256xbf16> to vector<96x256xbf16>
    %cst_117 = arith.constant dense<0.000000e+00> : vector<56x256xf32>
    %131 = tpu.matmul %128, %130, %cst_117 {dimension_numbers = #tpu.dot_dimension_numbers<[1], [0], [0], [1], [0, 0, 1, 1], [], []>} : vector<56x96xbf16>, vector<96x256xbf16>, vector<56x256xf32> -> vector<56x256xf32>
    %c0_118 = arith.constant 0 : index
    %c8_119 = arith.constant 8 : index
    %c0_120 = arith.constant 0 : index
    %132 = vector.load %arg1[%c0_118, %c8_119, %c0_120] : memref<4x64x96xf32, #tpu.memory_space<vmem>>, vector<1x56x96xf32>
    %133 = vector.shape_cast %132 : vector<1x56x96xf32> to vector<56x96xf32>
    %134 = arith.truncf %133 : vector<56x96xf32> to vector<56x96xbf16>
    %c1_121 = arith.constant 1 : index
    %c0_122 = arith.constant 0 : index
    %c0_123 = arith.constant 0 : index
    %135 = vector.load %arg2[%c1_121, %c0_122, %c0_123] : memref<5x96x256xbf16, #tpu.memory_space<vmem>>, vector<1x96x256xbf16>
    %136 = vector.shape_cast %135 : vector<1x96x256xbf16> to vector<96x256xbf16>
    %cst_124 = arith.constant dense<0.000000e+00> : vector<56x256xf32>
    %137 = tpu.matmul %134, %136, %cst_124 {dimension_numbers = #tpu.dot_dimension_numbers<[1], [0], [0], [1], [0, 0, 1, 1], [], []>} : vector<56x96xbf16>, vector<96x256xbf16>, vector<56x256xf32> -> vector<56x256xf32>
    %138 = arith.addf %131, %137 : vector<56x256xf32>
    %c1_125 = arith.constant 1 : index
    %c8_126 = arith.constant 8 : index
    %c0_127 = arith.constant 0 : index
    %139 = vector.load %arg1[%c1_125, %c8_126, %c0_127] : memref<4x64x96xf32, #tpu.memory_space<vmem>>, vector<1x56x96xf32>
    %140 = vector.shape_cast %139 : vector<1x56x96xf32> to vector<56x96xf32>
    %141 = arith.truncf %140 : vector<56x96xf32> to vector<56x96xbf16>
    %c2_128 = arith.constant 2 : index
    %c0_129 = arith.constant 0 : index
    %c0_130 = arith.constant 0 : index
    %142 = vector.load %arg2[%c2_128, %c0_129, %c0_130] : memref<5x96x256xbf16, #tpu.memory_space<vmem>>, vector<1x96x256xbf16>
    %143 = vector.shape_cast %142 : vector<1x96x256xbf16> to vector<96x256xbf16>
    %cst_131 = arith.constant dense<0.000000e+00> : vector<56x256xf32>
    %144 = tpu.matmul %141, %143, %cst_131 {dimension_numbers = #tpu.dot_dimension_numbers<[1], [0], [0], [1], [0, 0, 1, 1], [], []>} : vector<56x96xbf16>, vector<96x256xbf16>, vector<56x256xf32> -> vector<56x256xf32>
    %145 = arith.addf %138, %144 : vector<56x256xf32>
    %c2_132 = arith.constant 2 : index
    %c8_133 = arith.constant 8 : index
    %c0_134 = arith.constant 0 : index
    %146 = vector.load %arg1[%c2_132, %c8_133, %c0_134] : memref<4x64x96xf32, #tpu.memory_space<vmem>>, vector<1x56x96xf32>
    %147 = vector.shape_cast %146 : vector<1x56x96xf32> to vector<56x96xf32>
    %148 = arith.truncf %147 : vector<56x96xf32> to vector<56x96xbf16>
    %c3_135 = arith.constant 3 : index
    %c0_136 = arith.constant 0 : index
    %c0_137 = arith.constant 0 : index
    %149 = vector.load %arg2[%c3_135, %c0_136, %c0_137] : memref<5x96x256xbf16, #tpu.memory_space<vmem>>, vector<1x96x256xbf16>
    %150 = vector.shape_cast %149 : vector<1x96x256xbf16> to vector<96x256xbf16>
    %cst_138 = arith.constant dense<0.000000e+00> : vector<56x256xf32>
    %151 = tpu.matmul %148, %150, %cst_138 {dimension_numbers = #tpu.dot_dimension_numbers<[1], [0], [0], [1], [0, 0, 1, 1], [], []>} : vector<56x96xbf16>, vector<96x256xbf16>, vector<56x256xf32> -> vector<56x256xf32>
    %152 = arith.addf %145, %151 : vector<56x256xf32>
    %c3_139 = arith.constant 3 : index
    %c8_140 = arith.constant 8 : index
    %c0_141 = arith.constant 0 : index
    %153 = vector.load %arg1[%c3_139, %c8_140, %c0_141] : memref<4x64x96xf32, #tpu.memory_space<vmem>>, vector<1x56x96xf32>
    %154 = vector.shape_cast %153 : vector<1x56x96xf32> to vector<56x96xf32>
    %155 = arith.truncf %154 : vector<56x96xf32> to vector<56x96xbf16>
    %c4_142 = arith.constant 4 : index
    %c0_143 = arith.constant 0 : index
    %c0_144 = arith.constant 0 : index
    %156 = vector.load %arg2[%c4_142, %c0_143, %c0_144] : memref<5x96x256xbf16, #tpu.memory_space<vmem>>, vector<1x96x256xbf16>
    %157 = vector.shape_cast %156 : vector<1x96x256xbf16> to vector<96x256xbf16>
    %cst_145 = arith.constant dense<0.000000e+00> : vector<56x256xf32>
    %158 = tpu.matmul %155, %157, %cst_145 {dimension_numbers = #tpu.dot_dimension_numbers<[1], [0], [0], [1], [0, 0, 1, 1], [], []>} : vector<56x96xbf16>, vector<96x256xbf16>, vector<56x256xf32> -> vector<56x256xf32>
    %159 = arith.addf %152, %158 : vector<56x256xf32>
    %c0_146 = arith.constant 0 : index
    %c0_147 = arith.constant 0 : index
    %160 = vector.load %arg7[%c0_146, %c0_147] : memref<1x256xf32, #tpu.memory_space<vmem>>, vector<1x256xf32>
    %161 = vector.broadcast %160 : vector<1x256xf32> to vector<56x256xf32>
    %162 = arith.mulf %159, %161 : vector<56x256xf32>
    %c0_148 = arith.constant 0 : index
    %c0_149 = arith.constant 0 : index
    %163 = vector.load %arg8[%c0_148, %c0_149] : memref<1x256xf32, #tpu.memory_space<vmem>>, vector<1x256xf32>
    %164 = vector.broadcast %163 : vector<1x256xf32> to vector<56x256xf32>
    %165 = arith.addf %162, %164 : vector<56x256xf32>
    %166 = arith.maximumf %125, %165 : vector<56x256xf32>
    %167 = vector.extract_strided_slice %166 {offsets = [0, 0], sizes = [56, 128], strides = [1, 1]} : vector<56x256xf32> to vector<56x128xf32>
    %168 = vector.extract_strided_slice %166 {offsets = [0, 128], sizes = [56, 128], strides = [1, 1]} : vector<56x256xf32> to vector<56x128xf32>
    %169 = arith.maximumf %167, %168 : vector<56x128xf32>
    %cst_150 = arith.constant 0.000000e+00 : f32
    %170 = vector.broadcast %cst_150 : f32 to vector<56x128xf32>
    %171 = arith.maximumf %169, %170 : vector<56x128xf32>
    %172 = vector.extract_strided_slice %85 {offsets = [0, 0], sizes = [40, 128], strides = [1, 1]} : vector<56x128xf32> to vector<40x128xf32>
    %173 = arith.truncf %172 : vector<40x128xf32> to vector<40x128xbf16>
    %c0_151 = arith.constant 0 : index
    %c0_152 = arith.constant 0 : index
    %c0_153 = arith.constant 0 : index
    %174 = vector.load %arg3[%c0_151, %c0_152, %c0_153] : memref<5x128x256xbf16, #tpu.memory_space<vmem>>, vector<1x128x256xbf16>
    %175 = vector.shape_cast %174 : vector<1x128x256xbf16> to vector<128x256xbf16>
    %cst_154 = arith.constant dense<0.000000e+00> : vector<40x256xf32>
    %176 = tpu.matmul %173, %175, %cst_154 {dimension_numbers = #tpu.dot_dimension_numbers<[1], [0], [0], [1], [0, 0, 1, 1], [], []>} : vector<40x128xbf16>, vector<128x256xbf16>, vector<40x256xf32> -> vector<40x256xf32>
    %177 = vector.extract_strided_slice %171 {offsets = [0, 0], sizes = [40, 128], strides = [1, 1]} : vector<56x128xf32> to vector<40x128xf32>
    %178 = arith.truncf %177 : vector<40x128xf32> to vector<40x128xbf16>
    %c1_155 = arith.constant 1 : index
    %c0_156 = arith.constant 0 : index
    %c0_157 = arith.constant 0 : index
    %179 = vector.load %arg3[%c1_155, %c0_156, %c0_157] : memref<5x128x256xbf16, #tpu.memory_space<vmem>>, vector<1x128x256xbf16>
    %180 = vector.shape_cast %179 : vector<1x128x256xbf16> to vector<128x256xbf16>
    %cst_158 = arith.constant dense<0.000000e+00> : vector<40x256xf32>
    %181 = tpu.matmul %178, %180, %cst_158 {dimension_numbers = #tpu.dot_dimension_numbers<[1], [0], [0], [1], [0, 0, 1, 1], [], []>} : vector<40x128xbf16>, vector<128x256xbf16>, vector<40x256xf32> -> vector<40x256xf32>
    %182 = arith.addf %176, %181 : vector<40x256xf32>
    %183 = vector.extract_strided_slice %85 {offsets = [8, 0], sizes = [40, 128], strides = [1, 1]} : vector<56x128xf32> to vector<40x128xf32>
    %184 = arith.truncf %183 : vector<40x128xf32> to vector<40x128xbf16>
    %c2_159 = arith.constant 2 : index
    %c0_160 = arith.constant 0 : index
    %c0_161 = arith.constant 0 : index
    %185 = vector.load %arg3[%c2_159, %c0_160, %c0_161] : memref<5x128x256xbf16, #tpu.memory_space<vmem>>, vector<1x128x256xbf16>
    %186 = vector.shape_cast %185 : vector<1x128x256xbf16> to vector<128x256xbf16>
    %cst_162 = arith.constant dense<0.000000e+00> : vector<40x256xf32>
    %187 = tpu.matmul %184, %186, %cst_162 {dimension_numbers = #tpu.dot_dimension_numbers<[1], [0], [0], [1], [0, 0, 1, 1], [], []>} : vector<40x128xbf16>, vector<128x256xbf16>, vector<40x256xf32> -> vector<40x256xf32>
    %188 = arith.addf %182, %187 : vector<40x256xf32>
    %189 = vector.extract_strided_slice %171 {offsets = [8, 0], sizes = [40, 128], strides = [1, 1]} : vector<56x128xf32> to vector<40x128xf32>
    %190 = arith.truncf %189 : vector<40x128xf32> to vector<40x128xbf16>
    %c3_163 = arith.constant 3 : index
    %c0_164 = arith.constant 0 : index
    %c0_165 = arith.constant 0 : index
    %191 = vector.load %arg3[%c3_163, %c0_164, %c0_165] : memref<5x128x256xbf16, #tpu.memory_space<vmem>>, vector<1x128x256xbf16>
    %192 = vector.shape_cast %191 : vector<1x128x256xbf16> to vector<128x256xbf16>
    %cst_166 = arith.constant dense<0.000000e+00> : vector<40x256xf32>
    %193 = tpu.matmul %190, %192, %cst_166 {dimension_numbers = #tpu.dot_dimension_numbers<[1], [0], [0], [1], [0, 0, 1, 1], [], []>} : vector<40x128xbf16>, vector<128x256xbf16>, vector<40x256xf32> -> vector<40x256xf32>
    %194 = arith.addf %188, %193 : vector<40x256xf32>
    %195 = vector.extract_strided_slice %85 {offsets = [16, 0], sizes = [40, 128], strides = [1, 1]} : vector<56x128xf32> to vector<40x128xf32>
    %196 = arith.truncf %195 : vector<40x128xf32> to vector<40x128xbf16>
    %c4_167 = arith.constant 4 : index
    %c0_168 = arith.constant 0 : index
    %c0_169 = arith.constant 0 : index
    %197 = vector.load %arg3[%c4_167, %c0_168, %c0_169] : memref<5x128x256xbf16, #tpu.memory_space<vmem>>, vector<1x128x256xbf16>
    %198 = vector.shape_cast %197 : vector<1x128x256xbf16> to vector<128x256xbf16>
    %cst_170 = arith.constant dense<0.000000e+00> : vector<40x256xf32>
    %199 = tpu.matmul %196, %198, %cst_170 {dimension_numbers = #tpu.dot_dimension_numbers<[1], [0], [0], [1], [0, 0, 1, 1], [], []>} : vector<40x128xbf16>, vector<128x256xbf16>, vector<40x256xf32> -> vector<40x256xf32>
    %200 = arith.addf %194, %199 : vector<40x256xf32>
    %c0_171 = arith.constant 0 : index
    %c0_172 = arith.constant 0 : index
    %201 = vector.load %arg9[%c0_171, %c0_172] : memref<1x256xf32, #tpu.memory_space<vmem>>, vector<1x256xf32>
    %202 = vector.broadcast %201 : vector<1x256xf32> to vector<40x256xf32>
    %203 = arith.mulf %200, %202 : vector<40x256xf32>
    %c0_173 = arith.constant 0 : index
    %c0_174 = arith.constant 0 : index
    %204 = vector.load %arg10[%c0_173, %c0_174] : memref<1x256xf32, #tpu.memory_space<vmem>>, vector<1x256xf32>
    %205 = vector.broadcast %204 : vector<1x256xf32> to vector<40x256xf32>
    %206 = arith.addf %203, %205 : vector<40x256xf32>
    %207 = vector.extract_strided_slice %171 {offsets = [0, 0], sizes = [40, 128], strides = [1, 1]} : vector<56x128xf32> to vector<40x128xf32>
    %208 = arith.truncf %207 : vector<40x128xf32> to vector<40x128xbf16>
    %c0_175 = arith.constant 0 : index
    %c0_176 = arith.constant 0 : index
    %c0_177 = arith.constant 0 : index
    %209 = vector.load %arg3[%c0_175, %c0_176, %c0_177] : memref<5x128x256xbf16, #tpu.memory_space<vmem>>, vector<1x128x256xbf16>
    %210 = vector.shape_cast %209 : vector<1x128x256xbf16> to vector<128x256xbf16>
    %cst_178 = arith.constant dense<0.000000e+00> : vector<40x256xf32>
    %211 = tpu.matmul %208, %210, %cst_178 {dimension_numbers = #tpu.dot_dimension_numbers<[1], [0], [0], [1], [0, 0, 1, 1], [], []>} : vector<40x128xbf16>, vector<128x256xbf16>, vector<40x256xf32> -> vector<40x256xf32>
    %212 = vector.extract_strided_slice %85 {offsets = [8, 0], sizes = [40, 128], strides = [1, 1]} : vector<56x128xf32> to vector<40x128xf32>
    %213 = arith.truncf %212 : vector<40x128xf32> to vector<40x128xbf16>
    %c1_179 = arith.constant 1 : index
    %c0_180 = arith.constant 0 : index
    %c0_181 = arith.constant 0 : index
    %214 = vector.load %arg3[%c1_179, %c0_180, %c0_181] : memref<5x128x256xbf16, #tpu.memory_space<vmem>>, vector<1x128x256xbf16>
    %215 = vector.shape_cast %214 : vector<1x128x256xbf16> to vector<128x256xbf16>
    %cst_182 = arith.constant dense<0.000000e+00> : vector<40x256xf32>
    %216 = tpu.matmul %213, %215, %cst_182 {dimension_numbers = #tpu.dot_dimension_numbers<[1], [0], [0], [1], [0, 0, 1, 1], [], []>} : vector<40x128xbf16>, vector<128x256xbf16>, vector<40x256xf32> -> vector<40x256xf32>
    %217 = arith.addf %211, %216 : vector<40x256xf32>
    %218 = vector.extract_strided_slice %171 {offsets = [8, 0], sizes = [40, 128], strides = [1, 1]} : vector<56x128xf32> to vector<40x128xf32>
    %219 = arith.truncf %218 : vector<40x128xf32> to vector<40x128xbf16>
    %c2_183 = arith.constant 2 : index
    %c0_184 = arith.constant 0 : index
    %c0_185 = arith.constant 0 : index
    %220 = vector.load %arg3[%c2_183, %c0_184, %c0_185] : memref<5x128x256xbf16, #tpu.memory_space<vmem>>, vector<1x128x256xbf16>
    %221 = vector.shape_cast %220 : vector<1x128x256xbf16> to vector<128x256xbf16>
    %cst_186 = arith.constant dense<0.000000e+00> : vector<40x256xf32>
    %222 = tpu.matmul %219, %221, %cst_186 {dimension_numbers = #tpu.dot_dimension_numbers<[1], [0], [0], [1], [0, 0, 1, 1], [], []>} : vector<40x128xbf16>, vector<128x256xbf16>, vector<40x256xf32> -> vector<40x256xf32>
    %223 = arith.addf %217, %222 : vector<40x256xf32>
    %224 = vector.extract_strided_slice %85 {offsets = [16, 0], sizes = [40, 128], strides = [1, 1]} : vector<56x128xf32> to vector<40x128xf32>
    %225 = arith.truncf %224 : vector<40x128xf32> to vector<40x128xbf16>
    %c3_187 = arith.constant 3 : index
    %c0_188 = arith.constant 0 : index
    %c0_189 = arith.constant 0 : index
    %226 = vector.load %arg3[%c3_187, %c0_188, %c0_189] : memref<5x128x256xbf16, #tpu.memory_space<vmem>>, vector<1x128x256xbf16>
    %227 = vector.shape_cast %226 : vector<1x128x256xbf16> to vector<128x256xbf16>
    %cst_190 = arith.constant dense<0.000000e+00> : vector<40x256xf32>
    %228 = tpu.matmul %225, %227, %cst_190 {dimension_numbers = #tpu.dot_dimension_numbers<[1], [0], [0], [1], [0, 0, 1, 1], [], []>} : vector<40x128xbf16>, vector<128x256xbf16>, vector<40x256xf32> -> vector<40x256xf32>
    %229 = arith.addf %223, %228 : vector<40x256xf32>
    %230 = vector.extract_strided_slice %171 {offsets = [16, 0], sizes = [40, 128], strides = [1, 1]} : vector<56x128xf32> to vector<40x128xf32>
    %231 = arith.truncf %230 : vector<40x128xf32> to vector<40x128xbf16>
    %c4_191 = arith.constant 4 : index
    %c0_192 = arith.constant 0 : index
    %c0_193 = arith.constant 0 : index
    %232 = vector.load %arg3[%c4_191, %c0_192, %c0_193] : memref<5x128x256xbf16, #tpu.memory_space<vmem>>, vector<1x128x256xbf16>
    %233 = vector.shape_cast %232 : vector<1x128x256xbf16> to vector<128x256xbf16>
    %cst_194 = arith.constant dense<0.000000e+00> : vector<40x256xf32>
    %234 = tpu.matmul %231, %233, %cst_194 {dimension_numbers = #tpu.dot_dimension_numbers<[1], [0], [0], [1], [0, 0, 1, 1], [], []>} : vector<40x128xbf16>, vector<128x256xbf16>, vector<40x256xf32> -> vector<40x256xf32>
    %235 = arith.addf %229, %234 : vector<40x256xf32>
    %c0_195 = arith.constant 0 : index
    %c0_196 = arith.constant 0 : index
    %236 = vector.load %arg9[%c0_195, %c0_196] : memref<1x256xf32, #tpu.memory_space<vmem>>, vector<1x256xf32>
    %237 = vector.broadcast %236 : vector<1x256xf32> to vector<40x256xf32>
    %238 = arith.mulf %235, %237 : vector<40x256xf32>
    %c0_197 = arith.constant 0 : index
    %c0_198 = arith.constant 0 : index
    %239 = vector.load %arg10[%c0_197, %c0_198] : memref<1x256xf32, #tpu.memory_space<vmem>>, vector<1x256xf32>
    %240 = vector.broadcast %239 : vector<1x256xf32> to vector<40x256xf32>
    %241 = arith.addf %238, %240 : vector<40x256xf32>
    %242 = arith.maximumf %206, %241 : vector<40x256xf32>
    %243 = vector.extract_strided_slice %242 {offsets = [0, 0], sizes = [40, 128], strides = [1, 1]} : vector<40x256xf32> to vector<40x128xf32>
    %244 = vector.extract_strided_slice %242 {offsets = [0, 128], sizes = [40, 128], strides = [1, 1]} : vector<40x256xf32> to vector<40x128xf32>
    %245 = arith.maximumf %243, %244 : vector<40x128xf32>
    %cst_199 = arith.constant 0.000000e+00 : f32
    %246 = vector.broadcast %cst_199 : f32 to vector<40x128xf32>
    %247 = arith.maximumf %245, %246 : vector<40x128xf32>
    %248 = vector.extract_strided_slice %247 {offsets = [0, 0], sizes = [8, 128], strides = [1, 1]} : vector<40x128xf32> to vector<8x128xf32>
    %249 = arith.truncf %248 : vector<8x128xf32> to vector<8x128xbf16>
    %c0_200 = arith.constant 0 : index
    %c0_201 = arith.constant 0 : index
    %250 = vector.load %arg4[%c0_200, %c0_201] : memref<640x128xbf16, #tpu.memory_space<vmem>>, vector<128x128xbf16>
    %cst_202 = arith.constant dense<0.000000e+00> : vector<8x128xf32>
    %251 = tpu.matmul %249, %250, %cst_202 {dimension_numbers = #tpu.dot_dimension_numbers<[1], [0], [0], [1], [0, 0, 1, 1], [], []>} : vector<8x128xbf16>, vector<128x128xbf16>, vector<8x128xf32> -> vector<8x128xf32>
    %252 = vector.extract_strided_slice %247 {offsets = [8, 0], sizes = [8, 128], strides = [1, 1]} : vector<40x128xf32> to vector<8x128xf32>
    %253 = arith.truncf %252 : vector<8x128xf32> to vector<8x128xbf16>
    %c128 = arith.constant 128 : index
    %c0_203 = arith.constant 0 : index
    %254 = vector.load %arg4[%c128, %c0_203] : memref<640x128xbf16, #tpu.memory_space<vmem>>, vector<128x128xbf16>
    %cst_204 = arith.constant dense<0.000000e+00> : vector<8x128xf32>
    %255 = tpu.matmul %253, %254, %cst_204 {dimension_numbers = #tpu.dot_dimension_numbers<[1], [0], [0], [1], [0, 0, 1, 1], [], []>} : vector<8x128xbf16>, vector<128x128xbf16>, vector<8x128xf32> -> vector<8x128xf32>
    %256 = arith.addf %251, %255 : vector<8x128xf32>
    %257 = vector.extract_strided_slice %247 {offsets = [16, 0], sizes = [8, 128], strides = [1, 1]} : vector<40x128xf32> to vector<8x128xf32>
    %258 = arith.truncf %257 : vector<8x128xf32> to vector<8x128xbf16>
    %c256 = arith.constant 256 : index
    %c0_205 = arith.constant 0 : index
    %259 = vector.load %arg4[%c256, %c0_205] : memref<640x128xbf16, #tpu.memory_space<vmem>>, vector<128x128xbf16>
    %cst_206 = arith.constant dense<0.000000e+00> : vector<8x128xf32>
    %260 = tpu.matmul %258, %259, %cst_206 {dimension_numbers = #tpu.dot_dimension_numbers<[1], [0], [0], [1], [0, 0, 1, 1], [], []>} : vector<8x128xbf16>, vector<128x128xbf16>, vector<8x128xf32> -> vector<8x128xf32>
    %261 = arith.addf %256, %260 : vector<8x128xf32>
    %262 = vector.extract_strided_slice %247 {offsets = [24, 0], sizes = [8, 128], strides = [1, 1]} : vector<40x128xf32> to vector<8x128xf32>
    %263 = arith.truncf %262 : vector<8x128xf32> to vector<8x128xbf16>
    %c384 = arith.constant 384 : index
    %c0_207 = arith.constant 0 : index
    %264 = vector.load %arg4[%c384, %c0_207] : memref<640x128xbf16, #tpu.memory_space<vmem>>, vector<128x128xbf16>
    %cst_208 = arith.constant dense<0.000000e+00> : vector<8x128xf32>
    %265 = tpu.matmul %263, %264, %cst_208 {dimension_numbers = #tpu.dot_dimension_numbers<[1], [0], [0], [1], [0, 0, 1, 1], [], []>} : vector<8x128xbf16>, vector<128x128xbf16>, vector<8x128xf32> -> vector<8x128xf32>
    %266 = arith.addf %261, %265 : vector<8x128xf32>
    %267 = vector.extract_strided_slice %247 {offsets = [32, 0], sizes = [8, 128], strides = [1, 1]} : vector<40x128xf32> to vector<8x128xf32>
    %268 = arith.truncf %267 : vector<8x128xf32> to vector<8x128xbf16>
    %c512 = arith.constant 512 : index
    %c0_209 = arith.constant 0 : index
    %269 = vector.load %arg4[%c512, %c0_209] : memref<640x128xbf16, #tpu.memory_space<vmem>>, vector<128x128xbf16>
    %cst_210 = arith.constant dense<0.000000e+00> : vector<8x128xf32>
    %270 = tpu.matmul %268, %269, %cst_210 {dimension_numbers = #tpu.dot_dimension_numbers<[1], [0], [0], [1], [0, 0, 1, 1], [], []>} : vector<8x128xbf16>, vector<128x128xbf16>, vector<8x128xf32> -> vector<8x128xf32>
    %271 = arith.addf %266, %270 : vector<8x128xf32>
    %c0_211 = arith.constant 0 : index
    %c0_212 = arith.constant 0 : index
    %272 = vector.load %arg11[%c0_211, %c0_212] : memref<1x128xf32, #tpu.memory_space<vmem>>, vector<1x128xf32>
    %273 = vector.broadcast %272 : vector<1x128xf32> to vector<8x128xf32>
    %274 = arith.mulf %271, %273 : vector<8x128xf32>
    %c0_213 = arith.constant 0 : index
    %c0_214 = arith.constant 0 : index
    %275 = vector.load %arg12[%c0_213, %c0_214] : memref<1x128xf32, #tpu.memory_space<vmem>>, vector<1x128xf32>
    %276 = vector.broadcast %275 : vector<1x128xf32> to vector<8x128xf32>
    %277 = arith.addf %274, %276 : vector<8x128xf32>
    %cst_215 = arith.constant 0.000000e+00 : f32
    %278 = vector.broadcast %cst_215 : f32 to vector<8x128xf32>
    %279 = arith.maximumf %277, %278 : vector<8x128xf32>
    %280 = arith.truncf %279 : vector<8x128xf32> to vector<8x128xbf16>
    %c0_216 = arith.constant 0 : index
    %c0_217 = arith.constant 0 : index
    %281 = vector.load %arg5[%c0_216, %c0_217] : memref<128x128xbf16, #tpu.memory_space<vmem>>, vector<128x128xbf16>
    %cst_218 = arith.constant dense<0.000000e+00> : vector<8x128xf32>
    %282 = tpu.matmul %280, %281, %cst_218 {dimension_numbers = #tpu.dot_dimension_numbers<[1], [0], [0], [1], [0, 0, 1, 1], [], []>} : vector<8x128xbf16>, vector<128x128xbf16>, vector<8x128xf32> -> vector<8x128xf32>
    %c0_219 = arith.constant 0 : index
    %c0_220 = arith.constant 0 : index
    %283 = vector.load %arg13[%c0_219, %c0_220] : memref<1x128xf32, #tpu.memory_space<vmem>>, vector<1x128xf32>
    %284 = vector.broadcast %283 : vector<1x128xf32> to vector<8x128xf32>
    %285 = arith.mulf %282, %284 : vector<8x128xf32>
    %c0_221 = arith.constant 0 : index
    %c0_222 = arith.constant 0 : index
    %286 = vector.load %arg14[%c0_221, %c0_222] : memref<1x128xf32, #tpu.memory_space<vmem>>, vector<1x128xf32>
    %287 = vector.broadcast %286 : vector<1x128xf32> to vector<8x128xf32>
    %288 = arith.addf %285, %287 : vector<8x128xf32>
    %cst_223 = arith.constant 0.000000e+00 : f32
    %289 = vector.broadcast %cst_223 : f32 to vector<8x128xf32>
    %290 = arith.maximumf %288, %289 : vector<8x128xf32>
    %291 = arith.truncf %290 : vector<8x128xf32> to vector<8x128xbf16>
    %c0_224 = arith.constant 0 : index
    %c0_225 = arith.constant 0 : index
    %292 = vector.load %arg6[%c0_224, %c0_225] : memref<128x128xbf16, #tpu.memory_space<vmem>>, vector<128x128xbf16>
    %cst_226 = arith.constant dense<0.000000e+00> : vector<8x128xf32>
    %293 = tpu.matmul %291, %292, %cst_226 {dimension_numbers = #tpu.dot_dimension_numbers<[1], [0], [0], [1], [0, 0, 1, 1], [], []>} : vector<8x128xbf16>, vector<128x128xbf16>, vector<8x128xf32> -> vector<8x128xf32>
    %c0_227 = arith.constant 0 : index
    %c0_228 = arith.constant 0 : index
    %294 = vector.load %arg15[%c0_227, %c0_228] : memref<1x128xf32, #tpu.memory_space<vmem>>, vector<1x128xf32>
    %295 = vector.broadcast %294 : vector<1x128xf32> to vector<8x128xf32>
    %296 = arith.addf %293, %295 : vector<8x128xf32>
    %c0_229 = arith.constant 0 : index
    %c0_230 = arith.constant 0 : index
    %297 = vector.load %arg16[%c0_229, %c0_230] : memref<8x128xf32, #tpu.memory_space<vmem>>, vector<8x128xf32>
    tpu.vector_store %arg16[%c0_229, %c0_230], %296 {strides = array<i32>} : memref<8x128xf32, #tpu.memory_space<vmem>>, vector<8x128xf32>,
    return
  }
  func.func @transform_0(%arg0: i32) -> (i32, i32, i32) {
    %c0_i32 = arith.constant 0 : i32
    %c0_i32_0 = arith.constant 0 : i32
    %c0_i32_1 = arith.constant 0 : i32
    return %arg0, %c0_i32, %c0_i32_0 : i32, i32, i32
  }
  func.func @transform_1(%arg0: i32) -> (i32, i32, i32) {
    %c0_i32 = arith.constant 0 : i32
    %c0_i32_0 = arith.constant 0 : i32
    %c0_i32_1 = arith.constant 0 : i32
    %c0_i32_2 = arith.constant 0 : i32
    return %c0_i32, %c0_i32_0, %c0_i32_1 : i32, i32, i32
  }
  func.func @transform_2(%arg0: i32) -> (i32, i32, i32) {
    %c0_i32 = arith.constant 0 : i32
    %c0_i32_0 = arith.constant 0 : i32
    %c0_i32_1 = arith.constant 0 : i32
    %c0_i32_2 = arith.constant 0 : i32
    return %c0_i32, %c0_i32_0, %c0_i32_1 : i32, i32, i32
  }
  func.func @transform_3(%arg0: i32) -> (i32, i32) {
    %c0_i32 = arith.constant 0 : i32
    %c0_i32_0 = arith.constant 0 : i32
    %c0_i32_1 = arith.constant 0 : i32
    return %c0_i32, %c0_i32_0 : i32, i32
  }
  func.func @transform_4(%arg0: i32) -> (i32, i32) {
    %c0_i32 = arith.constant 0 : i32
    %c0_i32_0 = arith.constant 0 : i32
    %c0_i32_1 = arith.constant 0 : i32
    return %c0_i32, %c0_i32_0 : i32, i32
  }
  func.func @transform_5(%arg0: i32) -> (i32, i32) {
    %c0_i32 = arith.constant 0 : i32
    %c0_i32_0 = arith.constant 0 : i32
    %c0_i32_1 = arith.constant 0 : i32
    return %c0_i32, %c0_i32_0 : i32, i32
  }
  func.func @transform_6(%arg0: i32) -> (i32, i32) {
    %c0_i32 = arith.constant 0 : i32
    %c0_i32_0 = arith.constant 0 : i32
    %c0_i32_1 = arith.constant 0 : i32
    return %c0_i32, %c0_i32_0 : i32, i32
  }
  func.func @transform_7(%arg0: i32) -> (i32, i32) {
    %c0_i32 = arith.constant 0 : i32
    %c0_i32_0 = arith.constant 0 : i32
    %c0_i32_1 = arith.constant 0 : i32
    return %c0_i32, %c0_i32_0 : i32, i32
  }
  func.func @transform_8(%arg0: i32) -> (i32, i32) {
    %c0_i32 = arith.constant 0 : i32
    %c0_i32_0 = arith.constant 0 : i32
    %c0_i32_1 = arith.constant 0 : i32
    return %c0_i32, %c0_i32_0 : i32, i32
  }
  func.func @transform_9(%arg0: i32) -> (i32, i32) {
    %c0_i32 = arith.constant 0 : i32
    %c0_i32_0 = arith.constant 0 : i32
    %c0_i32_1 = arith.constant 0 : i32
    return %c0_i32, %c0_i32_0 : i32, i32
  }
  func.func @transform_10(%arg0: i32) -> (i32, i32) {
    %c0_i32 = arith.constant 0 : i32
    %c0_i32_0 = arith.constant 0 : i32
    %c0_i32_1 = arith.constant 0 : i32
    return %c0_i32, %c0_i32_0 : i32, i32
  }
  func.func @transform_11(%arg0: i32) -> (i32, i32) {
    %c0_i32 = arith.constant 0 : i32
    %c0_i32_0 = arith.constant 0 : i32
    %c0_i32_1 = arith.constant 0 : i32
    return %c0_i32, %c0_i32_0 : i32, i32
  }
  func.func @transform_12(%arg0: i32) -> (i32, i32) {
    %c0_i32 = arith.constant 0 : i32
    %c0_i32_0 = arith.constant 0 : i32
    %c0_i32_1 = arith.constant 0 : i32
    return %c0_i32, %c0_i32_0 : i32, i32
  }
  func.func @transform_13(%arg0: i32) -> (i32, i32) {
    %c0_i32 = arith.constant 0 : i32
    %c0_i32_0 = arith.constant 0 : i32
    %c0_i32_1 = arith.constant 0 : i32
    return %c0_i32, %c0_i32_0 : i32, i32
  }
  func.func @transform_14(%arg0: i32) -> (i32, i32) {
    %c0_i32 = arith.constant 0 : i32
    %c0_i32_0 = arith.constant 0 : i32
    %c0_i32_1 = arith.constant 0 : i32
    return %c0_i32, %c0_i32_0 : i32, i32
  }
  func.func @transform_15(%arg0: i32) -> (i32, i32) {
    %c0_i32 = arith.constant 0 : i32
    %c0_i32_0 = arith.constant 0 : i32
    return %arg0, %c0_i32 : i32, i32
  }
}

</mosaic_0001>

<llo_original>
// kernel: tile.23
$region0: #{tile.23}
  #allocation0 [shape = 's32[1]{0}', space=sflag, size = 0x4, scoped, tag = 'scoped memory for tile.23']
  %s0 = inlined_call_operand.vmem [shape: f32[8], index: 0, kind: input, shape index: {}]
  %s1 = inlined_call_operand.vmem [shape: f32[32,8], index: 1, kind: output, shape index: {}]
  // Predicated region
  $region2: #{tile.23} parent=0 // pred_check
    _
  $region3: #{tile.23} parent=0 // pred_check_branch
    %3 = sbr.rel (0) target = $region5
  $region4: #{tile.23} parent=0 // pred_region
    _
  $region5: #{tile.23} parent=0 // pred_fallthru
    _
  %v4 = vld [vmem:[%s0] ss:$0 sm:$0xff]
  %5 = vst [vmem:[%s1] sm:$0xff] %v4
  %s6 = scalar_lea.vmem %s1, 8
  %7 = vst [vmem:[%s6] sm:$0xff] %v4
  %s8 = scalar_lea.vmem %s1, 16
  %9 = vst [vmem:[%s8] sm:$0xff] %v4
  %s10 = scalar_lea.vmem %s1, 24
  %11 = vst [vmem:[%s10] sm:$0xff] %v4

// kernel: tile.24
$region0: #{tile.24}
  %s0 = inlined_call_operand.vmem [shape: f32[32,8], index: 0, kind: input, shape index: {}]
  %s1 = inlined_call_operand.vmem [shape: f32[1,256], index: 1, kind: output, shape index: {}]
  $region1: #{tile.24} parent=0
    #allocation0 [shape = 'u8[8192]{0}', space=vmem, size = 0x2000, scoped, tag = 'scoped mem for output reshape']
    %s2 = smov 3
    %v3 = vld [vmem:[%s0] ss:$16 sm:%s2]
    %vm4 = vcmask 64512
    %5 = vst.msk [vmem:[#allocation0] ss:$8 sm:$0x3] %vm4, %v3
    %s6 = scalar_lea.vmem %s0, 15
    %s7 = smov 3
    %v8 = vld [vmem:[%s6] ss:$16 sm:%s7]
    %9 = vrot.lane.b32.xlu0 %v8, 120
    %v10 = vpop.permute.xlu0 %9
    %vm11 = vcmask 1048512
    %12 = vst.msk [vmem:[#allocation0] ss:$8 sm:$0x3] %vm11, %v10
    %s13 = scalar_lea.vmem %s0, 14
    %s14 = smov 3
    %v15 = vld [vmem:[%s13] ss:$16 sm:%s14]
    %16 = vrot.lane.b32.xlu0 %v15, 112
    %v17 = vpop.permute.xlu0 %16
    %vm18 = vcmask 982912
    %19 = vst.msk [vmem:[#allocation0] ss:$8 sm:$0x3] %vm18, %v17
    %s20 = scalar_lea.vmem %s0, 13
    %s21 = smov 3
    %v22 = vld [vmem:[%s20] ss:$16 sm:%s21]
    %23 = vrot.lane.b32.xlu0 %v22, 104
    %v24 = vpop.permute.xlu0 %23
    %vm25 = vcmask 917312
    %26 = vst.msk [vmem:[#allocation0] ss:$8 sm:$0x3] %vm25, %v24
    %s27 = scalar_lea.vmem %s0, 12
    %s28 = smov 3
    %v29 = vld [vmem:[%s27] ss:$16 sm:%s28]
    %30 = vrot.lane.b32.xlu0 %v29, 96
    %v31 = vpop.permute.xlu0 %30
    %vm32 = vcmask 851712
    %33 = vst.msk [vmem:[#allocation0] ss:$8 sm:$0x3] %vm32, %v31
    %s34 = scalar_lea.vmem %s0, 11
    %s35 = smov 3
    %v36 = vld [vmem:[%s34] ss:$16 sm:%s35]
    %37 = vrot.lane.b32.xlu0 %v36, 88
    %v38 = vpop.permute.xlu0 %37
    %vm39 = vcmask 786112
    %40 = vst.msk [vmem:[#allocation0] ss:$8 sm:$0x3] %vm39, %v38
    %s41 = scalar_lea.vmem %s0, 10
    %s42 = smov 3
    %v43 = vld [vmem:[%s41] ss:$16 sm:%s42]
    %44 = vrot.lane.b32.xlu0 %v43, 80
    %v45 = vpop.permute.xlu0 %44
    %vm46 = vcmask 720512
    %47 = vst.msk [vmem:[#allocation0] ss:$8 sm:$0x3] %vm46, %v45
    %s48 = scalar_lea.vmem %s0, 9
    %s49 = smov 3
    %v50 = vld [vmem:[%s48] ss:$16 sm:%s49]
    %51 = vrot.lane.b32.xlu0 %v50, 72
    %v52 = vpop.permute.xlu0 %51
    %vm53 = vcmask 654912
    %54 = vst.msk [vmem:[#allocation0] ss:$8 sm:$0x3] %vm53, %v52
    %s55 = scalar_lea.vmem %s0, 8
    %s56 = smov 3
    %v57 = vld [vmem:[%s55] ss:$16 sm:%s56]
    %58 = vrot.lane.b32.xlu0 %v57, 64
    %v59 = vpop.permute.xlu0 %58
    %vm60 = vcmask 589312
    %61 = vst.msk [vmem:[#allocation0] ss:$8 sm:$0x3] %vm60, %v59
    %s62 = scalar_lea.vmem %s0, 7
    %s63 = smov 3
    %v64 = vld [vmem:[%s62] ss:$16 sm:%s63]
    %65 = vrot.lane.b32.xlu0 %v64, 56
    %v66 = vpop.permute.xlu0 %65
    %vm67 = vcmask 523712
    %68 = vst.msk [vmem:[#allocation0] ss:$8 sm:$0x3] %vm67, %v66
    %s69 = scalar_lea.vmem %s0, 6
    %s70 = smov 3
    %v71 = vld [vmem:[%s69] ss:$16 sm:%s70]
    %72 = vrot.lane.b32.xlu0 %v71, 48
    %v73 = vpop.permute.xlu0 %72
    %vm74 = vcmask 458112
    %75 = vst.msk [vmem:[#allocation0] ss:$8 sm:$0x3] %vm74, %v73
    %s76 = scalar_lea.vmem %s0, 5
    %s77 = smov 3
    %v78 = vld [vmem:[%s76] ss:$16 sm:%s77]
    %79 = vrot.lane.b32.xlu0 %v78, 40
    %v80 = vpop.permute.xlu0 %79
    %vm81 = vcmask 392512
    %82 = vst.msk [vmem:[#allocation0] ss:$8 sm:$0x3] %vm81, %v80
    %s83 = scalar_lea.vmem %s0, 4
    %s84 = smov 3
    %v85 = vld [vmem:[%s83] ss:$16 sm:%s84]
    %86 = vrot.lane.b32.xlu0 %v85, 32
    %v87 = vpop.permute.xlu0 %86
    %vm88 = vcmask 326912
    %89 = vst.msk [vmem:[#allocation0] ss:$8 sm:$0x3] %vm88, %v87
    %s90 = scalar_lea.vmem %s0, 3
    %s91 = smov 3
    %v92 = vld [vmem:[%s90] ss:$16 sm:%s91]
    %93 = vrot.lane.b32.xlu0 %v92, 24
    %v94 = vpop.permute.xlu0 %93
    %vm95 = vcmask 261312
    %96 = vst.msk [vmem:[#allocation0] ss:$8 sm:$0x3] %vm95, %v94
    %s97 = scalar_lea.vmem %s0, 2
    %s98 = smov 3
    %v99 = vld [vmem:[%s97] ss:$16 sm:%s98]
    %100 = vrot.lane.b32.xlu0 %v99, 16
    %v101 = vpop.permute.xlu0 %100
    %vm102 = vcmask 195712
    %103 = vst.msk [vmem:[#allocation0] ss:$8 sm:$0x3] %vm102, %v101
    %s104 = scalar_lea.vmem %s0, 1
    %s105 = smov 3
    %v106 = vld [vmem:[%s104] ss:$16 sm:%s105]
    %107 = vrot.lane.b32.xlu0 %v106, 8
    %v108 = vpop.permute.xlu0 %107
    %vm109 = vcmask 130112
    %110 = vst.msk [vmem:[#allocation0] ss:$8 sm:$0x3] %vm109, %v108
    %s112 = sshllo.u32 0, 1
    %v114 = vld [vmem:[#allocation0] sm:%s112]
    %s115 = sshllo.u32 0, 1
    %116 = vst [vmem:[%s1] sm:%s115] %v114
    %s117 = scalar_lea.vmem [#allocation0], 8
    %v118 = vld [vmem:[%s117] sm:%s112]
    %s119 = sshllo.u32 0, 1
    %s120 = scalar_lea.vmem %s1, 1
    %121 = vst [vmem:[%s120] sm:%s119] %v118

// kernel: tile.33
$region0: #{tile.33}
  #allocation0 [shape = 's32[1]{0}', space=sflag, size = 0x4, scoped, tag = 'scoped memory for tile.33']
  %s0 = inlined_call_operand.vmem [shape: f32[16], index: 0, kind: input, shape index: {}]
  %s1 = inlined_call_operand.vmem [shape: f32[16,16], index: 1, kind: output, shape index: {}]
  // Predicated region
  $region2: #{tile.33} parent=0 // pred_check
    _
  $region3: #{tile.33} parent=0 // pred_check_branch
    %3 = sbr.rel (0) target = $region5
  $region4: #{tile.33} parent=0 // pred_region
    _
  $region5: #{tile.33} parent=0 // pred_fallthru
    _
  %v4 = vld [vmem:[%s0] ss:$0 sm:$0xff]
  %5 = vst [vmem:[%s1] sm:$0xff] %v4
  %s6 = scalar_lea.vmem %s1, 8
  %7 = vst [vmem:[%s6] sm:$0xff] %v4

// kernel: tile.34
$region0: #{tile.34}
  %s0 = inlined_call_operand.vmem [shape: f32[16,16], index: 0, kind: input, shape index: {}]
  %s1 = inlined_call_operand.vmem [shape: f32[1,256], index: 1, kind: output, shape index: {}]
  $region1: #{tile.34} parent=0
    #allocation0 [shape = 'u8[8192]{0}', space=vmem, size = 0x2000, scoped, tag = 'scoped mem for output reshape']
    %s2 = smov 3
    %v3 = vld [vmem:[%s0] ss:$8 sm:%s2]
    %vm4 = vcmask 130048
    %5 = vst.msk [vmem:[#allocation0] ss:$8 sm:$0x3] %vm4, %v3
    %s6 = scalar_lea.vmem %s0, 7
    %s7 = smov 3
    %v8 = vld [vmem:[%s6] ss:$8 sm:%s7]
    %9 = vrot.lane.b32.xlu0 %v8, 112
    %v10 = vpop.permute.xlu0 %9
    %vm11 = vcmask 1048448
    %12 = vst.msk [vmem:[#allocation0] ss:$8 sm:$0x3] %vm11, %v10
    %s13 = scalar_lea.vmem %s0, 6
    %s14 = smov 3
    %v15 = vld [vmem:[%s13] ss:$8 sm:%s14]
    %16 = vrot.lane.b32.xlu0 %v15, 96
    %v17 = vpop.permute.xlu0 %16
    %vm18 = vcmask 917248
    %19 = vst.msk [vmem:[#allocation0] ss:$8 sm:$0x3] %vm18, %v17
    %s20 = scalar_lea.vmem %s0, 5
    %s21 = smov 3
    %v22 = vld [vmem:[%s20] ss:$8 sm:%s21]
    %23 = vrot.lane.b32.xlu0 %v22, 80
    %v24 = vpop.permute.xlu0 %23
    %vm25 = vcmask 786048
    %26 = vst.msk [vmem:[#allocation0] ss:$8 sm:$0x3] %vm25, %v24
    %s27 = scalar_lea.vmem %s0, 4
    %s28 = smov 3
    %v29 = vld [vmem:[%s27] ss:$8 sm:%s28]
    %30 = vrot.lane.b32.xlu0 %v29, 64
    %v31 = vpop.permute.xlu0 %30
    %vm32 = vcmask 654848
    %33 = vst.msk [vmem:[#allocation0] ss:$8 sm:$0x3] %vm32, %v31
    %s34 = scalar_lea.vmem %s0, 3
    %s35 = smov 3
    %v36 = vld [vmem:[%s34] ss:$8 sm:%s35]
    %37 = vrot.lane.b32.xlu0 %v36, 48
    %v38 = vpop.permute.xlu0 %37
    %vm39 = vcmask 523648
    %40 = vst.msk [vmem:[#allocation0] ss:$8 sm:$0x3] %vm39, %v38
    %s41 = scalar_lea.vmem %s0, 2
    %s42 = smov 3
    %v43 = vld [vmem:[%s41] ss:$8 sm:%s42]
    %44 = vrot.lane.b32.xlu0 %v43, 32
    %v45 = vpop.permute.xlu0 %44
    %vm46 = vcmask 392448
    %47 = vst.msk [vmem:[#allocation0] ss:$8 sm:$0x3] %vm46, %v45
    %s48 = scalar_lea.vmem %s0, 1
    %s49 = smov 3
    %v50 = vld [vmem:[%s48] ss:$8 sm:%s49]
    %51 = vrot.lane.b32.xlu0 %v50, 16
    %v52 = vpop.permute.xlu0 %51
    %vm53 = vcmask 261248
    %54 = vst.msk [vmem:[#allocation0] ss:$8 sm:$0x3] %vm53, %v52
    %s56 = sshllo.u32 0, 1
    %v58 = vld [vmem:[#allocation0] sm:%s56]
    %s59 = sshllo.u32 0, 1
    %60 = vst [vmem:[%s1] sm:%s59] %v58
    %s61 = scalar_lea.vmem [#allocation0], 8
    %v62 = vld [vmem:[%s61] sm:%s56]
    %s63 = sshllo.u32 0, 1
    %s64 = scalar_lea.vmem %s1, 1
    %65 = vst [vmem:[%s64] sm:%s63] %v62

// kernel: lenet_forward.1
$region0: #{lenet_forward.1}
  #allocation0 [shape = 'u32[]', space=smem, size = 0x4, offset = 0x4, fixed_abs, tag = 'smem constant byte address 0x4 - core index']
  #allocation1 [shape = 'u32[144,128]{1,0:T(1,128)}', space=vmem, size = 0x12000, scoped, tag = 'internal scratch']
  %s0 = inlined_call_operand.vmem [shape: f32[4,64,96], index: 0, kind: input, shape index: {}]
  %s1 = inlined_call_operand.vmem [shape: bf16[5,96,256], index: 1, kind: input, shape index: {}]
  %s2 = inlined_call_operand.vmem [shape: bf16[5,128,256], index: 2, kind: input, shape index: {}]
  %s3 = inlined_call_operand.vmem [shape: bf16[640,128], index: 3, kind: input, shape index: {}]
  %s4 = inlined_call_operand.vmem [shape: bf16[128,128], index: 4, kind: input, shape index: {}]
  %s5 = inlined_call_operand.vmem [shape: bf16[128,128], index: 5, kind: input, shape index: {}]
  %s6 = inlined_call_operand.vmem [shape: f32[1,256], index: 6, kind: input, shape index: {}]
  %s7 = inlined_call_operand.vmem [shape: f32[1,256], index: 7, kind: input, shape index: {}]
  %s8 = inlined_call_operand.vmem [shape: f32[1,256], index: 8, kind: input, shape index: {}]
  %s9 = inlined_call_operand.vmem [shape: f32[1,256], index: 9, kind: input, shape index: {}]
  %s10 = inlined_call_operand.vmem [shape: f32[1,128], index: 10, kind: input, shape index: {}]
  %s11 = inlined_call_operand.vmem [shape: f32[1,128], index: 11, kind: input, shape index: {}]
  %s12 = inlined_call_operand.vmem [shape: f32[1,128], index: 12, kind: input, shape index: {}]
  %s13 = inlined_call_operand.vmem [shape: f32[1,128], index: 13, kind: input, shape index: {}]
  %s14 = inlined_call_operand.vmem [shape: f32[1,128], index: 14, kind: input, shape index: {}]
  %s15 = inlined_call_operand.vmem [shape: f32[8,128], index: 15, kind: output, shape index: {}]
  %s16 = sld [smem:[#allocation0]]
  $region70: #{lenet_forward.1} parent=0
    _
  %s18 = ssub.s32 1, %s16
  %s19 = scalar_select 0, %s18, %s16
  // Predicated region
  $region2: #{lenet_forward.1} parent=0 // pred_check
    _
  $region3: #{lenet_forward.1} parent=0 // pred_check_branch
    %21 = sbr.rel (0) target = $region5
  $region4: #{lenet_forward.1} parent=0 // pred_region
    _
  $region5: #{lenet_forward.1} parent=0 // pred_fallthru
    _
  // Predicated region
  $region6: #{lenet_forward.1} parent=0 // pred_check
    _
  $region7: #{lenet_forward.1} parent=0 // pred_check_branch
    %23 = sbr.rel (0) target = $region9
  $region8: #{lenet_forward.1} parent=0 // pred_region
    _
  $region9: #{lenet_forward.1} parent=0 // pred_fallthru
    _
  // Predicated region
  $region10: #{lenet_forward.1} parent=0 // pred_check
    _
  $region11: #{lenet_forward.1} parent=0 // pred_check_branch
    %25 = sbr.rel (0) target = $region13
  $region12: #{lenet_forward.1} parent=0 // pred_region
    _
  $region13: #{lenet_forward.1} parent=0 // pred_fallthru
    _
  // Predicated region
  $region14: #{lenet_forward.1} parent=0 // pred_check
    _
  $region15: #{lenet_forward.1} parent=0 // pred_check_branch
    %27 = sbr.rel (0) target = $region17
  $region16: #{lenet_forward.1} parent=0 // pred_region
    _
  $region17: #{lenet_forward.1} parent=0 // pred_fallthru
    _
  // Predicated region
  $region18: #{lenet_forward.1} parent=0 // pred_check
    _
  $region19: #{lenet_forward.1} parent=0 // pred_check_branch
    %29 = sbr.rel (0) target = $region21
  $region20: #{lenet_forward.1} parent=0 // pred_region
    _
  $region21: #{lenet_forward.1} parent=0 // pred_fallthru
    _
  // Predicated region
  $region22: #{lenet_forward.1} parent=0 // pred_check
    _
  $region23: #{lenet_forward.1} parent=0 // pred_check_branch
    %31 = sbr.rel (0) target = $region25
  $region24: #{lenet_forward.1} parent=0 // pred_region
    _
  $region25: #{lenet_forward.1} parent=0 // pred_fallthru
    _
  // Predicated region
  $region26: #{lenet_forward.1} parent=0 // pred_check
    _
  $region27: #{lenet_forward.1} parent=0 // pred_check_branch
    %33 = sbr.rel (0) target = $region29
  $region28: #{lenet_forward.1} parent=0 // pred_region
    _
  $region29: #{lenet_forward.1} parent=0 // pred_fallthru
    _
  // Predicated region
  $region30: #{lenet_forward.1} parent=0 // pred_check
    _
  $region31: #{lenet_forward.1} parent=0 // pred_check_branch
    %35 = sbr.rel (0) target = $region33
  $region32: #{lenet_forward.1} parent=0 // pred_region
    _
  $region33: #{lenet_forward.1} parent=0 // pred_fallthru
    _
  // Predicated region
  $region34: #{lenet_forward.1} parent=0 // pred_check
    _
  $region35: #{lenet_forward.1} parent=0 // pred_check_branch
    %37 = sbr.rel (0) target = $region37
  $region36: #{lenet_forward.1} parent=0 // pred_region
    _
  $region37: #{lenet_forward.1} parent=0 // pred_fallthru
    _
  // Predicated region
  $region38: #{lenet_forward.1} parent=0 // pred_check
    _
  $region39: #{lenet_forward.1} parent=0 // pred_check_branch
    %39 = sbr.rel (0) target = $region41
  $region40: #{lenet_forward.1} parent=0 // pred_region
    _
  $region41: #{lenet_forward.1} parent=0 // pred_fallthru
    _
  // Predicated region
  $region42: #{lenet_forward.1} parent=0 // pred_check
    _
  $region43: #{lenet_forward.1} parent=0 // pred_check_branch
    %41 = sbr.rel (0) target = $region45
  $region44: #{lenet_forward.1} parent=0 // pred_region
    _
  $region45: #{lenet_forward.1} parent=0 // pred_fallthru
    _
  // Predicated region
  $region46: #{lenet_forward.1} parent=0 // pred_check
    _
  $region47: #{lenet_forward.1} parent=0 // pred_check_branch
    %43 = sbr.rel (0) target = $region49
  $region48: #{lenet_forward.1} parent=0 // pred_region
    _
  $region49: #{lenet_forward.1} parent=0 // pred_fallthru
    _
  // Predicated region
  $region50: #{lenet_forward.1} parent=0 // pred_check
    _
  $region51: #{lenet_forward.1} parent=0 // pred_check_branch
    %45 = sbr.rel (0) target = $region53
  $region52: #{lenet_forward.1} parent=0 // pred_region
    _
  $region53: #{lenet_forward.1} parent=0 // pred_fallthru
    _
  // Predicated region
  $region54: #{lenet_forward.1} parent=0 // pred_check
    _
  $region55: #{lenet_forward.1} parent=0 // pred_check_branch
    %47 = sbr.rel (0) target = $region57
  $region56: #{lenet_forward.1} parent=0 // pred_region
    _
  $region57: #{lenet_forward.1} parent=0 // pred_fallthru
    _
  // Predicated region
  $region58: #{lenet_forward.1} parent=0 // pred_check
    _
  $region59: #{lenet_forward.1} parent=0 // pred_check_branch
    %49 = sbr.rel (0) target = $region61
  $region60: #{lenet_forward.1} parent=0 // pred_region
    _
  $region61: #{lenet_forward.1} parent=0 // pred_fallthru
    _
  %v51 = vld [vmem:[%s0] sm:$0xff]
  %v52 = vld [vmem:[%s0 + $0x8] sm:$0xff]
  %v53 = vld [vmem:[%s0 + $0x10] sm:$0xff]
  %v54 = vld [vmem:[%s0 + $0x18] sm:$0xff]
  %v55 = vld [vmem:[%s0 + $0x20] sm:$0xff]
  %v56 = vld [vmem:[%s0 + $0x28] sm:$0xff]
  %v57 = vld [vmem:[%s0 + $0x30] sm:$0xff]
  %v58 = vpack.c.bf16 %v52, %v51
  %v59 = vpack.c.bf16 %v54, %v53
  %v60 = vpack.c.bf16 %v56, %v55
  %v61 = vpack.c.bf16 %v57, %v57
  %v62 = vld [vmem:[%s1] sm:$0xff]
  %v63 = vld [vmem:[%s1 + $0x8] sm:$0xff]
  %v64 = vld [vmem:[%s1 + $0x10] sm:$0xff]
  %v65 = vld [vmem:[%s1 + $0x18] sm:$0xff]
  %v66 = vld [vmem:[%s1 + $0x20] sm:$0xff]
  %v67 = vld [vmem:[%s1 + $0x28] sm:$0xff]
  %v68 = vld [vmem:[%s1 + $0x30] sm:$0xff]
  %v69 = vld [vmem:[%s1 + $0x38] sm:$0xff]
  %v70 = vld [vmem:[%s1 + $0x40] sm:$0xff]
  %v71 = vld [vmem:[%s1 + $0x48] sm:$0xff]
  %v72 = vld [vmem:[%s1 + $0x50] sm:$0xff]
  %v73 = vld [vmem:[%s1 + $0x58] sm:$0xff]
  %s74 = scalar_lea.vmem %s0, 64
  %v75 = vld [vmem:[%s74] sm:$0xff]
  %v76 = vld [vmem:[%s74 + $0x8] sm:$0xff]
  %v77 = vld [vmem:[%s74 + $0x10] sm:$0xff]
  %v78 = vld [vmem:[%s74 + $0x18] sm:$0xff]
  %v79 = vld [vmem:[%s74 + $0x20] sm:$0xff]
  %v80 = vld [vmem:[%s74 + $0x28] sm:$0xff]
  %v81 = vld [vmem:[%s74 + $0x30] sm:$0xff]
  %v82 = vpack.c.bf16 %v76, %v75
  %v83 = vpack.c.bf16 %v78, %v77
  %v84 = vpack.c.bf16 %v80, %v79
  %v85 = vpack.c.bf16 %v81, %v81
  %s86 = scalar_lea.vmem %s1, 96
  %v87 = vld [vmem:[%s86] sm:$0xff]
  %v88 = vld [vmem:[%s86 + $0x8] sm:$0xff]
  %v89 = vld [vmem:[%s86 + $0x10] sm:$0xff]
  %v90 = vld [vmem:[%s86 + $0x18] sm:$0xff]
  %v91 = vld [vmem:[%s86 + $0x20] sm:$0xff]
  %v92 = vld [vmem:[%s86 + $0x28] sm:$0xff]
  %v93 = vld [vmem:[%s86 + $0x30] sm:$0xff]
  %v94 = vld [vmem:[%s86 + $0x38] sm:$0xff]
  %v95 = vld [vmem:[%s86 + $0x40] sm:$0xff]
  %v96 = vld [vmem:[%s86 + $0x48] sm:$0xff]
  %v97 = vld [vmem:[%s86 + $0x50] sm:$0xff]
  %v98 = vld [vmem:[%s86 + $0x58] sm:$0xff]
  %v111 = vunpack.c.l.b16 %v87
  %v112 = vunpack.c.h.b16 %v87
  %v113 = vunpack.c.l.b16 %v88
  %v114 = vunpack.c.h.b16 %v88
  %v115 = vunpack.c.l.b16 %v89
  %v116 = vunpack.c.h.b16 %v89
  %v117 = vunpack.c.l.b16 %v90
  %v118 = vunpack.c.h.b16 %v90
  %v119 = vunpack.c.l.b16 %v91
  %v120 = vunpack.c.h.b16 %v91
  %v121 = vunpack.c.l.b16 %v92
  %v122 = vunpack.c.h.b16 %v92
  %v123 = vunpack.c.l.b16 %v93
  %v124 = vunpack.c.h.b16 %v93
  %v125 = vunpack.c.l.b16 %v94
  %v126 = vunpack.c.h.b16 %v94
  %v127 = vunpack.c.l.b16 %v95
  %v128 = vunpack.c.h.b16 %v95
  %v129 = vunpack.c.l.b16 %v96
  %v130 = vunpack.c.h.b16 %v96
  %v131 = vunpack.c.l.b16 %v97
  %v132 = vunpack.c.h.b16 %v97
  %v133 = vunpack.c.l.b16 %v98
  %v134 = vunpack.c.h.b16 %v98
  %v135 = vpack.c.b16 %v113, %v111
  %v136 = vpack.c.b16 %v114, %v112
  %v137 = vpack.c.b16 %v117, %v115
  %v138 = vpack.c.b16 %v118, %v116
  %v139 = vpack.c.b16 %v121, %v119
  %v140 = vpack.c.b16 %v122, %v120
  %v141 = vpack.c.b16 %v125, %v123
  %v142 = vpack.c.b16 %v126, %v124
  %v143 = vpack.c.b16 %v129, %v127
  %v144 = vpack.c.b16 %v130, %v128
  %v145 = vpack.c.b16 %v133, %v131
  %v146 = vpack.c.b16 %v134, %v132
  %vm159 = vcmask 785408
  %v161 = vsel %vm159, %v82, 0
  %v164 = vsel %vm159, %v83, 0
  %v167 = vsel %vm159, %v84, 0
  %v170 = vsel %vm159, %v85, 0
  %172 = vmatprep.subr.bf16.mxu0 %v136
  %173 = vmatpush1.bf16.msra.mxu0 %v135
  %174 = vmatprep.subr.bf16.mxu0 %v138
  %175 = vmatpush1.bf16.msra.mxu0 %v137
  %176 = vmatprep.subr.bf16.mxu0 %v140
  %177 = vmatpush1.bf16.msra.mxu0 %v139
  %178 = vmatprep.subr.bf16.mxu0 %v142
  %179 = vmatpush1.bf16.msra.mxu0 %v141
  %180 = vmatprep.subr.bf16.mxu0 %v144
  %181 = vmatpush1.bf16.msra.mxu0 %v143
  %182 = vmatprep.subr.bf16.mxu0 %v146
  %183 = vmatpush1.bf16.msra.mxu0 %v145
  %184 = vmatprep.subr.bf16.mxu0 0
  %185 = vmatpush1.bf16.msra.mxu0 0
  %186 = vmatprep.subr.bf16.mxu0 0
  %187 = vmatpush1.bf16.msra.mxu0 0
  %188 = vmatprep.subr.bf16.mxu0 0
  %189 = vmatpush1.bf16.msra.mxu0 0
  %190 = vmatprep.subr.bf16.mxu0 0
  %191 = vmatpush1.bf16.msra.mxu0 0
  %192 = vmatprep.subr.bf16.mxu0 0
  %193 = vmatpush1.bf16.msra.mxu0 0
  %194 = vmatprep.subr.bf16.mxu0 0
  %195 = vmatpush1.bf16.msra.mxu0 0
  %196 = vmatprep.subr.bf16.mxu0 0
  %197 = vmatpush1.bf16.msra.mxu0 0
  %198 = vmatprep.subr.bf16.mxu0 0
  %199 = vmatpush1.bf16.msra.mxu0 0
  %200 = vmatprep.subr.bf16.mxu0 0
  %201 = vmatpush1.bf16.msra.mxu0 0
  %202 = vmatprep.subr.bf16.mxu0 0
  %203 = vmatpush1.bf16.msra.mxu0 0
  %204 = vmatprep.mubr.bf16.mxu0 0
  %205 = vmatmul.mubr.bf16.gmra.mrb[0].mxu0 %v161
  %v206 = vpop.f32.mrb[0].mxu0
  %v207 = vadd.f32 0.0, %v206
  %v208 = vpop.f32.mrb[0].mxu0
  %v209 = vadd.f32 0.0, %v208
  %v210 = vpop.f32.mrb[0].mxu0
  %v211 = vadd.f32 0.0, %v210
  %v212 = vpop.f32.mrb[0].mxu0
  %v213 = vadd.f32 0.0, %v212
  %214 = vmatprep.mubr.bf16.mxu0 0
  %215 = vmatmul.mubr.bf16.gmra.mrb[0].mxu0 %v164
  %v216 = vpop.f32.mrb[0].mxu0
  %v217 = vadd.f32 0.0, %v216
  %v218 = vpop.f32.mrb[0].mxu0
  %v219 = vadd.f32 0.0, %v218
  %v220 = vpop.f32.mrb[0].mxu0
  %v221 = vadd.f32 0.0, %v220
  %v222 = vpop.f32.mrb[0].mxu0
  %v223 = vadd.f32 0.0, %v222
  %224 = vmatprep.mubr.bf16.mxu0 0
  %225 = vmatmul.mubr.bf16.gmra.mrb[0].mxu0 %v167
  %v226 = vpop.f32.mrb[0].mxu0
  %v227 = vadd.f32 0.0, %v226
  %v228 = vpop.f32.mrb[0].mxu0
  %v229 = vadd.f32 0.0, %v228
  %v230 = vpop.f32.mrb[0].mxu0
  %v231 = vadd.f32 0.0, %v230
  %v232 = vpop.f32.mrb[0].mxu0
  %v233 = vadd.f32 0.0, %v232
  %234 = vmatprep.mubr.bf16.mxu0 0
  %235 = vmatmul.mubr.bf16.gmra.mrb[0].mxu0 %v170
  %v236 = vpop.f32.mrb[0].mxu0
  %v237 = vadd.f32 0.0, %v236
  %v238 = vpop.f32.mrb[0].mxu0
  %v239 = vadd.f32 0.0, %v238
  %v240 = vpop.f32.mrb[0].mxu0
  %v241 = vpop.f32.mrb[0].mxu0
  %242 = vdwg.mxu0
  %v255 = vunpack.c.l.b16 %v62
  %v256 = vunpack.c.h.b16 %v62
  %v257 = vunpack.c.l.b16 %v63
  %v258 = vunpack.c.h.b16 %v63
  %v259 = vunpack.c.l.b16 %v64
  %v260 = vunpack.c.h.b16 %v64
  %v261 = vunpack.c.l.b16 %v65
  %v262 = vunpack.c.h.b16 %v65
  %v263 = vunpack.c.l.b16 %v66
  %v264 = vunpack.c.h.b16 %v66
  %v265 = vunpack.c.l.b16 %v67
  %v266 = vunpack.c.h.b16 %v67
  %v267 = vunpack.c.l.b16 %v68
  %v268 = vunpack.c.h.b16 %v68
  %v269 = vunpack.c.l.b16 %v69
  %v270 = vunpack.c.h.b16 %v69
  %v271 = vunpack.c.l.b16 %v70
  %v272 = vunpack.c.h.b16 %v70
  %v273 = vunpack.c.l.b16 %v71
  %v274 = vunpack.c.h.b16 %v71
  %v275 = vunpack.c.l.b16 %v72
  %v276 = vunpack.c.h.b16 %v72
  %v277 = vunpack.c.l.b16 %v73
  %v278 = vunpack.c.h.b16 %v73
  %v279 = vpack.c.b16 %v257, %v255
  %v280 = vpack.c.b16 %v258, %v256
  %v281 = vpack.c.b16 %v261, %v259
  %v282 = vpack.c.b16 %v262, %v260
  %v283 = vpack.c.b16 %v265, %v263
  %v284 = vpack.c.b16 %v266, %v264
  %v285 = vpack.c.b16 %v269, %v267
  %v286 = vpack.c.b16 %v270, %v268
  %v287 = vpack.c.b16 %v273, %v271
  %v288 = vpack.c.b16 %v274, %v272
  %v289 = vpack.c.b16 %v277, %v275
  %v290 = vpack.c.b16 %v278, %v276
  %v304 = vsel %vm159, %v58, 0
  %v307 = vsel %vm159, %v59, 0
  %v310 = vsel %vm159, %v60, 0
  %v313 = vsel %vm159, %v61, 0
  %315 = vmatprep.subr.bf16.mxu0 %v280
  %316 = vmatpush1.bf16.msra.mxu0 %v279
  %317 = vmatprep.subr.bf16.mxu0 %v282
  %318 = vmatpush1.bf16.msra.mxu0 %v281
  %319 = vmatprep.subr.bf16.mxu0 %v284
  %320 = vmatpush1.bf16.msra.mxu0 %v283
  %321 = vmatprep.subr.bf16.mxu0 %v286
  %322 = vmatpush1.bf16.msra.mxu0 %v285
  %323 = vmatprep.subr.bf16.mxu0 %v288
  %324 = vmatpush1.bf16.msra.mxu0 %v287
  %325 = vmatprep.subr.bf16.mxu0 %v290
  %326 = vmatpush1.bf16.msra.mxu0 %v289
  %327 = vmatprep.subr.bf16.mxu0 0
  %328 = vmatpush1.bf16.msra.mxu0 0
  %329 = vmatprep.subr.bf16.mxu0 0
  %330 = vmatpush1.bf16.msra.mxu0 0
  %331 = vmatprep.subr.bf16.mxu0 0
  %332 = vmatpush1.bf16.msra.mxu0 0
  %333 = vmatprep.subr.bf16.mxu0 0
  %334 = vmatpush1.bf16.msra.mxu0 0
  %335 = vmatprep.subr.bf16.mxu0 0
  %336 = vmatpush1.bf16.msra.mxu0 0
  %337 = vmatprep.subr.bf16.mxu0 0
  %338 = vmatpush1.bf16.msra.mxu0 0
  %339 = vmatprep.subr.bf16.mxu0 0
  %340 = vmatpush1.bf16.msra.mxu0 0
  %341 = vmatprep.subr.bf16.mxu0 0
  %342 = vmatpush1.bf16.msra.mxu0 0
  %343 = vmatprep.subr.bf16.mxu0 0
  %344 = vmatpush1.bf16.msra.mxu0 0
  %345 = vmatprep.subr.bf16.mxu0 0
  %346 = vmatpush1.bf16.msra.mxu0 0
  %347 = vmatprep.mubr.bf16.mxu0 0
  %348 = vmatmul.mubr.bf16.gmra.mrb[0].mxu0 %v304
  %v349 = vpop.f32.mrb[0].mxu0
  %v350 = vadd.f32 %v207, %v349
  %v351 = vpop.f32.mrb[0].mxu0
  %v352 = vadd.f32 %v209, %v351
  %v353 = vpop.f32.mrb[0].mxu0
  %v354 = vadd.f32 %v211, %v353
  %v355 = vpop.f32.mrb[0].mxu0
  %v356 = vadd.f32 %v213, %v355
  %357 = vmatprep.mubr.bf16.mxu0 0
  %358 = vmatmul.mubr.bf16.gmra.mrb[0].mxu0 %v307
  %v359 = vpop.f32.mrb[0].mxu0
  %v360 = vadd.f32 %v217, %v359
  %v361 = vpop.f32.mrb[0].mxu0
  %v362 = vadd.f32 %v219, %v361
  %v363 = vpop.f32.mrb[0].mxu0
  %v364 = vadd.f32 %v221, %v363
  %v365 = vpop.f32.mrb[0].mxu0
  %v366 = vadd.f32 %v223, %v365
  %367 = vmatprep.mubr.bf16.mxu0 0
  %368 = vmatmul.mubr.bf16.gmra.mrb[0].mxu0 %v310
  %v369 = vpop.f32.mrb[0].mxu0
  %v370 = vadd.f32 %v227, %v369
  %v371 = vpop.f32.mrb[0].mxu0
  %v372 = vadd.f32 %v229, %v371
  %v373 = vpop.f32.mrb[0].mxu0
  %v374 = vadd.f32 %v231, %v373
  %v375 = vpop.f32.mrb[0].mxu0
  %v376 = vadd.f32 %v233, %v375
  %377 = vmatprep.mubr.bf16.mxu0 0
  %378 = vmatmul.mubr.bf16.gmra.mrb[0].mxu0 %v313
  %v379 = vpop.f32.mrb[0].mxu0
  %v380 = vadd.f32 %v237, %v379
  %v381 = vpop.f32.mrb[0].mxu0
  %v382 = vadd.f32 %v239, %v381
  %v383 = vpop.f32.mrb[0].mxu0
  %v384 = vpop.f32.mrb[0].mxu0
  %385 = vdwg.mxu0
  %s386 = scalar_lea.vmem %s0, 128
  %v387 = vld [vmem:[%s386] sm:$0xff]
  %v388 = vld [vmem:[%s386 + $0x8] sm:$0xff]
  %v389 = vld [vmem:[%s386 + $0x10] sm:$0xff]
  %v390 = vld [vmem:[%s386 + $0x18] sm:$0xff]
  %v391 = vld [vmem:[%s386 + $0x20] sm:$0xff]
  %v392 = vld [vmem:[%s386 + $0x28] sm:$0xff]
  %v393 = vld [vmem:[%s386 + $0x30] sm:$0xff]
  %v394 = vpack.c.bf16 %v388, %v387
  %v395 = vpack.c.bf16 %v390, %v389
  %v396 = vpack.c.bf16 %v392, %v391
  %v397 = vpack.c.bf16 %v393, %v393
  %s398 = scalar_lea.vmem %s1, 192
  %v399 = vld [vmem:[%s398] sm:$0xff]
  %v400 = vld [vmem:[%s398 + $0x8] sm:$0xff]
  %v401 = vld [vmem:[%s398 + $0x10] sm:$0xff]
  %v402 = vld [vmem:[%s398 + $0x18] sm:$0xff]
  %v403 = vld [vmem:[%s398 + $0x20] sm:$0xff]
  %v404 = vld [vmem:[%s398 + $0x28] sm:$0xff]
  %v405 = vld [vmem:[%s398 + $0x30] sm:$0xff]
  %v406 = vld [vmem:[%s398 + $0x38] sm:$0xff]
  %v407 = vld [vmem:[%s398 + $0x40] sm:$0xff]
  %v408 = vld [vmem:[%s398 + $0x48] sm:$0xff]
  %v409 = vld [vmem:[%s398 + $0x50] sm:$0xff]
  %v410 = vld [vmem:[%s398 + $0x58] sm:$0xff]
  %v423 = vunpack.c.l.b16 %v399
  %v424 = vunpack.c.h.b16 %v399
  %v425 = vunpack.c.l.b16 %v400
  %v426 = vunpack.c.h.b16 %v400
  %v427 = vunpack.c.l.b16 %v401
  %v428 = vunpack.c.h.b16 %v401
  %v429 = vunpack.c.l.b16 %v402
  %v430 = vunpack.c.h.b16 %v402
  %v431 = vunpack.c.l.b16 %v403
  %v432 = vunpack.c.h.b16 %v403
  %v433 = vunpack.c.l.b16 %v404
  %v434 = vunpack.c.h.b16 %v404
  %v435 = vunpack.c.l.b16 %v405
  %v436 = vunpack.c.h.b16 %v405
  %v437 = vunpack.c.l.b16 %v406
  %v438 = vunpack.c.h.b16 %v406
  %v439 = vunpack.c.l.b16 %v407
  %v440 = vunpack.c.h.b16 %v407
  %v441 = vunpack.c.l.b16 %v408
  %v442 = vunpack.c.h.b16 %v408
  %v443 = vunpack.c.l.b16 %v409
  %v444 = vunpack.c.h.b16 %v409
  %v445 = vunpack.c.l.b16 %v410
  %v446 = vunpack.c.h.b16 %v410
  %v447 = vpack.c.b16 %v425, %v423
  %v448 = vpack.c.b16 %v426, %v424
  %v449 = vpack.c.b16 %v429, %v427
  %v450 = vpack.c.b16 %v430, %v428
  %v451 = vpack.c.b16 %v433, %v431
  %v452 = vpack.c.b16 %v434, %v432
  %v453 = vpack.c.b16 %v437, %v435
  %v454 = vpack.c.b16 %v438, %v436
  %v455 = vpack.c.b16 %v441, %v439
  %v456 = vpack.c.b16 %v442, %v440
  %v457 = vpack.c.b16 %v445, %v443
  %v458 = vpack.c.b16 %v446, %v444
  %v472 = vsel %vm159, %v394, 0
  %v475 = vsel %vm159, %v395, 0
  %v478 = vsel %vm159, %v396, 0
  %v481 = vsel %vm159, %v397, 0
  %483 = vmatprep.subr.bf16.mxu0 %v448
  %484 = vmatpush1.bf16.msra.mxu0 %v447
  %485 = vmatprep.subr.bf16.mxu0 %v450
  %486 = vmatpush1.bf16.msra.mxu0 %v449
  %487 = vmatprep.subr.bf16.mxu0 %v452
  %488 = vmatpush1.bf16.msra.mxu0 %v451
  %489 = vmatprep.subr.bf16.mxu0 %v454
  %490 = vmatpush1.bf16.msra.mxu0 %v453
  %491 = vmatprep.subr.bf16.mxu0 %v456
  %492 = vmatpush1.bf16.msra.mxu0 %v455
  %493 = vmatprep.subr.bf16.mxu0 %v458
  %494 = vmatpush1.bf16.msra.mxu0 %v457
  %495 = vmatprep.subr.bf16.mxu0 0
  %496 = vmatpush1.bf16.msra.mxu0 0
  %497 = vmatprep.subr.bf16.mxu0 0
  %498 = vmatpush1.bf16.msra.mxu0 0
  %499 = vmatprep.subr.bf16.mxu0 0
  %500 = vmatpush1.bf16.msra.mxu0 0
  %501 = vmatprep.subr.bf16.mxu0 0
  %502 = vmatpush1.bf16.msra.mxu0 0
  %503 = vmatprep.subr.bf16.mxu0 0
  %504 = vmatpush1.bf16.msra.mxu0 0
  %505 = vmatprep.subr.bf16.mxu0 0
  %506 = vmatpush1.bf16.msra.mxu0 0
  %507 = vmatprep.subr.bf16.mxu0 0
  %508 = vmatpush1.bf16.msra.mxu0 0
  %509 = vmatprep.subr.bf16.mxu0 0
  %510 = vmatpush1.bf16.msra.mxu0 0
  %511 = vmatprep.subr.bf16.mxu0 0
  %512 = vmatpush1.bf16.msra.mxu0 0
  %513 = vmatprep.subr.bf16.mxu0 0
  %514 = vmatpush1.bf16.msra.mxu0 0
  %515 = vmatprep.mubr.bf16.mxu0 0
  %516 = vmatmul.mubr.bf16.gmra.mrb[0].mxu0 %v472
  %v517 = vpop.f32.mrb[0].mxu0
  %v518 = vadd.f32 0.0, %v517
  %v519 = vpop.f32.mrb[0].mxu0
  %v520 = vadd.f32 0.0, %v519
  %v521 = vpop.f32.mrb[0].mxu0
  %v522 = vadd.f32 0.0, %v521
  %v523 = vpop.f32.mrb[0].mxu0
  %v524 = vadd.f32 0.0, %v523
  %525 = vmatprep.mubr.bf16.mxu0 0
  %526 = vmatmul.mubr.bf16.gmra.mrb[0].mxu0 %v475
  %v527 = vpop.f32.mrb[0].mxu0
  %v528 = vadd.f32 0.0, %v527
  %v529 = vpop.f32.mrb[0].mxu0
  %v530 = vadd.f32 0.0, %v529
  %v531 = vpop.f32.mrb[0].mxu0
  %v532 = vadd.f32 0.0, %v531
  %v533 = vpop.f32.mrb[0].mxu0
  %v534 = vadd.f32 0.0, %v533
  %535 = vmatprep.mubr.bf16.mxu0 0
  %536 = vmatmul.mubr.bf16.gmra.mrb[0].mxu0 %v478
  %v537 = vpop.f32.mrb[0].mxu0
  %v538 = vadd.f32 0.0, %v537
  %v539 = vpop.f32.mrb[0].mxu0
  %v540 = vadd.f32 0.0, %v539
  %v541 = vpop.f32.mrb[0].mxu0
  %v542 = vadd.f32 0.0, %v541
  %v543 = vpop.f32.mrb[0].mxu0
  %v544 = vadd.f32 0.0, %v543
  %545 = vmatprep.mubr.bf16.mxu0 0
  %546 = vmatmul.mubr.bf16.gmra.mrb[0].mxu0 %v481
  %v547 = vpop.f32.mrb[0].mxu0
  %v548 = vadd.f32 0.0, %v547
  %v549 = vpop.f32.mrb[0].mxu0
  %v550 = vadd.f32 0.0, %v549
  %v551 = vpop.f32.mrb[0].mxu0
  %v552 = vpop.f32.mrb[0].mxu0
  %553 = vdwg.mxu0
  %v554 = vadd.f32 %v350, %v518
  %v555 = vadd.f32 %v352, %v520
  %v556 = vadd.f32 %v354, %v522
  %v557 = vadd.f32 %v356, %v524
  %v558 = vadd.f32 %v360, %v528
  %v559 = vadd.f32 %v362, %v530
  %v560 = vadd.f32 %v364, %v532
  %v561 = vadd.f32 %v366, %v534
  %v562 = vadd.f32 %v370, %v538
  %v563 = vadd.f32 %v372, %v540
  %v564 = vadd.f32 %v374, %v542
  %v565 = vadd.f32 %v376, %v544
  %v566 = vadd.f32 %v380, %v548
  %v567 = vadd.f32 %v382, %v550
  %s568 = scalar_lea.vmem %s0, 192
  %v569 = vld [vmem:[%s568] sm:$0xff]
  %v570 = vld [vmem:[%s568 + $0x8] sm:$0xff]
  %v571 = vld [vmem:[%s568 + $0x10] sm:$0xff]
  %v572 = vld [vmem:[%s568 + $0x18] sm:$0xff]
  %v573 = vld [vmem:[%s568 + $0x20] sm:$0xff]
  %v574 = vld [vmem:[%s568 + $0x28] sm:$0xff]
  %v575 = vld [vmem:[%s568 + $0x30] sm:$0xff]
  %v576 = vpack.c.bf16 %v570, %v569
  %v577 = vpack.c.bf16 %v572, %v571
  %v578 = vpack.c.bf16 %v574, %v573
  %v579 = vpack.c.bf16 %v575, %v575
  %s580 = scalar_lea.vmem %s1, 288
  %v581 = vld [vmem:[%s580] sm:$0xff]
  %v582 = vld [vmem:[%s580 + $0x8] sm:$0xff]
  %v583 = vld [vmem:[%s580 + $0x10] sm:$0xff]
  %v584 = vld [vmem:[%s580 + $0x18] sm:$0xff]
  %v585 = vld [vmem:[%s580 + $0x20] sm:$0xff]
  %v586 = vld [vmem:[%s580 + $0x28] sm:$0xff]
  %v587 = vld [vmem:[%s580 + $0x30] sm:$0xff]
  %v588 = vld [vmem:[%s580 + $0x38] sm:$0xff]
  %v589 = vld [vmem:[%s580 + $0x40] sm:$0xff]
  %v590 = vld [vmem:[%s580 + $0x48] sm:$0xff]
  %v591 = vld [vmem:[%s580 + $0x50] sm:$0xff]
  %v592 = vld [vmem:[%s580 + $0x58] sm:$0xff]
  %v605 = vunpack.c.l.b16 %v581
  %v606 = vunpack.c.h.b16 %v581
  %v607 = vunpack.c.l.b16 %v582
  %v608 = vunpack.c.h.b16 %v582
  %v609 = vunpack.c.l.b16 %v583
  %v610 = vunpack.c.h.b16 %v583
  %v611 = vunpack.c.l.b16 %v584
  %v612 = vunpack.c.h.b16 %v584
  %v613 = vunpack.c.l.b16 %v585
  %v614 = vunpack.c.h.b16 %v585
  %v615 = vunpack.c.l.b16 %v586
  %v616 = vunpack.c.h.b16 %v586
  %v617 = vunpack.c.l.b16 %v587
  %v618 = vunpack.c.h.b16 %v587
  %v619 = vunpack.c.l.b16 %v588
  %v620 = vunpack.c.h.b16 %v588
  %v621 = vunpack.c.l.b16 %v589
  %v622 = vunpack.c.h.b16 %v589
  %v623 = vunpack.c.l.b16 %v590
  %v624 = vunpack.c.h.b16 %v590
  %v625 = vunpack.c.l.b16 %v591
  %v626 = vunpack.c.h.b16 %v591
  %v627 = vunpack.c.l.b16 %v592
  %v628 = vunpack.c.h.b16 %v592
  %v629 = vpack.c.b16 %v607, %v605
  %v630 = vpack.c.b16 %v608, %v606
  %v631 = vpack.c.b16 %v611, %v609
  %v632 = vpack.c.b16 %v612, %v610
  %v633 = vpack.c.b16 %v615, %v613
  %v634 = vpack.c.b16 %v616, %v614
  %v635 = vpack.c.b16 %v619, %v617
  %v636 = vpack.c.b16 %v620, %v618
  %v637 = vpack.c.b16 %v623, %v621
  %v638 = vpack.c.b16 %v624, %v622
  %v639 = vpack.c.b16 %v627, %v625
  %v640 = vpack.c.b16 %v628, %v626
  %v654 = vsel %vm159, %v576, 0
  %v657 = vsel %vm159, %v577, 0
  %v660 = vsel %vm159, %v578, 0
  %v663 = vsel %vm159, %v579, 0
  %665 = vmatprep.subr.bf16.mxu0 %v630
  %666 = vmatpush1.bf16.msra.mxu0 %v629
  %667 = vmatprep.subr.bf16.mxu0 %v632
  %668 = vmatpush1.bf16.msra.mxu0 %v631
  %669 = vmatprep.subr.bf16.mxu0 %v634
  %670 = vmatpush1.bf16.msra.mxu0 %v633
  %671 = vmatprep.subr.bf16.mxu0 %v636
  %672 = vmatpush1.bf16.msra.mxu0 %v635
  %673 = vmatprep.subr.bf16.mxu0 %v638
  %674 = vmatpush1.bf16.msra.mxu0 %v637
  %675 = vmatprep.subr.bf16.mxu0 %v640
  %676 = vmatpush1.bf16.msra.mxu0 %v639
  %677 = vmatprep.subr.bf16.mxu0 0
  %678 = vmatpush1.bf16.msra.mxu0 0
  %679 = vmatprep.subr.bf16.mxu0 0
  %680 = vmatpush1.bf16.msra.mxu0 0
  %681 = vmatprep.subr.bf16.mxu0 0
  %682 = vmatpush1.bf16.msra.mxu0 0
  %683 = vmatprep.subr.bf16.mxu0 0
  %684 = vmatpush1.bf16.msra.mxu0 0
  %685 = vmatprep.subr.bf16.mxu0 0
  %686 = vmatpush1.bf16.msra.mxu0 0
  %687 = vmatprep.subr.bf16.mxu0 0
  %688 = vmatpush1.bf16.msra.mxu0 0
  %689 = vmatprep.subr.bf16.mxu0 0
  %690 = vmatpush1.bf16.msra.mxu0 0
  %691 = vmatprep.subr.bf16.mxu0 0
  %692 = vmatpush1.bf16.msra.mxu0 0
  %693 = vmatprep.subr.bf16.mxu0 0
  %694 = vmatpush1.bf16.msra.mxu0 0
  %695 = vmatprep.subr.bf16.mxu0 0
  %696 = vmatpush1.bf16.msra.mxu0 0
  %697 = vmatprep.mubr.bf16.mxu0 0
  %698 = vmatmul.mubr.bf16.gmra.mrb[0].mxu0 %v654
  %v699 = vpop.f32.mrb[0].mxu0
  %v700 = vadd.f32 0.0, %v699
  %v701 = vpop.f32.mrb[0].mxu0
  %v702 = vadd.f32 0.0, %v701
  %v703 = vpop.f32.mrb[0].mxu0
  %v704 = vadd.f32 0.0, %v703
  %v705 = vpop.f32.mrb[0].mxu0
  %v706 = vadd.f32 0.0, %v705
  %707 = vmatprep.mubr.bf16.mxu0 0
  %708 = vmatmul.mubr.bf16.gmra.mrb[0].mxu0 %v657
  %v709 = vpop.f32.mrb[0].mxu0
  %v710 = vadd.f32 0.0, %v709
  %v711 = vpop.f32.mrb[0].mxu0
  %v712 = vadd.f32 0.0, %v711
  %v713 = vpop.f32.mrb[0].mxu0
  %v714 = vadd.f32 0.0, %v713
  %v715 = vpop.f32.mrb[0].mxu0
  %v716 = vadd.f32 0.0, %v715
  %717 = vmatprep.mubr.bf16.mxu0 0
  %718 = vmatmul.mubr.bf16.gmra.mrb[0].mxu0 %v660
  %v719 = vpop.f32.mrb[0].mxu0
  %v720 = vadd.f32 0.0, %v719
  %v721 = vpop.f32.mrb[0].mxu0
  %v722 = vadd.f32 0.0, %v721
  %v723 = vpop.f32.mrb[0].mxu0
  %v724 = vadd.f32 0.0, %v723
  %v725 = vpop.f32.mrb[0].mxu0
  %v726 = vadd.f32 0.0, %v725
  %727 = vmatprep.mubr.bf16.mxu0 0
  %728 = vmatmul.mubr.bf16.gmra.mrb[0].mxu0 %v663
  %v729 = vpop.f32.mrb[0].mxu0
  %v730 = vadd.f32 0.0, %v729
  %v731 = vpop.f32.mrb[0].mxu0
  %v732 = vadd.f32 0.0, %v731
  %v733 = vpop.f32.mrb[0].mxu0
  %v734 = vpop.f32.mrb[0].mxu0
  %735 = vdwg.mxu0
  %v736 = vadd.f32 %v554, %v700
  %v737 = vadd.f32 %v555, %v702
  %v738 = vadd.f32 %v556, %v704
  %v739 = vadd.f32 %v557, %v706
  %v740 = vadd.f32 %v558, %v710
  %v741 = vadd.f32 %v559, %v712
  %v742 = vadd.f32 %v560, %v714
  %v743 = vadd.f32 %v561, %v716
  %v744 = vadd.f32 %v562, %v720
  %v745 = vadd.f32 %v563, %v722
  %v746 = vadd.f32 %v564, %v724
  %v747 = vadd.f32 %v565, %v726
  %v748 = vadd.f32 %v566, %v730
  %v749 = vadd.f32 %v567, %v732
  %v750 = vld [vmem:[%s0 + $0x8] sm:$0xff]
  %v751 = vld [vmem:[%s0 + $0x10] sm:$0xff]
  %v752 = vld [vmem:[%s0 + $0x18] sm:$0xff]
  %v753 = vld [vmem:[%s0 + $0x20] sm:$0xff]
  %v754 = vld [vmem:[%s0 + $0x28] sm:$0xff]
  %v755 = vld [vmem:[%s0 + $0x30] sm:$0xff]
  %v756 = vld [vmem:[%s0 + $0x38] sm:$0xff]
  %v757 = vpack.c.bf16 %v751, %v750
  %v758 = vpack.c.bf16 %v753, %v752
  %v759 = vpack.c.bf16 %v755, %v754
  %v760 = vpack.c.bf16 %v756, %v756
  %s761 = scalar_lea.vmem %s1, 384
  %v762 = vld [vmem:[%s761] sm:$0xff]
  %v763 = vld [vmem:[%s761 + $0x8] sm:$0xff]
  %v764 = vld [vmem:[%s761 + $0x10] sm:$0xff]
  %v765 = vld [vmem:[%s761 + $0x18] sm:$0xff]
  %v766 = vld [vmem:[%s761 + $0x20] sm:$0xff]
  %v767 = vld [vmem:[%s761 + $0x28] sm:$0xff]
  %v768 = vld [vmem:[%s761 + $0x30] sm:$0xff]
  %v769 = vld [vmem:[%s761 + $0x38] sm:$0xff]
  %v770 = vld [vmem:[%s761 + $0x40] sm:$0xff]
  %v771 = vld [vmem:[%s761 + $0x48] sm:$0xff]
  %v772 = vld [vmem:[%s761 + $0x50] sm:$0xff]
  %v773 = vld [vmem:[%s761 + $0x58] sm:$0xff]
  %v786 = vunpack.c.l.b16 %v762
  %v787 = vunpack.c.h.b16 %v762
  %v788 = vunpack.c.l.b16 %v763
  %v789 = vunpack.c.h.b16 %v763
  %v790 = vunpack.c.l.b16 %v764
  %v791 = vunpack.c.h.b16 %v764
  %v792 = vunpack.c.l.b16 %v765
  %v793 = vunpack.c.h.b16 %v765
  %v794 = vunpack.c.l.b16 %v766
  %v795 = vunpack.c.h.b16 %v766
  %v796 = vunpack.c.l.b16 %v767
  %v797 = vunpack.c.h.b16 %v767
  %v798 = vunpack.c.l.b16 %v768
  %v799 = vunpack.c.h.b16 %v768
  %v800 = vunpack.c.l.b16 %v769
  %v801 = vunpack.c.h.b16 %v769
  %v802 = vunpack.c.l.b16 %v770
  %v803 = vunpack.c.h.b16 %v770
  %v804 = vunpack.c.l.b16 %v771
  %v805 = vunpack.c.h.b16 %v771
  %v806 = vunpack.c.l.b16 %v772
  %v807 = vunpack.c.h.b16 %v772
  %v808 = vunpack.c.l.b16 %v773
  %v809 = vunpack.c.h.b16 %v773
  %v810 = vpack.c.b16 %v788, %v786
  %v811 = vpack.c.b16 %v789, %v787
  %v812 = vpack.c.b16 %v792, %v790
  %v813 = vpack.c.b16 %v793, %v791
  %v814 = vpack.c.b16 %v796, %v794
  %v815 = vpack.c.b16 %v797, %v795
  %v816 = vpack.c.b16 %v800, %v798
  %v817 = vpack.c.b16 %v801, %v799
  %v818 = vpack.c.b16 %v804, %v802
  %v819 = vpack.c.b16 %v805, %v803
  %v820 = vpack.c.b16 %v808, %v806
  %v821 = vpack.c.b16 %v809, %v807
  %v835 = vsel %vm159, %v757, 0
  %v838 = vsel %vm159, %v758, 0
  %v841 = vsel %vm159, %v759, 0
  %v844 = vsel %vm159, %v760, 0
  %846 = vmatprep.subr.bf16.mxu0 %v811
  %847 = vmatpush1.bf16.msra.mxu0 %v810
  %848 = vmatprep.subr.bf16.mxu0 %v813
  %849 = vmatpush1.bf16.msra.mxu0 %v812
  %850 = vmatprep.subr.bf16.mxu0 %v815
  %851 = vmatpush1.bf16.msra.mxu0 %v814
  %852 = vmatprep.subr.bf16.mxu0 %v817
  %853 = vmatpush1.bf16.msra.mxu0 %v816
  %854 = vmatprep.subr.bf16.mxu0 %v819
  %855 = vmatpush1.bf16.msra.mxu0 %v818
  %856 = vmatprep.subr.bf16.mxu0 %v821
  %857 = vmatpush1.bf16.msra.mxu0 %v820
  %858 = vmatprep.subr.bf16.mxu0 0
  %859 = vmatpush1.bf16.msra.mxu0 0
  %860 = vmatprep.subr.bf16.mxu0 0
  %861 = vmatpush1.bf16.msra.mxu0 0
  %862 = vmatprep.subr.bf16.mxu0 0
  %863 = vmatpush1.bf16.msra.mxu0 0
  %864 = vmatprep.subr.bf16.mxu0 0
  %865 = vmatpush1.bf16.msra.mxu0 0
  %866 = vmatprep.subr.bf16.mxu0 0
  %867 = vmatpush1.bf16.msra.mxu0 0
  %868 = vmatprep.subr.bf16.mxu0 0
  %869 = vmatpush1.bf16.msra.mxu0 0
  %870 = vmatprep.subr.bf16.mxu0 0
  %871 = vmatpush1.bf16.msra.mxu0 0
  %872 = vmatprep.subr.bf16.mxu0 0
  %873 = vmatpush1.bf16.msra.mxu0 0
  %874 = vmatprep.subr.bf16.mxu0 0
  %875 = vmatpush1.bf16.msra.mxu0 0
  %876 = vmatprep.subr.bf16.mxu0 0
  %877 = vmatpush1.bf16.msra.mxu0 0
  %878 = vmatprep.mubr.bf16.mxu0 0
  %879 = vmatmul.mubr.bf16.gmra.mrb[0].mxu0 %v835
  %v880 = vpop.f32.mrb[0].mxu0
  %v881 = vadd.f32 0.0, %v880
  %v882 = vpop.f32.mrb[0].mxu0
  %v883 = vadd.f32 0.0, %v882
  %v884 = vpop.f32.mrb[0].mxu0
  %v885 = vadd.f32 0.0, %v884
  %v886 = vpop.f32.mrb[0].mxu0
  %v887 = vadd.f32 0.0, %v886
  %888 = vmatprep.mubr.bf16.mxu0 0
  %889 = vmatmul.mubr.bf16.gmra.mrb[0].mxu0 %v838
  %v890 = vpop.f32.mrb[0].mxu0
  %v891 = vadd.f32 0.0, %v890
  %v892 = vpop.f32.mrb[0].mxu0
  %v893 = vadd.f32 0.0, %v892
  %v894 = vpop.f32.mrb[0].mxu0
  %v895 = vadd.f32 0.0, %v894
  %v896 = vpop.f32.mrb[0].mxu0
  %v897 = vadd.f32 0.0, %v896
  %898 = vmatprep.mubr.bf16.mxu0 0
  %899 = vmatmul.mubr.bf16.gmra.mrb[0].mxu0 %v841
  %v900 = vpop.f32.mrb[0].mxu0
  %v901 = vadd.f32 0.0, %v900
  %v902 = vpop.f32.mrb[0].mxu0
  %v903 = vadd.f32 0.0, %v902
  %v904 = vpop.f32.mrb[0].mxu0
  %v905 = vadd.f32 0.0, %v904
  %v906 = vpop.f32.mrb[0].mxu0
  %v907 = vadd.f32 0.0, %v906
  %908 = vmatprep.mubr.bf16.mxu0 0
  %909 = vmatmul.mubr.bf16.gmra.mrb[0].mxu0 %v844
  %v910 = vpop.f32.mrb[0].mxu0
  %v911 = vadd.f32 0.0, %v910
  %v912 = vpop.f32.mrb[0].mxu0
  %v913 = vadd.f32 0.0, %v912
  %v914 = vpop.f32.mrb[0].mxu0
  %v915 = vpop.f32.mrb[0].mxu0
  %916 = vdwg.mxu0
  %v917 = vadd.f32 %v736, %v881
  %v918 = vadd.f32 %v737, %v883
  %v919 = vadd.f32 %v738, %v885
  %v920 = vadd.f32 %v739, %v887
  %v921 = vadd.f32 %v740, %v891
  %v922 = vadd.f32 %v741, %v893
  %v923 = vadd.f32 %v742, %v895
  %v924 = vadd.f32 %v743, %v897
  %v925 = vadd.f32 %v744, %v901
  %v926 = vadd.f32 %v745, %v903
  %v927 = vadd.f32 %v746, %v905
  %v928 = vadd.f32 %v747, %v907
  %v929 = vadd.f32 %v748, %v911
  %v930 = vadd.f32 %v749, %v913
  %v931 = vld [vmem:[%s6] sm:$0x3]
  %v933 = vlaneseq
  %v934 = vshrl.u32 %v933, 7
  %v935 = vsub.s32 0, %v934
  %v936 = vrot.slane %v931, %v935
  %v937 = vlaneseq
  %v938 = vshrl.u32 %v937, 7
  %v939 = vsub.s32 1, %v938
  %v940 = vrot.slane %v931, %v939
  %v943 = vmul.f32 %v917, %v936
  %v944 = vmul.f32 %v918, %v940
  %v945 = vmul.f32 %v919, %v936
  %v946 = vmul.f32 %v920, %v940
  %v947 = vmul.f32 %v921, %v936
  %v948 = vmul.f32 %v922, %v940
  %v949 = vmul.f32 %v923, %v936
  %v950 = vmul.f32 %v924, %v940
  %v951 = vmul.f32 %v925, %v936
  %v952 = vmul.f32 %v926, %v940
  %v953 = vmul.f32 %v927, %v936
  %v954 = vmul.f32 %v928, %v940
  %v955 = vmul.f32 %v929, %v936
  %v956 = vmul.f32 %v930, %v940
  %v957 = vld [vmem:[%s7] sm:$0x3]
  %v959 = vlaneseq
  %v960 = vshrl.u32 %v959, 7
  %v961 = vsub.s32 0, %v960
  %v962 = vrot.slane %v957, %v961
  %v963 = vlaneseq
  %v964 = vshrl.u32 %v963, 7
  %v965 = vsub.s32 1, %v964
  %v966 = vrot.slane %v957, %v965
  %v969 = vadd.f32 %v943, %v962
  %v970 = vadd.f32 %v944, %v966
  %v971 = vadd.f32 %v945, %v962
  %v972 = vadd.f32 %v946, %v966
  %v973 = vadd.f32 %v947, %v962
  %v974 = vadd.f32 %v948, %v966
  %v975 = vadd.f32 %v949, %v962
  %v976 = vadd.f32 %v950, %v966
  %v977 = vadd.f32 %v951, %v962
  %v978 = vadd.f32 %v952, %v966
  %v979 = vadd.f32 %v953, %v962
  %v980 = vadd.f32 %v954, %v966
  %v981 = vadd.f32 %v955, %v962
  %v982 = vadd.f32 %v956, %v966
  %983 = vmatprep.subr.bf16.mxu0 %v136
  %984 = vmatpush1.bf16.msra.mxu0 %v135
  %985 = vmatprep.subr.bf16.mxu0 %v138
  %986 = vmatpush1.bf16.msra.mxu0 %v137
  %987 = vmatprep.subr.bf16.mxu0 %v140
  %988 = vmatpush1.bf16.msra.mxu0 %v139
  %989 = vmatprep.subr.bf16.mxu0 %v142
  %990 = vmatpush1.bf16.msra.mxu0 %v141
  %991 = vmatprep.subr.bf16.mxu0 %v144
  %992 = vmatpush1.bf16.msra.mxu0 %v143
  %993 = vmatprep.subr.bf16.mxu0 %v146
  %994 = vmatpush1.bf16.msra.mxu0 %v145
  %995 = vmatprep.subr.bf16.mxu0 0
  %996 = vmatpush1.bf16.msra.mxu0 0
  %997 = vmatprep.subr.bf16.mxu0 0
  %998 = vmatpush1.bf16.msra.mxu0 0
  %999 = vmatprep.subr.bf16.mxu0 0
  %1000 = vmatpush1.bf16.msra.mxu0 0
  %1001 = vmatprep.subr.bf16.mxu0 0
  %1002 = vmatpush1.bf16.msra.mxu0 0
  %1003 = vmatprep.subr.bf16.mxu0 0
  %1004 = vmatpush1.bf16.msra.mxu0 0
  %1005 = vmatprep.subr.bf16.mxu0 0
  %1006 = vmatpush1.bf16.msra.mxu0 0
  %1007 = vmatprep.subr.bf16.mxu0 0
  %1008 = vmatpush1.bf16.msra.mxu0 0
  %1009 = vmatprep.subr.bf16.mxu0 0
  %1010 = vmatpush1.bf16.msra.mxu0 0
  %1011 = vmatprep.subr.bf16.mxu0 0
  %1012 = vmatpush1.bf16.msra.mxu0 0
  %1013 = vmatprep.subr.bf16.mxu0 0
  %1014 = vmatpush1.bf16.msra.mxu0 0
  %1015 = vmatprep.mubr.bf16.mxu0 0
  %1016 = vmatmul.mubr.bf16.gmra.mrb[0].mxu0 %v472
  %v1017 = vpop.f32.mrb[0].mxu0
  %v1018 = vadd.f32 0.0, %v1017
  %v1019 = vpop.f32.mrb[0].mxu0
  %v1020 = vadd.f32 0.0, %v1019
  %v1021 = vpop.f32.mrb[0].mxu0
  %v1022 = vadd.f32 0.0, %v1021
  %v1023 = vpop.f32.mrb[0].mxu0
  %v1024 = vadd.f32 0.0, %v1023
  %1025 = vmatprep.mubr.bf16.mxu0 0
  %1026 = vmatmul.mubr.bf16.gmra.mrb[0].mxu0 %v475
  %v1027 = vpop.f32.mrb[0].mxu0
  %v1028 = vadd.f32 0.0, %v1027
  %v1029 = vpop.f32.mrb[0].mxu0
  %v1030 = vadd.f32 0.0, %v1029
  %v1031 = vpop.f32.mrb[0].mxu0
  %v1032 = vadd.f32 0.0, %v1031
  %v1033 = vpop.f32.mrb[0].mxu0
  %v1034 = vadd.f32 0.0, %v1033
  %1035 = vmatprep.mubr.bf16.mxu0 0
  %1036 = vmatmul.mubr.bf16.gmra.mrb[0].mxu0 %v478
  %v1037 = vpop.f32.mrb[0].mxu0
  %v1038 = vadd.f32 0.0, %v1037
  %v1039 = vpop.f32.mrb[0].mxu0
  %v1040 = vadd.f32 0.0, %v1039
  %v1041 = vpop.f32.mrb[0].mxu0
  %v1042 = vadd.f32 0.0, %v1041
  %v1043 = vpop.f32.mrb[0].mxu0
  %v1044 = vadd.f32 0.0, %v1043
  %1045 = vmatprep.mubr.bf16.mxu0 0
  %1046 = vmatmul.mubr.bf16.gmra.mrb[0].mxu0 %v481
  %v1047 = vpop.f32.mrb[0].mxu0
  %v1048 = vadd.f32 0.0, %v1047
  %v1049 = vpop.f32.mrb[0].mxu0
  %v1050 = vadd.f32 0.0, %v1049
  %v1051 = vpop.f32.mrb[0].mxu0
  %v1052 = vpop.f32.mrb[0].mxu0
  %1053 = vdwg.mxu0
  %1054 = vmatprep.subr.bf16.mxu0 %v280
  %1055 = vmatpush1.bf16.msra.mxu0 %v279
  %1056 = vmatprep.subr.bf16.mxu0 %v282
  %1057 = vmatpush1.bf16.msra.mxu0 %v281
  %1058 = vmatprep.subr.bf16.mxu0 %v284
  %1059 = vmatpush1.bf16.msra.mxu0 %v283
  %1060 = vmatprep.subr.bf16.mxu0 %v286
  %1061 = vmatpush1.bf16.msra.mxu0 %v285
  %1062 = vmatprep.subr.bf16.mxu0 %v288
  %1063 = vmatpush1.bf16.msra.mxu0 %v287
  %1064 = vmatprep.subr.bf16.mxu0 %v290
  %1065 = vmatpush1.bf16.msra.mxu0 %v289
  %1066 = vmatprep.subr.bf16.mxu0 0
  %1067 = vmatpush1.bf16.msra.mxu0 0
  %1068 = vmatprep.subr.bf16.mxu0 0
  %1069 = vmatpush1.bf16.msra.mxu0 0
  %1070 = vmatprep.subr.bf16.mxu0 0
  %1071 = vmatpush1.bf16.msra.mxu0 0
  %1072 = vmatprep.subr.bf16.mxu0 0
  %1073 = vmatpush1.bf16.msra.mxu0 0
  %1074 = vmatprep.subr.bf16.mxu0 0
  %1075 = vmatpush1.bf16.msra.mxu0 0
  %1076 = vmatprep.subr.bf16.mxu0 0
  %1077 = vmatpush1.bf16.msra.mxu0 0
  %1078 = vmatprep.subr.bf16.mxu0 0
  %1079 = vmatpush1.bf16.msra.mxu0 0
  %1080 = vmatprep.subr.bf16.mxu0 0
  %1081 = vmatpush1.bf16.msra.mxu0 0
  %1082 = vmatprep.subr.bf16.mxu0 0
  %1083 = vmatpush1.bf16.msra.mxu0 0
  %1084 = vmatprep.subr.bf16.mxu0 0
  %1085 = vmatpush1.bf16.msra.mxu0 0
  %1086 = vmatprep.mubr.bf16.mxu0 0
  %1087 = vmatmul.mubr.bf16.gmra.mrb[0].mxu0 %v161
  %v1088 = vpop.f32.mrb[0].mxu0
  %v1089 = vadd.f32 %v1018, %v1088
  %v1090 = vpop.f32.mrb[0].mxu0
  %v1091 = vadd.f32 %v1020, %v1090
  %v1092 = vpop.f32.mrb[0].mxu0
  %v1093 = vadd.f32 %v1022, %v1092
  %v1094 = vpop.f32.mrb[0].mxu0
  %v1095 = vadd.f32 %v1024, %v1094
  %1096 = vmatprep.mubr.bf16.mxu0 0
  %1097 = vmatmul.mubr.bf16.gmra.mrb[0].mxu0 %v164
  %v1098 = vpop.f32.mrb[0].mxu0
  %v1099 = vadd.f32 %v1028, %v1098
  %v1100 = vpop.f32.mrb[0].mxu0
  %v1101 = vadd.f32 %v1030, %v1100
  %v1102 = vpop.f32.mrb[0].mxu0
  %v1103 = vadd.f32 %v1032, %v1102
  %v1104 = vpop.f32.mrb[0].mxu0
  %v1105 = vadd.f32 %v1034, %v1104
  %1106 = vmatprep.mubr.bf16.mxu0 0
  %1107 = vmatmul.mubr.bf16.gmra.mrb[0].mxu0 %v167
  %v1108 = vpop.f32.mrb[0].mxu0
  %v1109 = vadd.f32 %v1038, %v1108
  %v1110 = vpop.f32.mrb[0].mxu0
  %v1111 = vadd.f32 %v1040, %v1110
  %v1112 = vpop.f32.mrb[0].mxu0
  %v1113 = vadd.f32 %v1042, %v1112
  %v1114 = vpop.f32.mrb[0].mxu0
  %v1115 = vadd.f32 %v1044, %v1114
  %1116 = vmatprep.mubr.bf16.mxu0 0
  %1117 = vmatmul.mubr.bf16.gmra.mrb[0].mxu0 %v170
  %v1118 = vpop.f32.mrb[0].mxu0
  %v1119 = vadd.f32 %v1048, %v1118
  %v1120 = vpop.f32.mrb[0].mxu0
  %v1121 = vadd.f32 %v1050, %v1120
  %v1122 = vpop.f32.mrb[0].mxu0
  %v1123 = vpop.f32.mrb[0].mxu0
  %1124 = vdwg.mxu0
  %1125 = vmatprep.subr.bf16.mxu0 %v448
  %1126 = vmatpush1.bf16.msra.mxu0 %v447
  %1127 = vmatprep.subr.bf16.mxu0 %v450
  %1128 = vmatpush1.bf16.msra.mxu0 %v449
  %1129 = vmatprep.subr.bf16.mxu0 %v452
  %1130 = vmatpush1.bf16.msra.mxu0 %v451
  %1131 = vmatprep.subr.bf16.mxu0 %v454
  %1132 = vmatpush1.bf16.msra.mxu0 %v453
  %1133 = vmatprep.subr.bf16.mxu0 %v456
  %1134 = vmatpush1.bf16.msra.mxu0 %v455
  %1135 = vmatprep.subr.bf16.mxu0 %v458
  %1136 = vmatpush1.bf16.msra.mxu0 %v457
  %1137 = vmatprep.subr.bf16.mxu0 0
  %1138 = vmatpush1.bf16.msra.mxu0 0
  %1139 = vmatprep.subr.bf16.mxu0 0
  %1140 = vmatpush1.bf16.msra.mxu0 0
  %1141 = vmatprep.subr.bf16.mxu0 0
  %1142 = vmatpush1.bf16.msra.mxu0 0
  %1143 = vmatprep.subr.bf16.mxu0 0
  %1144 = vmatpush1.bf16.msra.mxu0 0
  %1145 = vmatprep.subr.bf16.mxu0 0
  %1146 = vmatpush1.bf16.msra.mxu0 0
  %1147 = vmatprep.subr.bf16.mxu0 0
  %1148 = vmatpush1.bf16.msra.mxu0 0
  %1149 = vmatprep.subr.bf16.mxu0 0
  %1150 = vmatpush1.bf16.msra.mxu0 0
  %1151 = vmatprep.subr.bf16.mxu0 0
  %1152 = vmatpush1.bf16.msra.mxu0 0
  %1153 = vmatprep.subr.bf16.mxu0 0
  %1154 = vmatpush1.bf16.msra.mxu0 0
  %1155 = vmatprep.subr.bf16.mxu0 0
  %1156 = vmatpush1.bf16.msra.mxu0 0
  %1157 = vmatprep.mubr.bf16.mxu0 0
  %1158 = vmatmul.mubr.bf16.gmra.mrb[0].mxu0 %v654
  %v1159 = vpop.f32.mrb[0].mxu0
  %v1160 = vadd.f32 0.0, %v1159
  %v1161 = vpop.f32.mrb[0].mxu0
  %v1162 = vadd.f32 0.0, %v1161
  %v1163 = vpop.f32.mrb[0].mxu0
  %v1164 = vadd.f32 0.0, %v1163
  %v1165 = vpop.f32.mrb[0].mxu0
  %v1166 = vadd.f32 0.0, %v1165
  %1167 = vmatprep.mubr.bf16.mxu0 0
  %1168 = vmatmul.mubr.bf16.gmra.mrb[0].mxu0 %v657
  %v1169 = vpop.f32.mrb[0].mxu0
  %v1170 = vadd.f32 0.0, %v1169
  %v1171 = vpop.f32.mrb[0].mxu0
  %v1172 = vadd.f32 0.0, %v1171
  %v1173 = vpop.f32.mrb[0].mxu0
  %v1174 = vadd.f32 0.0, %v1173
  %v1175 = vpop.f32.mrb[0].mxu0
  %v1176 = vadd.f32 0.0, %v1175
  %1177 = vmatprep.mubr.bf16.mxu0 0
  %1178 = vmatmul.mubr.bf16.gmra.mrb[0].mxu0 %v660
  %v1179 = vpop.f32.mrb[0].mxu0
  %v1180 = vadd.f32 0.0, %v1179
  %v1181 = vpop.f32.mrb[0].mxu0
  %v1182 = vadd.f32 0.0, %v1181
  %v1183 = vpop.f32.mrb[0].mxu0
  %v1184 = vadd.f32 0.0, %v1183
  %v1185 = vpop.f32.mrb[0].mxu0
  %v1186 = vadd.f32 0.0, %v1185
  %1187 = vmatprep.mubr.bf16.mxu0 0
  %1188 = vmatmul.mubr.bf16.gmra.mrb[0].mxu0 %v663
  %v1189 = vpop.f32.mrb[0].mxu0
  %v1190 = vadd.f32 0.0, %v1189
  %v1191 = vpop.f32.mrb[0].mxu0
  %v1192 = vadd.f32 0.0, %v1191
  %v1193 = vpop.f32.mrb[0].mxu0
  %v1194 = vpop.f32.mrb[0].mxu0
  %1195 = vdwg.mxu0
  %v1196 = vadd.f32 %v1089, %v1160
  %v1197 = vadd.f32 %v1091, %v1162
  %v1198 = vadd.f32 %v1093, %v1164
  %v1199 = vadd.f32 %v1095, %v1166
  %v1200 = vadd.f32 %v1099, %v1170
  %v1201 = vadd.f32 %v1101, %v1172
  %v1202 = vadd.f32 %v1103, %v1174
  %v1203 = vadd.f32 %v1105, %v1176
  %v1204 = vadd.f32 %v1109, %v1180
  %v1205 = vadd.f32 %v1111, %v1182
  %v1206 = vadd.f32 %v1113, %v1184
  %v1207 = vadd.f32 %v1115, %v1186
  %v1208 = vadd.f32 %v1119, %v1190
  %v1209 = vadd.f32 %v1121, %v1192
  %1210 = vmatprep.subr.bf16.mxu0 %v630
  %1211 = vmatpush1.bf16.msra.mxu0 %v629
  %1212 = vmatprep.subr.bf16.mxu0 %v632
  %1213 = vmatpush1.bf16.msra.mxu0 %v631
  %1214 = vmatprep.subr.bf16.mxu0 %v634
  %1215 = vmatpush1.bf16.msra.mxu0 %v633
  %1216 = vmatprep.subr.bf16.mxu0 %v636
  %1217 = vmatpush1.bf16.msra.mxu0 %v635
  %1218 = vmatprep.subr.bf16.mxu0 %v638
  %1219 = vmatpush1.bf16.msra.mxu0 %v637
  %1220 = vmatprep.subr.bf16.mxu0 %v640
  %1221 = vmatpush1.bf16.msra.mxu0 %v639
  %1222 = vmatprep.subr.bf16.mxu0 0
  %1223 = vmatpush1.bf16.msra.mxu0 0
  %1224 = vmatprep.subr.bf16.mxu0 0
  %1225 = vmatpush1.bf16.msra.mxu0 0
  %1226 = vmatprep.subr.bf16.mxu0 0
  %1227 = vmatpush1.bf16.msra.mxu0 0
  %1228 = vmatprep.subr.bf16.mxu0 0
  %1229 = vmatpush1.bf16.msra.mxu0 0
  %1230 = vmatprep.subr.bf16.mxu0 0
  %1231 = vmatpush1.bf16.msra.mxu0 0
  %1232 = vmatprep.subr.bf16.mxu0 0
  %1233 = vmatpush1.bf16.msra.mxu0 0
  %1234 = vmatprep.subr.bf16.mxu0 0
  %1235 = vmatpush1.bf16.msra.mxu0 0
  %1236 = vmatprep.subr.bf16.mxu0 0
  %1237 = vmatpush1.bf16.msra.mxu0 0
  %1238 = vmatprep.subr.bf16.mxu0 0
  %1239 = vmatpush1.bf16.msra.mxu0 0
  %1240 = vmatprep.subr.bf16.mxu0 0
  %1241 = vmatpush1.bf16.msra.mxu0 0
  %1242 = vmatprep.mubr.bf16.mxu0 0
  %1243 = vmatmul.mubr.bf16.gmra.mrb[0].mxu0 %v835
  %v1244 = vpop.f32.mrb[0].mxu0
  %v1245 = vadd.f32 0.0, %v1244
  %v1246 = vpop.f32.mrb[0].mxu0
  %v1247 = vadd.f32 0.0, %v1246
  %v1248 = vpop.f32.mrb[0].mxu0
  %v1249 = vadd.f32 0.0, %v1248
  %v1250 = vpop.f32.mrb[0].mxu0
  %v1251 = vadd.f32 0.0, %v1250
  %1252 = vmatprep.mubr.bf16.mxu0 0
  %1253 = vmatmul.mubr.bf16.gmra.mrb[0].mxu0 %v838
  %v1254 = vpop.f32.mrb[0].mxu0
  %v1255 = vadd.f32 0.0, %v1254
  %v1256 = vpop.f32.mrb[0].mxu0
  %v1257 = vadd.f32 0.0, %v1256
  %v1258 = vpop.f32.mrb[0].mxu0
  %v1259 = vadd.f32 0.0, %v1258
  %v1260 = vpop.f32.mrb[0].mxu0
  %v1261 = vadd.f32 0.0, %v1260
  %1262 = vmatprep.mubr.bf16.mxu0 0
  %1263 = vmatmul.mubr.bf16.gmra.mrb[0].mxu0 %v841
  %v1264 = vpop.f32.mrb[0].mxu0
  %v1265 = vadd.f32 0.0, %v1264
  %v1266 = vpop.f32.mrb[0].mxu0
  %v1267 = vadd.f32 0.0, %v1266
  %v1268 = vpop.f32.mrb[0].mxu0
  %v1269 = vadd.f32 0.0, %v1268
  %v1270 = vpop.f32.mrb[0].mxu0
  %v1271 = vadd.f32 0.0, %v1270
  %1272 = vmatprep.mubr.bf16.mxu0 0
  %1273 = vmatmul.mubr.bf16.gmra.mrb[0].mxu0 %v844
  %v1274 = vpop.f32.mrb[0].mxu0
  %v1275 = vadd.f32 0.0, %v1274
  %v1276 = vpop.f32.mrb[0].mxu0
  %v1277 = vadd.f32 0.0, %v1276
  %v1278 = vpop.f32.mrb[0].mxu0
  %v1279 = vpop.f32.mrb[0].mxu0
  %1280 = vdwg.mxu0
  %v1281 = vadd.f32 %v1196, %v1245
  %v1282 = vadd.f32 %v1197, %v1247
  %v1283 = vadd.f32 %v1198, %v1249
  %v1284 = vadd.f32 %v1199, %v1251
  %v1285 = vadd.f32 %v1200, %v1255
  %v1286 = vadd.f32 %v1201, %v1257
  %v1287 = vadd.f32 %v1202, %v1259
  %v1288 = vadd.f32 %v1203, %v1261
  %v1289 = vadd.f32 %v1204, %v1265
  %v1290 = vadd.f32 %v1205, %v1267
  %v1291 = vadd.f32 %v1206, %v1269
  %v1292 = vadd.f32 %v1207, %v1271
  %v1293 = vadd.f32 %v1208, %v1275
  %v1294 = vadd.f32 %v1209, %v1277
  %v1295 = vld [vmem:[%s74 + $0x8] sm:$0xff]
  %v1296 = vld [vmem:[%s74 + $0x10] sm:$0xff]
  %v1297 = vld [vmem:[%s74 + $0x18] sm:$0xff]
  %v1298 = vld [vmem:[%s74 + $0x20] sm:$0xff]
  %v1299 = vld [vmem:[%s74 + $0x28] sm:$0xff]
  %v1300 = vld [vmem:[%s74 + $0x30] sm:$0xff]
  %v1301 = vld [vmem:[%s74 + $0x38] sm:$0xff]
  %v1302 = vpack.c.bf16 %v1296, %v1295
  %v1303 = vpack.c.bf16 %v1298, %v1297
  %v1304 = vpack.c.bf16 %v1300, %v1299
  %v1305 = vpack.c.bf16 %v1301, %v1301
  %v1307 = vsel %vm159, %v1302, 0
  %v1310 = vsel %vm159, %v1303, 0
  %v1313 = vsel %vm159, %v1304, 0
  %v1316 = vsel %vm159, %v1305, 0
  %1318 = vmatprep.subr.bf16.mxu0 %v811
  %1319 = vmatpush1.bf16.msra.mxu0 %v810
  %1320 = vmatprep.subr.bf16.mxu0 %v813
  %1321 = vmatpush1.bf16.msra.mxu0 %v812
  %1322 = vmatprep.subr.bf16.mxu0 %v815
  %1323 = vmatpush1.bf16.msra.mxu0 %v814
  %1324 = vmatprep.subr.bf16.mxu0 %v817
  %1325 = vmatpush1.bf16.msra.mxu0 %v816
  %1326 = vmatprep.subr.bf16.mxu0 %v819
  %1327 = vmatpush1.bf16.msra.mxu0 %v818
  %1328 = vmatprep.subr.bf16.mxu0 %v821
  %1329 = vmatpush1.bf16.msra.mxu0 %v820
  %1330 = vmatprep.subr.bf16.mxu0 0
  %1331 = vmatpush1.bf16.msra.mxu0 0
  %1332 = vmatprep.subr.bf16.mxu0 0
  %1333 = vmatpush1.bf16.msra.mxu0 0
  %1334 = vmatprep.subr.bf16.mxu0 0
  %1335 = vmatpush1.bf16.msra.mxu0 0
  %1336 = vmatprep.subr.bf16.mxu0 0
  %1337 = vmatpush1.bf16.msra.mxu0 0
  %1338 = vmatprep.subr.bf16.mxu0 0
  %1339 = vmatpush1.bf16.msra.mxu0 0
  %1340 = vmatprep.subr.bf16.mxu0 0
  %1341 = vmatpush1.bf16.msra.mxu0 0
  %1342 = vmatprep.subr.bf16.mxu0 0
  %1343 = vmatpush1.bf16.msra.mxu0 0
  %1344 = vmatprep.subr.bf16.mxu0 0
  %1345 = vmatpush1.bf16.msra.mxu0 0
  %1346 = vmatprep.subr.bf16.mxu0 0
  %1347 = vmatpush1.bf16.msra.mxu0 0
  %1348 = vmatprep.subr.bf16.mxu0 0
  %1349 = vmatpush1.bf16.msra.mxu0 0
  %1350 = vmatprep.mubr.bf16.mxu0 0
  %1351 = vmatmul.mubr.bf16.gmra.mrb[0].mxu0 %v1307
  %v1352 = vpop.f32.mrb[0].mxu0
  %v1353 = vadd.f32 0.0, %v1352
  %v1354 = vpop.f32.mrb[0].mxu0
  %v1355 = vadd.f32 0.0, %v1354
  %v1356 = vpop.f32.mrb[0].mxu0
  %v1357 = vadd.f32 0.0, %v1356
  %v1358 = vpop.f32.mrb[0].mxu0
  %v1359 = vadd.f32 0.0, %v1358
  %1360 = vmatprep.mubr.bf16.mxu0 0
  %1361 = vmatmul.mubr.bf16.gmra.mrb[0].mxu0 %v1310
  %v1362 = vpop.f32.mrb[0].mxu0
  %v1363 = vadd.f32 0.0, %v1362
  %v1364 = vpop.f32.mrb[0].mxu0
  %v1365 = vadd.f32 0.0, %v1364
  %v1366 = vpop.f32.mrb[0].mxu0
  %v1367 = vadd.f32 0.0, %v1366
  %v1368 = vpop.f32.mrb[0].mxu0
  %v1369 = vadd.f32 0.0, %v1368
  %1370 = vmatprep.mubr.bf16.mxu0 0
  %1371 = vmatmul.mubr.bf16.gmra.mrb[0].mxu0 %v1313
  %v1372 = vpop.f32.mrb[0].mxu0
  %v1373 = vadd.f32 0.0, %v1372
  %v1374 = vpop.f32.mrb[0].mxu0
  %v1375 = vadd.f32 0.0, %v1374
  %v1376 = vpop.f32.mrb[0].mxu0
  %v1377 = vadd.f32 0.0, %v1376
  %v1378 = vpop.f32.mrb[0].mxu0
  %v1379 = vadd.f32 0.0, %v1378
  %1380 = vmatprep.mubr.bf16.mxu0 0
  %1381 = vmatmul.mubr.bf16.gmra.mrb[0].mxu0 %v1316
  %v1382 = vpop.f32.mrb[0].mxu0
  %v1383 = vadd.f32 0.0, %v1382
  %v1384 = vpop.f32.mrb[0].mxu0
  %v1385 = vadd.f32 0.0, %v1384
  %v1386 = vpop.f32.mrb[0].mxu0
  %v1387 = vpop.f32.mrb[0].mxu0
  %1388 = vdwg.mxu0
  %v1389 = vadd.f32 %v1281, %v1353
  %v1390 = vadd.f32 %v1282, %v1355
  %v1391 = vadd.f32 %v1283, %v1357
  %v1392 = vadd.f32 %v1284, %v1359
  %v1393 = vadd.f32 %v1285, %v1363
  %v1394 = vadd.f32 %v1286, %v1365
  %v1395 = vadd.f32 %v1287, %v1367
  %v1396 = vadd.f32 %v1288, %v1369
  %v1397 = vadd.f32 %v1289, %v1373
  %v1398 = vadd.f32 %v1290, %v1375
  %v1399 = vadd.f32 %v1291, %v1377
  %v1400 = vadd.f32 %v1292, %v1379
  %v1401 = vadd.f32 %v1293, %v1383
  %v1402 = vadd.f32 %v1294, %v1385
  %v1403 = vmul.f32 %v1389, %v936
  %v1404 = vmul.f32 %v1390, %v940
  %v1405 = vmul.f32 %v1391, %v936
  %v1406 = vmul.f32 %v1392, %v940
  %v1407 = vmul.f32 %v1393, %v936
  %v1408 = vmul.f32 %v1394, %v940
  %v1409 = vmul.f32 %v1395, %v936
  %v1410 = vmul.f32 %v1396, %v940
  %v1411 = vmul.f32 %v1397, %v936
  %v1412 = vmul.f32 %v1398, %v940
  %v1413 = vmul.f32 %v1399, %v936
  %v1414 = vmul.f32 %v1400, %v940
  %v1415 = vmul.f32 %v1401, %v936
  %v1416 = vmul.f32 %v1402, %v940
  %v1417 = vadd.f32 %v1403, %v962
  %v1418 = vadd.f32 %v1404, %v966
  %v1419 = vadd.f32 %v1405, %v962
  %v1420 = vadd.f32 %v1406, %v966
  %v1421 = vadd.f32 %v1407, %v962
  %v1422 = vadd.f32 %v1408, %v966
  %v1423 = vadd.f32 %v1409, %v962
  %v1424 = vadd.f32 %v1410, %v966
  %v1425 = vadd.f32 %v1411, %v962
  %v1426 = vadd.f32 %v1412, %v966
  %v1427 = vadd.f32 %v1413, %v962
  %v1428 = vadd.f32 %v1414, %v966
  %v1429 = vadd.f32 %v1415, %v962
  %v1430 = vadd.f32 %v1416, %v966
  %v1431 = vmax.f32 %v969, %v1417
  %v1432 = vmax.f32 %v970, %v1418
  %v1433 = vmax.f32 %v971, %v1419
  %v1434 = vmax.f32 %v972, %v1420
  %v1435 = vmax.f32 %v973, %v1421
  %v1436 = vmax.f32 %v974, %v1422
  %v1437 = vmax.f32 %v975, %v1423
  %v1438 = vmax.f32 %v976, %v1424
  %v1439 = vmax.f32 %v977, %v1425
  %v1440 = vmax.f32 %v978, %v1426
  %v1441 = vmax.f32 %v979, %v1427
  %v1442 = vmax.f32 %v980, %v1428
  %v1443 = vmax.f32 %v981, %v1429
  %v1444 = vmax.f32 %v982, %v1430
  %v1445 = vmax.f32 %v1431, %v1432
  %v1446 = vmax.f32 %v1433, %v1434
  %v1447 = vmax.f32 %v1435, %v1436
  %v1448 = vmax.f32 %v1437, %v1438
  %v1449 = vmax.f32 %v1439, %v1440
  %v1450 = vmax.f32 %v1441, %v1442
  %v1451 = vmax.f32 %v1443, %v1444
  %v1452 = vmax.f32 %v1445, 0.0
  %v1453 = vmax.f32 %v1446, 0.0
  %v1454 = vmax.f32 %v1447, 0.0
  %v1455 = vmax.f32 %v1448, 0.0
  %v1456 = vmax.f32 %v1449, 0.0
  %v1457 = vmax.f32 %v1450, 0.0
  %v1458 = vmax.f32 %v1451, 0.0
  %1459 = vmatprep.subr.bf16.mxu0 %v136
  %1460 = vmatpush1.bf16.msra.mxu0 %v135
  %1461 = vmatprep.subr.bf16.mxu0 %v138
  %1462 = vmatpush1.bf16.msra.mxu0 %v137
  %1463 = vmatprep.subr.bf16.mxu0 %v140
  %1464 = vmatpush1.bf16.msra.mxu0 %v139
  %1465 = vmatprep.subr.bf16.mxu0 %v142
  %1466 = vmatpush1.bf16.msra.mxu0 %v141
  %1467 = vmatprep.subr.bf16.mxu0 %v144
  %1468 = vmatpush1.bf16.msra.mxu0 %v143
  %1469 = vmatprep.subr.bf16.mxu0 %v146
  %1470 = vmatpush1.bf16.msra.mxu0 %v145
  %1471 = vmatprep.subr.bf16.mxu0 0
  %1472 = vmatpush1.bf16.msra.mxu0 0
  %1473 = vmatprep.subr.bf16.mxu0 0
  %1474 = vmatpush1.bf16.msra.mxu0 0
  %1475 = vmatprep.subr.bf16.mxu0 0
  %1476 = vmatpush1.bf16.msra.mxu0 0
  %1477 = vmatprep.subr.bf16.mxu0 0
  %1478 = vmatpush1.bf16.msra.mxu0 0
  %1479 = vmatprep.subr.bf16.mxu0 0
  %1480 = vmatpush1.bf16.msra.mxu0 0
  %1481 = vmatprep.subr.bf16.mxu0 0
  %1482 = vmatpush1.bf16.msra.mxu0 0
  %1483 = vmatprep.subr.bf16.mxu0 0
  %1484 = vmatpush1.bf16.msra.mxu0 0
  %1485 = vmatprep.subr.bf16.mxu0 0
  %1486 = vmatpush1.bf16.msra.mxu0 0
  %1487 = vmatprep.subr.bf16.mxu0 0
  %1488 = vmatpush1.bf16.msra.mxu0 0
  %1489 = vmatprep.subr.bf16.mxu0 0
  %1490 = vmatpush1.bf16.msra.mxu0 0
  %1491 = vmatprep.mubr.bf16.mxu0 0
  %1492 = vmatmul.mubr.bf16.gmra.mrb[0].mxu0 %v654
  %v1493 = vpop.f32.mrb[0].mxu0
  %v1494 = vadd.f32 0.0, %v1493
  %v1495 = vpop.f32.mrb[0].mxu0
  %v1496 = vadd.f32 0.0, %v1495
  %v1497 = vpop.f32.mrb[0].mxu0
  %v1498 = vadd.f32 0.0, %v1497
  %v1499 = vpop.f32.mrb[0].mxu0
  %v1500 = vadd.f32 0.0, %v1499
  %1501 = vmatprep.mubr.bf16.mxu0 0
  %1502 = vmatmul.mubr.bf16.gmra.mrb[0].mxu0 %v657
  %v1503 = vpop.f32.mrb[0].mxu0
  %v1504 = vadd.f32 0.0, %v1503
  %v1505 = vpop.f32.mrb[0].mxu0
  %v1506 = vadd.f32 0.0, %v1505
  %v1507 = vpop.f32.mrb[0].mxu0
  %v1508 = vadd.f32 0.0, %v1507
  %v1509 = vpop.f32.mrb[0].mxu0
  %v1510 = vadd.f32 0.0, %v1509
  %1511 = vmatprep.mubr.bf16.mxu0 0
  %1512 = vmatmul.mubr.bf16.gmra.mrb[0].mxu0 %v660
  %v1513 = vpop.f32.mrb[0].mxu0
  %v1514 = vadd.f32 0.0, %v1513
  %v1515 = vpop.f32.mrb[0].mxu0
  %v1516 = vadd.f32 0.0, %v1515
  %v1517 = vpop.f32.mrb[0].mxu0
  %v1518 = vadd.f32 0.0, %v1517
  %v1519 = vpop.f32.mrb[0].mxu0
  %v1520 = vadd.f32 0.0, %v1519
  %1521 = vmatprep.mubr.bf16.mxu0 0
  %1522 = vmatmul.mubr.bf16.gmra.mrb[0].mxu0 %v663
  %v1523 = vpop.f32.mrb[0].mxu0
  %v1524 = vadd.f32 0.0, %v1523
  %v1525 = vpop.f32.mrb[0].mxu0
  %v1526 = vadd.f32 0.0, %v1525
  %v1527 = vpop.f32.mrb[0].mxu0
  %v1528 = vpop.f32.mrb[0].mxu0
  %1529 = vdwg.mxu0
  %1530 = vmatprep.subr.bf16.mxu0 %v280
  %1531 = vmatpush1.bf16.msra.mxu0 %v279
  %1532 = vmatprep.subr.bf16.mxu0 %v282
  %1533 = vmatpush1.bf16.msra.mxu0 %v281
  %1534 = vmatprep.subr.bf16.mxu0 %v284
  %1535 = vmatpush1.bf16.msra.mxu0 %v283
  %1536 = vmatprep.subr.bf16.mxu0 %v286
  %1537 = vmatpush1.bf16.msra.mxu0 %v285
  %1538 = vmatprep.subr.bf16.mxu0 %v288
  %1539 = vmatpush1.bf16.msra.mxu0 %v287
  %1540 = vmatprep.subr.bf16.mxu0 %v290
  %1541 = vmatpush1.bf16.msra.mxu0 %v289
  %1542 = vmatprep.subr.bf16.mxu0 0
  %1543 = vmatpush1.bf16.msra.mxu0 0
  %1544 = vmatprep.subr.bf16.mxu0 0
  %1545 = vmatpush1.bf16.msra.mxu0 0
  %1546 = vmatprep.subr.bf16.mxu0 0
  %1547 = vmatpush1.bf16.msra.mxu0 0
  %1548 = vmatprep.subr.bf16.mxu0 0
  %1549 = vmatpush1.bf16.msra.mxu0 0
  %1550 = vmatprep.subr.bf16.mxu0 0
  %1551 = vmatpush1.bf16.msra.mxu0 0
  %1552 = vmatprep.subr.bf16.mxu0 0
  %1553 = vmatpush1.bf16.msra.mxu0 0
  %1554 = vmatprep.subr.bf16.mxu0 0
  %1555 = vmatpush1.bf16.msra.mxu0 0
  %1556 = vmatprep.subr.bf16.mxu0 0
  %1557 = vmatpush1.bf16.msra.mxu0 0
  %1558 = vmatprep.subr.bf16.mxu0 0
  %1559 = vmatpush1.bf16.msra.mxu0 0
  %1560 = vmatprep.subr.bf16.mxu0 0
  %1561 = vmatpush1.bf16.msra.mxu0 0
  %1562 = vmatprep.mubr.bf16.mxu0 0
  %1563 = vmatmul.mubr.bf16.gmra.mrb[0].mxu0 %v472
  %v1564 = vpop.f32.mrb[0].mxu0
  %v1565 = vadd.f32 %v1494, %v1564
  %v1566 = vpop.f32.mrb[0].mxu0
  %v1567 = vadd.f32 %v1496, %v1566
  %v1568 = vpop.f32.mrb[0].mxu0
  %v1569 = vadd.f32 %v1498, %v1568
  %v1570 = vpop.f32.mrb[0].mxu0
  %v1571 = vadd.f32 %v1500, %v1570
  %1572 = vmatprep.mubr.bf16.mxu0 0
  %1573 = vmatmul.mubr.bf16.gmra.mrb[0].mxu0 %v475
  %v1574 = vpop.f32.mrb[0].mxu0
  %v1575 = vadd.f32 %v1504, %v1574
  %v1576 = vpop.f32.mrb[0].mxu0
  %v1577 = vadd.f32 %v1506, %v1576
  %v1578 = vpop.f32.mrb[0].mxu0
  %v1579 = vadd.f32 %v1508, %v1578
  %v1580 = vpop.f32.mrb[0].mxu0
  %v1581 = vadd.f32 %v1510, %v1580
  %1582 = vmatprep.mubr.bf16.mxu0 0
  %1583 = vmatmul.mubr.bf16.gmra.mrb[0].mxu0 %v478
  %v1584 = vpop.f32.mrb[0].mxu0
  %v1585 = vadd.f32 %v1514, %v1584
  %v1586 = vpop.f32.mrb[0].mxu0
  %v1587 = vadd.f32 %v1516, %v1586
  %v1588 = vpop.f32.mrb[0].mxu0
  %v1589 = vadd.f32 %v1518, %v1588
  %v1590 = vpop.f32.mrb[0].mxu0
  %v1591 = vadd.f32 %v1520, %v1590
  %1592 = vmatprep.mubr.bf16.mxu0 0
  %1593 = vmatmul.mubr.bf16.gmra.mrb[0].mxu0 %v481
  %v1594 = vpop.f32.mrb[0].mxu0
  %v1595 = vadd.f32 %v1524, %v1594
  %v1596 = vpop.f32.mrb[0].mxu0
  %v1597 = vadd.f32 %v1526, %v1596
  %v1598 = vpop.f32.mrb[0].mxu0
  %v1599 = vpop.f32.mrb[0].mxu0
  %1600 = vdwg.mxu0
  %1601 = vmatprep.subr.bf16.mxu0 %v448
  %1602 = vmatpush1.bf16.msra.mxu0 %v447
  %1603 = vmatprep.subr.bf16.mxu0 %v450
  %1604 = vmatpush1.bf16.msra.mxu0 %v449
  %1605 = vmatprep.subr.bf16.mxu0 %v452
  %1606 = vmatpush1.bf16.msra.mxu0 %v451
  %1607 = vmatprep.subr.bf16.mxu0 %v454
  %1608 = vmatpush1.bf16.msra.mxu0 %v453
  %1609 = vmatprep.subr.bf16.mxu0 %v456
  %1610 = vmatpush1.bf16.msra.mxu0 %v455
  %1611 = vmatprep.subr.bf16.mxu0 %v458
  %1612 = vmatpush1.bf16.msra.mxu0 %v457
  %1613 = vmatprep.subr.bf16.mxu0 0
  %1614 = vmatpush1.bf16.msra.mxu0 0
  %1615 = vmatprep.subr.bf16.mxu0 0
  %1616 = vmatpush1.bf16.msra.mxu0 0
  %1617 = vmatprep.subr.bf16.mxu0 0
  %1618 = vmatpush1.bf16.msra.mxu0 0
  %1619 = vmatprep.subr.bf16.mxu0 0
  %1620 = vmatpush1.bf16.msra.mxu0 0
  %1621 = vmatprep.subr.bf16.mxu0 0
  %1622 = vmatpush1.bf16.msra.mxu0 0
  %1623 = vmatprep.subr.bf16.mxu0 0
  %1624 = vmatpush1.bf16.msra.mxu0 0
  %1625 = vmatprep.subr.bf16.mxu0 0
  %1626 = vmatpush1.bf16.msra.mxu0 0
  %1627 = vmatprep.subr.bf16.mxu0 0
  %1628 = vmatpush1.bf16.msra.mxu0 0
  %1629 = vmatprep.subr.bf16.mxu0 0
  %1630 = vmatpush1.bf16.msra.mxu0 0
  %1631 = vmatprep.subr.bf16.mxu0 0
  %1632 = vmatpush1.bf16.msra.mxu0 0
  %1633 = vmatprep.mubr.bf16.mxu0 0
  %1634 = vmatmul.mubr.bf16.gmra.mrb[0].mxu0 %v835
  %v1635 = vpop.f32.mrb[0].mxu0
  %v1636 = vadd.f32 0.0, %v1635
  %v1637 = vpop.f32.mrb[0].mxu0
  %v1638 = vadd.f32 0.0, %v1637
  %v1639 = vpop.f32.mrb[0].mxu0
  %v1640 = vadd.f32 0.0, %v1639
  %v1641 = vpop.f32.mrb[0].mxu0
  %v1642 = vadd.f32 0.0, %v1641
  %1643 = vmatprep.mubr.bf16.mxu0 0
  %1644 = vmatmul.mubr.bf16.gmra.mrb[0].mxu0 %v838
  %v1645 = vpop.f32.mrb[0].mxu0
  %v1646 = vadd.f32 0.0, %v1645
  %v1647 = vpop.f32.mrb[0].mxu0
  %v1648 = vadd.f32 0.0, %v1647
  %v1649 = vpop.f32.mrb[0].mxu0
  %v1650 = vadd.f32 0.0, %v1649
  %v1651 = vpop.f32.mrb[0].mxu0
  %v1652 = vadd.f32 0.0, %v1651
  %1653 = vmatprep.mubr.bf16.mxu0 0
  %1654 = vmatmul.mubr.bf16.gmra.mrb[0].mxu0 %v841
  %v1655 = vpop.f32.mrb[0].mxu0
  %v1656 = vadd.f32 0.0, %v1655
  %v1657 = vpop.f32.mrb[0].mxu0
  %v1658 = vadd.f32 0.0, %v1657
  %v1659 = vpop.f32.mrb[0].mxu0
  %v1660 = vadd.f32 0.0, %v1659
  %v1661 = vpop.f32.mrb[0].mxu0
  %v1662 = vadd.f32 0.0, %v1661
  %1663 = vmatprep.mubr.bf16.mxu0 0
  %1664 = vmatmul.mubr.bf16.gmra.mrb[0].mxu0 %v844
  %v1665 = vpop.f32.mrb[0].mxu0
  %v1666 = vadd.f32 0.0, %v1665
  %v1667 = vpop.f32.mrb[0].mxu0
  %v1668 = vadd.f32 0.0, %v1667
  %v1669 = vpop.f32.mrb[0].mxu0
  %v1670 = vpop.f32.mrb[0].mxu0
  %1671 = vdwg.mxu0
  %v1672 = vadd.f32 %v1565, %v1636
  %v1673 = vadd.f32 %v1567, %v1638
  %v1674 = vadd.f32 %v1569, %v1640
  %v1675 = vadd.f32 %v1571, %v1642
  %v1676 = vadd.f32 %v1575, %v1646
  %v1677 = vadd.f32 %v1577, %v1648
  %v1678 = vadd.f32 %v1579, %v1650
  %v1679 = vadd.f32 %v1581, %v1652
  %v1680 = vadd.f32 %v1585, %v1656
  %v1681 = vadd.f32 %v1587, %v1658
  %v1682 = vadd.f32 %v1589, %v1660
  %v1683 = vadd.f32 %v1591, %v1662
  %v1684 = vadd.f32 %v1595, %v1666
  %v1685 = vadd.f32 %v1597, %v1668
  %1686 = vmatprep.subr.bf16.mxu0 %v630
  %1687 = vmatpush1.bf16.msra.mxu0 %v629
  %1688 = vmatprep.subr.bf16.mxu0 %v632
  %1689 = vmatpush1.bf16.msra.mxu0 %v631
  %1690 = vmatprep.subr.bf16.mxu0 %v634
  %1691 = vmatpush1.bf16.msra.mxu0 %v633
  %1692 = vmatprep.subr.bf16.mxu0 %v636
  %1693 = vmatpush1.bf16.msra.mxu0 %v635
  %1694 = vmatprep.subr.bf16.mxu0 %v638
  %1695 = vmatpush1.bf16.msra.mxu0 %v637
  %1696 = vmatprep.subr.bf16.mxu0 %v640
  %1697 = vmatpush1.bf16.msra.mxu0 %v639
  %1698 = vmatprep.subr.bf16.mxu0 0
  %1699 = vmatpush1.bf16.msra.mxu0 0
  %1700 = vmatprep.subr.bf16.mxu0 0
  %1701 = vmatpush1.bf16.msra.mxu0 0
  %1702 = vmatprep.subr.bf16.mxu0 0
  %1703 = vmatpush1.bf16.msra.mxu0 0
  %1704 = vmatprep.subr.bf16.mxu0 0
  %1705 = vmatpush1.bf16.msra.mxu0 0
  %1706 = vmatprep.subr.bf16.mxu0 0
  %1707 = vmatpush1.bf16.msra.mxu0 0
  %1708 = vmatprep.subr.bf16.mxu0 0
  %1709 = vmatpush1.bf16.msra.mxu0 0
  %1710 = vmatprep.subr.bf16.mxu0 0
  %1711 = vmatpush1.bf16.msra.mxu0 0
  %1712 = vmatprep.subr.bf16.mxu0 0
  %1713 = vmatpush1.bf16.msra.mxu0 0
  %1714 = vmatprep.subr.bf16.mxu0 0
  %1715 = vmatpush1.bf16.msra.mxu0 0
  %1716 = vmatprep.subr.bf16.mxu0 0
  %1717 = vmatpush1.bf16.msra.mxu0 0
  %1718 = vmatprep.mubr.bf16.mxu0 0
  %1719 = vmatmul.mubr.bf16.gmra.mrb[0].mxu0 %v1307
  %v1720 = vpop.f32.mrb[0].mxu0
  %v1721 = vadd.f32 0.0, %v1720
  %v1722 = vpop.f32.mrb[0].mxu0
  %v1723 = vadd.f32 0.0, %v1722
  %v1724 = vpop.f32.mrb[0].mxu0
  %v1725 = vadd.f32 0.0, %v1724
  %v1726 = vpop.f32.mrb[0].mxu0
  %v1727 = vadd.f32 0.0, %v1726
  %1728 = vmatprep.mubr.bf16.mxu0 0
  %1729 = vmatmul.mubr.bf16.gmra.mrb[0].mxu0 %v1310
  %v1730 = vpop.f32.mrb[0].mxu0
  %v1731 = vadd.f32 0.0, %v1730
  %v1732 = vpop.f32.mrb[0].mxu0
  %v1733 = vadd.f32 0.0, %v1732
  %v1734 = vpop.f32.mrb[0].mxu0
  %v1735 = vadd.f32 0.0, %v1734
  %v1736 = vpop.f32.mrb[0].mxu0
  %v1737 = vadd.f32 0.0, %v1736
  %1738 = vmatprep.mubr.bf16.mxu0 0
  %1739 = vmatmul.mubr.bf16.gmra.mrb[0].mxu0 %v1313
  %v1740 = vpop.f32.mrb[0].mxu0
  %v1741 = vadd.f32 0.0, %v1740
  %v1742 = vpop.f32.mrb[0].mxu0
  %v1743 = vadd.f32 0.0, %v1742
  %v1744 = vpop.f32.mrb[0].mxu0
  %v1745 = vadd.f32 0.0, %v1744
  %v1746 = vpop.f32.mrb[0].mxu0
  %v1747 = vadd.f32 0.0, %v1746
  %1748 = vmatprep.mubr.bf16.mxu0 0
  %1749 = vmatmul.mubr.bf16.gmra.mrb[0].mxu0 %v1316
  %v1750 = vpop.f32.mrb[0].mxu0
  %v1751 = vadd.f32 0.0, %v1750
  %v1752 = vpop.f32.mrb[0].mxu0
  %v1753 = vadd.f32 0.0, %v1752
  %v1754 = vpop.f32.mrb[0].mxu0
  %v1755 = vpop.f32.mrb[0].mxu0
  %1756 = vdwg.mxu0
  %v1757 = vadd.f32 %v1672, %v1721
  %v1758 = vadd.f32 %v1673, %v1723
  %v1759 = vadd.f32 %v1674, %v1725
  %v1760 = vadd.f32 %v1675, %v1727
  %v1761 = vadd.f32 %v1676, %v1731
  %v1762 = vadd.f32 %v1677, %v1733
  %v1763 = vadd.f32 %v1678, %v1735
  %v1764 = vadd.f32 %v1679, %v1737
  %v1765 = vadd.f32 %v1680, %v1741
  %v1766 = vadd.f32 %v1681, %v1743
  %v1767 = vadd.f32 %v1682, %v1745
  %v1768 = vadd.f32 %v1683, %v1747
  %v1769 = vadd.f32 %v1684, %v1751
  %v1770 = vadd.f32 %v1685, %v1753
  %v1771 = vld [vmem:[%s386 + $0x8] sm:$0xff]
  %v1772 = vld [vmem:[%s386 + $0x10] sm:$0xff]
  %v1773 = vld [vmem:[%s386 + $0x18] sm:$0xff]
  %v1774 = vld [vmem:[%s386 + $0x20] sm:$0xff]
  %v1775 = vld [vmem:[%s386 + $0x28] sm:$0xff]
  %v1776 = vld [vmem:[%s386 + $0x30] sm:$0xff]
  %v1777 = vld [vmem:[%s386 + $0x38] sm:$0xff]
  %v1778 = vpack.c.bf16 %v1772, %v1771
  %v1779 = vpack.c.bf16 %v1774, %v1773
  %v1780 = vpack.c.bf16 %v1776, %v1775
  %v1781 = vpack.c.bf16 %v1777, %v1777
  %v1783 = vsel %vm159, %v1778, 0
  %v1786 = vsel %vm159, %v1779, 0
  %v1789 = vsel %vm159, %v1780, 0
  %v1792 = vsel %vm159, %v1781, 0
  %1794 = vmatprep.subr.bf16.mxu0 %v811
  %1795 = vmatpush1.bf16.msra.mxu0 %v810
  %1796 = vmatprep.subr.bf16.mxu0 %v813
  %1797 = vmatpush1.bf16.msra.mxu0 %v812
  %1798 = vmatprep.subr.bf16.mxu0 %v815
  %1799 = vmatpush1.bf16.msra.mxu0 %v814
  %1800 = vmatprep.subr.bf16.mxu0 %v817
  %1801 = vmatpush1.bf16.msra.mxu0 %v816
  %1802 = vmatprep.subr.bf16.mxu0 %v819
  %1803 = vmatpush1.bf16.msra.mxu0 %v818
  %1804 = vmatprep.subr.bf16.mxu0 %v821
  %1805 = vmatpush1.bf16.msra.mxu0 %v820
  %1806 = vmatprep.subr.bf16.mxu0 0
  %1807 = vmatpush1.bf16.msra.mxu0 0
  %1808 = vmatprep.subr.bf16.mxu0 0
  %1809 = vmatpush1.bf16.msra.mxu0 0
  %1810 = vmatprep.subr.bf16.mxu0 0
  %1811 = vmatpush1.bf16.msra.mxu0 0
  %1812 = vmatprep.subr.bf16.mxu0 0
  %1813 = vmatpush1.bf16.msra.mxu0 0
  %1814 = vmatprep.subr.bf16.mxu0 0
  %1815 = vmatpush1.bf16.msra.mxu0 0
  %1816 = vmatprep.subr.bf16.mxu0 0
  %1817 = vmatpush1.bf16.msra.mxu0 0
  %1818 = vmatprep.subr.bf16.mxu0 0
  %1819 = vmatpush1.bf16.msra.mxu0 0
  %1820 = vmatprep.subr.bf16.mxu0 0
  %1821 = vmatpush1.bf16.msra.mxu0 0
  %1822 = vmatprep.subr.bf16.mxu0 0
  %1823 = vmatpush1.bf16.msra.mxu0 0
  %1824 = vmatprep.subr.bf16.mxu0 0
  %1825 = vmatpush1.bf16.msra.mxu0 0
  %1826 = vmatprep.mubr.bf16.mxu0 0
  %1827 = vmatmul.mubr.bf16.gmra.mrb[0].mxu0 %v1783
  %v1828 = vpop.f32.mrb[0].mxu0
  %v1829 = vadd.f32 0.0, %v1828
  %v1830 = vpop.f32.mrb[0].mxu0
  %v1831 = vadd.f32 0.0, %v1830
  %v1832 = vpop.f32.mrb[0].mxu0
  %v1833 = vadd.f32 0.0, %v1832
  %v1834 = vpop.f32.mrb[0].mxu0
  %v1835 = vadd.f32 0.0, %v1834
  %1836 = vmatprep.mubr.bf16.mxu0 0
  %1837 = vmatmul.mubr.bf16.gmra.mrb[0].mxu0 %v1786
  %v1838 = vpop.f32.mrb[0].mxu0
  %v1839 = vadd.f32 0.0, %v1838
  %v1840 = vpop.f32.mrb[0].mxu0
  %v1841 = vadd.f32 0.0, %v1840
  %v1842 = vpop.f32.mrb[0].mxu0
  %v1843 = vadd.f32 0.0, %v1842
  %v1844 = vpop.f32.mrb[0].mxu0
  %v1845 = vadd.f32 0.0, %v1844
  %1846 = vmatprep.mubr.bf16.mxu0 0
  %1847 = vmatmul.mubr.bf16.gmra.mrb[0].mxu0 %v1789
  %v1848 = vpop.f32.mrb[0].mxu0
  %v1849 = vadd.f32 0.0, %v1848
  %v1850 = vpop.f32.mrb[0].mxu0
  %v1851 = vadd.f32 0.0, %v1850
  %v1852 = vpop.f32.mrb[0].mxu0
  %v1853 = vadd.f32 0.0, %v1852
  %v1854 = vpop.f32.mrb[0].mxu0
  %v1855 = vadd.f32 0.0, %v1854
  %1856 = vmatprep.mubr.bf16.mxu0 0
  %1857 = vmatmul.mubr.bf16.gmra.mrb[0].mxu0 %v1792
  %v1858 = vpop.f32.mrb[0].mxu0
  %v1859 = vadd.f32 0.0, %v1858
  %v1860 = vpop.f32.mrb[0].mxu0
  %v1861 = vadd.f32 0.0, %v1860
  %v1862 = vpop.f32.mrb[0].mxu0
  %v1863 = vpop.f32.mrb[0].mxu0
  %1864 = vdwg.mxu0
  %v1865 = vadd.f32 %v1757, %v1829
  %v1866 = vadd.f32 %v1758, %v1831
  %v1867 = vadd.f32 %v1759, %v1833
  %v1868 = vadd.f32 %v1760, %v1835
  %v1869 = vadd.f32 %v1761, %v1839
  %v1870 = vadd.f32 %v1762, %v1841
  %v1871 = vadd.f32 %v1763, %v1843
  %v1872 = vadd.f32 %v1764, %v1845
  %v1873 = vadd.f32 %v1765, %v1849
  %v1874 = vadd.f32 %v1766, %v1851
  %v1875 = vadd.f32 %v1767, %v1853
  %v1876 = vadd.f32 %v1768, %v1855
  %v1877 = vadd.f32 %v1769, %v1859
  %v1878 = vadd.f32 %v1770, %v1861
  %v1879 = vmul.f32 %v1865, %v936
  %v1880 = vmul.f32 %v1866, %v940
  %v1881 = vmul.f32 %v1867, %v936
  %v1882 = vmul.f32 %v1868, %v940
  %v1883 = vmul.f32 %v1869, %v936
  %v1884 = vmul.f32 %v1870, %v940
  %v1885 = vmul.f32 %v1871, %v936
  %v1886 = vmul.f32 %v1872, %v940
  %v1887 = vmul.f32 %v1873, %v936
  %v1888 = vmul.f32 %v1874, %v940
  %v1889 = vmul.f32 %v1875, %v936
  %v1890 = vmul.f32 %v1876, %v940
  %v1891 = vmul.f32 %v1877, %v936
  %v1892 = vmul.f32 %v1878, %v940
  %v1893 = vadd.f32 %v1879, %v962
  %v1894 = vadd.f32 %v1880, %v966
  %v1895 = vadd.f32 %v1881, %v962
  %v1896 = vadd.f32 %v1882, %v966
  %v1897 = vadd.f32 %v1883, %v962
  %v1898 = vadd.f32 %v1884, %v966
  %v1899 = vadd.f32 %v1885, %v962
  %v1900 = vadd.f32 %v1886, %v966
  %v1901 = vadd.f32 %v1887, %v962
  %v1902 = vadd.f32 %v1888, %v966
  %v1903 = vadd.f32 %v1889, %v962
  %v1904 = vadd.f32 %v1890, %v966
  %v1905 = vadd.f32 %v1891, %v962
  %v1906 = vadd.f32 %v1892, %v966
  %1907 = vmatprep.subr.bf16.mxu0 %v136
  %1908 = vmatpush1.bf16.msra.mxu0 %v135
  %1909 = vmatprep.subr.bf16.mxu0 %v138
  %1910 = vmatpush1.bf16.msra.mxu0 %v137
  %1911 = vmatprep.subr.bf16.mxu0 %v140
  %1912 = vmatpush1.bf16.msra.mxu0 %v139
  %1913 = vmatprep.subr.bf16.mxu0 %v142
  %1914 = vmatpush1.bf16.msra.mxu0 %v141
  %1915 = vmatprep.subr.bf16.mxu0 %v144
  %1916 = vmatpush1.bf16.msra.mxu0 %v143
  %1917 = vmatprep.subr.bf16.mxu0 %v146
  %1918 = vmatpush1.bf16.msra.mxu0 %v145
  %1919 = vmatprep.subr.bf16.mxu0 0
  %1920 = vmatpush1.bf16.msra.mxu0 0
  %1921 = vmatprep.subr.bf16.mxu0 0
  %1922 = vmatpush1.bf16.msra.mxu0 0
  %1923 = vmatprep.subr.bf16.mxu0 0
  %1924 = vmatpush1.bf16.msra.mxu0 0
  %1925 = vmatprep.subr.bf16.mxu0 0
  %1926 = vmatpush1.bf16.msra.mxu0 0
  %1927 = vmatprep.subr.bf16.mxu0 0
  %1928 = vmatpush1.bf16.msra.mxu0 0
  %1929 = vmatprep.subr.bf16.mxu0 0
  %1930 = vmatpush1.bf16.msra.mxu0 0
  %1931 = vmatprep.subr.bf16.mxu0 0
  %1932 = vmatpush1.bf16.msra.mxu0 0
  %1933 = vmatprep.subr.bf16.mxu0 0
  %1934 = vmatpush1.bf16.msra.mxu0 0
  %1935 = vmatprep.subr.bf16.mxu0 0
  %1936 = vmatpush1.bf16.msra.mxu0 0
  %1937 = vmatprep.subr.bf16.mxu0 0
  %1938 = vmatpush1.bf16.msra.mxu0 0
  %1939 = vmatprep.mubr.bf16.mxu0 0
  %1940 = vmatmul.mubr.bf16.gmra.mrb[0].mxu0 %v835
  %v1941 = vpop.f32.mrb[0].mxu0
  %v1942 = vadd.f32 0.0, %v1941
  %v1943 = vpop.f32.mrb[0].mxu0
  %v1944 = vadd.f32 0.0, %v1943
  %v1945 = vpop.f32.mrb[0].mxu0
  %v1946 = vadd.f32 0.0, %v1945
  %v1947 = vpop.f32.mrb[0].mxu0
  %v1948 = vadd.f32 0.0, %v1947
  %1949 = vmatprep.mubr.bf16.mxu0 0
  %1950 = vmatmul.mubr.bf16.gmra.mrb[0].mxu0 %v838
  %v1951 = vpop.f32.mrb[0].mxu0
  %v1952 = vadd.f32 0.0, %v1951
  %v1953 = vpop.f32.mrb[0].mxu0
  %v1954 = vadd.f32 0.0, %v1953
  %v1955 = vpop.f32.mrb[0].mxu0
  %v1956 = vadd.f32 0.0, %v1955
  %v1957 = vpop.f32.mrb[0].mxu0
  %v1958 = vadd.f32 0.0, %v1957
  %1959 = vmatprep.mubr.bf16.mxu0 0
  %1960 = vmatmul.mubr.bf16.gmra.mrb[0].mxu0 %v841
  %v1961 = vpop.f32.mrb[0].mxu0
  %v1962 = vadd.f32 0.0, %v1961
  %v1963 = vpop.f32.mrb[0].mxu0
  %v1964 = vadd.f32 0.0, %v1963
  %v1965 = vpop.f32.mrb[0].mxu0
  %v1966 = vadd.f32 0.0, %v1965
  %v1967 = vpop.f32.mrb[0].mxu0
  %v1968 = vadd.f32 0.0, %v1967
  %1969 = vmatprep.mubr.bf16.mxu0 0
  %1970 = vmatmul.mubr.bf16.gmra.mrb[0].mxu0 %v844
  %v1971 = vpop.f32.mrb[0].mxu0
  %v1972 = vadd.f32 0.0, %v1971
  %v1973 = vpop.f32.mrb[0].mxu0
  %v1974 = vadd.f32 0.0, %v1973
  %v1975 = vpop.f32.mrb[0].mxu0
  %v1976 = vpop.f32.mrb[0].mxu0
  %1977 = vdwg.mxu0
  %1978 = vmatprep.subr.bf16.mxu0 %v280
  %1979 = vmatpush1.bf16.msra.mxu0 %v279
  %1980 = vmatprep.subr.bf16.mxu0 %v282
  %1981 = vmatpush1.bf16.msra.mxu0 %v281
  %1982 = vmatprep.subr.bf16.mxu0 %v284
  %1983 = vmatpush1.bf16.msra.mxu0 %v283
  %1984 = vmatprep.subr.bf16.mxu0 %v286
  %1985 = vmatpush1.bf16.msra.mxu0 %v285
  %1986 = vmatprep.subr.bf16.mxu0 %v288
  %1987 = vmatpush1.bf16.msra.mxu0 %v287
  %1988 = vmatprep.subr.bf16.mxu0 %v290
  %1989 = vmatpush1.bf16.msra.mxu0 %v289
  %1990 = vmatprep.subr.bf16.mxu0 0
  %1991 = vmatpush1.bf16.msra.mxu0 0
  %1992 = vmatprep.subr.bf16.mxu0 0
  %1993 = vmatpush1.bf16.msra.mxu0 0
  %1994 = vmatprep.subr.bf16.mxu0 0
  %1995 = vmatpush1.bf16.msra.mxu0 0
  %1996 = vmatprep.subr.bf16.mxu0 0
  %1997 = vmatpush1.bf16.msra.mxu0 0
  %1998 = vmatprep.subr.bf16.mxu0 0
  %1999 = vmatpush1.bf16.msra.mxu0 0
  %2000 = vmatprep.subr.bf16.mxu0 0
  %2001 = vmatpush1.bf16.msra.mxu0 0
  %2002 = vmatprep.subr.bf16.mxu0 0
  %2003 = vmatpush1.bf16.msra.mxu0 0
  %2004 = vmatprep.subr.bf16.mxu0 0
  %2005 = vmatpush1.bf16.msra.mxu0 0
  %2006 = vmatprep.subr.bf16.mxu0 0
  %2007 = vmatpush1.bf16.msra.mxu0 0
  %2008 = vmatprep.subr.bf16.mxu0 0
  %2009 = vmatpush1.bf16.msra.mxu0 0
  %2010 = vmatprep.mubr.bf16.mxu0 0
  %2011 = vmatmul.mubr.bf16.gmra.mrb[0].mxu0 %v654
  %v2012 = vpop.f32.mrb[0].mxu0
  %v2013 = vadd.f32 %v1942, %v2012
  %v2014 = vpop.f32.mrb[0].mxu0
  %v2015 = vadd.f32 %v1944, %v2014
  %v2016 = vpop.f32.mrb[0].mxu0
  %v2017 = vadd.f32 %v1946, %v2016
  %v2018 = vpop.f32.mrb[0].mxu0
  %v2019 = vadd.f32 %v1948, %v2018
  %2020 = vmatprep.mubr.bf16.mxu0 0
  %2021 = vmatmul.mubr.bf16.gmra.mrb[0].mxu0 %v657
  %v2022 = vpop.f32.mrb[0].mxu0
  %v2023 = vadd.f32 %v1952, %v2022
  %v2024 = vpop.f32.mrb[0].mxu0
  %v2025 = vadd.f32 %v1954, %v2024
  %v2026 = vpop.f32.mrb[0].mxu0
  %v2027 = vadd.f32 %v1956, %v2026
  %v2028 = vpop.f32.mrb[0].mxu0
  %v2029 = vadd.f32 %v1958, %v2028
  %2030 = vmatprep.mubr.bf16.mxu0 0
  %2031 = vmatmul.mubr.bf16.gmra.mrb[0].mxu0 %v660
  %v2032 = vpop.f32.mrb[0].mxu0
  %v2033 = vadd.f32 %v1962, %v2032
  %v2034 = vpop.f32.mrb[0].mxu0
  %v2035 = vadd.f32 %v1964, %v2034
  %v2036 = vpop.f32.mrb[0].mxu0
  %v2037 = vadd.f32 %v1966, %v2036
  %v2038 = vpop.f32.mrb[0].mxu0
  %v2039 = vadd.f32 %v1968, %v2038
  %2040 = vmatprep.mubr.bf16.mxu0 0
  %2041 = vmatmul.mubr.bf16.gmra.mrb[0].mxu0 %v663
  %v2042 = vpop.f32.mrb[0].mxu0
  %v2043 = vadd.f32 %v1972, %v2042
  %v2044 = vpop.f32.mrb[0].mxu0
  %v2045 = vadd.f32 %v1974, %v2044
  %v2046 = vpop.f32.mrb[0].mxu0
  %v2047 = vpop.f32.mrb[0].mxu0
  %2048 = vdwg.mxu0
  %2049 = vmatprep.subr.bf16.mxu0 %v448
  %2050 = vmatpush1.bf16.msra.mxu0 %v447
  %2051 = vmatprep.subr.bf16.mxu0 %v450
  %2052 = vmatpush1.bf16.msra.mxu0 %v449
  %2053 = vmatprep.subr.bf16.mxu0 %v452
  %2054 = vmatpush1.bf16.msra.mxu0 %v451
  %2055 = vmatprep.subr.bf16.mxu0 %v454
  %2056 = vmatpush1.bf16.msra.mxu0 %v453
  %2057 = vmatprep.subr.bf16.mxu0 %v456
  %2058 = vmatpush1.bf16.msra.mxu0 %v455
  %2059 = vmatprep.subr.bf16.mxu0 %v458
  %2060 = vmatpush1.bf16.msra.mxu0 %v457
  %2061 = vmatprep.subr.bf16.mxu0 0
  %2062 = vmatpush1.bf16.msra.mxu0 0
  %2063 = vmatprep.subr.bf16.mxu0 0
  %2064 = vmatpush1.bf16.msra.mxu0 0
  %2065 = vmatprep.subr.bf16.mxu0 0
  %2066 = vmatpush1.bf16.msra.mxu0 0
  %2067 = vmatprep.subr.bf16.mxu0 0
  %2068 = vmatpush1.bf16.msra.mxu0 0
  %2069 = vmatprep.subr.bf16.mxu0 0
  %2070 = vmatpush1.bf16.msra.mxu0 0
  %2071 = vmatprep.subr.bf16.mxu0 0
  %2072 = vmatpush1.bf16.msra.mxu0 0
  %2073 = vmatprep.subr.bf16.mxu0 0
  %2074 = vmatpush1.bf16.msra.mxu0 0
  %2075 = vmatprep.subr.bf16.mxu0 0
  %2076 = vmatpush1.bf16.msra.mxu0 0
  %2077 = vmatprep.subr.bf16.mxu0 0
  %2078 = vmatpush1.bf16.msra.mxu0 0
  %2079 = vmatprep.subr.bf16.mxu0 0
  %2080 = vmatpush1.bf16.msra.mxu0 0
  %2081 = vmatprep.mubr.bf16.mxu0 0
  %2082 = vmatmul.mubr.bf16.gmra.mrb[0].mxu0 %v1307
  %v2083 = vpop.f32.mrb[0].mxu0
  %v2084 = vadd.f32 0.0, %v2083
  %v2085 = vpop.f32.mrb[0].mxu0
  %v2086 = vadd.f32 0.0, %v2085
  %v2087 = vpop.f32.mrb[0].mxu0
  %v2088 = vadd.f32 0.0, %v2087
  %v2089 = vpop.f32.mrb[0].mxu0
  %v2090 = vadd.f32 0.0, %v2089
  %2091 = vmatprep.mubr.bf16.mxu0 0
  %2092 = vmatmul.mubr.bf16.gmra.mrb[0].mxu0 %v1310
  %v2093 = vpop.f32.mrb[0].mxu0
  %v2094 = vadd.f32 0.0, %v2093
  %v2095 = vpop.f32.mrb[0].mxu0
  %v2096 = vadd.f32 0.0, %v2095
  %v2097 = vpop.f32.mrb[0].mxu0
  %v2098 = vadd.f32 0.0, %v2097
  %v2099 = vpop.f32.mrb[0].mxu0
  %v2100 = vadd.f32 0.0, %v2099
  %2101 = vmatprep.mubr.bf16.mxu0 0
  %2102 = vmatmul.mubr.bf16.gmra.mrb[0].mxu0 %v1313
  %v2103 = vpop.f32.mrb[0].mxu0
  %v2104 = vadd.f32 0.0, %v2103
  %v2105 = vpop.f32.mrb[0].mxu0
  %v2106 = vadd.f32 0.0, %v2105
  %v2107 = vpop.f32.mrb[0].mxu0
  %v2108 = vadd.f32 0.0, %v2107
  %v2109 = vpop.f32.mrb[0].mxu0
  %v2110 = vadd.f32 0.0, %v2109
  %2111 = vmatprep.mubr.bf16.mxu0 0
  %2112 = vmatmul.mubr.bf16.gmra.mrb[0].mxu0 %v1316
  %v2113 = vpop.f32.mrb[0].mxu0
  %v2114 = vadd.f32 0.0, %v2113
  %v2115 = vpop.f32.mrb[0].mxu0
  %v2116 = vadd.f32 0.0, %v2115
  %v2117 = vpop.f32.mrb[0].mxu0
  %v2118 = vpop.f32.mrb[0].mxu0
  %2119 = vdwg.mxu0
  %v2120 = vadd.f32 %v2013, %v2084
  %v2121 = vadd.f32 %v2015, %v2086
  %v2122 = vadd.f32 %v2017, %v2088
  %v2123 = vadd.f32 %v2019, %v2090
  %v2124 = vadd.f32 %v2023, %v2094
  %v2125 = vadd.f32 %v2025, %v2096
  %v2126 = vadd.f32 %v2027, %v2098
  %v2127 = vadd.f32 %v2029, %v2100
  %v2128 = vadd.f32 %v2033, %v2104
  %v2129 = vadd.f32 %v2035, %v2106
  %v2130 = vadd.f32 %v2037, %v2108
  %v2131 = vadd.f32 %v2039, %v2110
  %v2132 = vadd.f32 %v2043, %v2114
  %v2133 = vadd.f32 %v2045, %v2116
  %2134 = vmatprep.subr.bf16.mxu0 %v630
  %2135 = vmatpush1.bf16.msra.mxu0 %v629
  %2136 = vmatprep.subr.bf16.mxu0 %v632
  %2137 = vmatpush1.bf16.msra.mxu0 %v631
  %2138 = vmatprep.subr.bf16.mxu0 %v634
  %2139 = vmatpush1.bf16.msra.mxu0 %v633
  %2140 = vmatprep.subr.bf16.mxu0 %v636
  %2141 = vmatpush1.bf16.msra.mxu0 %v635
  %2142 = vmatprep.subr.bf16.mxu0 %v638
  %2143 = vmatpush1.bf16.msra.mxu0 %v637
  %2144 = vmatprep.subr.bf16.mxu0 %v640
  %2145 = vmatpush1.bf16.msra.mxu0 %v639
  %2146 = vmatprep.subr.bf16.mxu0 0
  %2147 = vmatpush1.bf16.msra.mxu0 0
  %2148 = vmatprep.subr.bf16.mxu0 0
  %2149 = vmatpush1.bf16.msra.mxu0 0
  %2150 = vmatprep.subr.bf16.mxu0 0
  %2151 = vmatpush1.bf16.msra.mxu0 0
  %2152 = vmatprep.subr.bf16.mxu0 0
  %2153 = vmatpush1.bf16.msra.mxu0 0
  %2154 = vmatprep.subr.bf16.mxu0 0
  %2155 = vmatpush1.bf16.msra.mxu0 0
  %2156 = vmatprep.subr.bf16.mxu0 0
  %2157 = vmatpush1.bf16.msra.mxu0 0
  %2158 = vmatprep.subr.bf16.mxu0 0
  %2159 = vmatpush1.bf16.msra.mxu0 0
  %2160 = vmatprep.subr.bf16.mxu0 0
  %2161 = vmatpush1.bf16.msra.mxu0 0
  %2162 = vmatprep.subr.bf16.mxu0 0
  %2163 = vmatpush1.bf16.msra.mxu0 0
  %2164 = vmatprep.subr.bf16.mxu0 0
  %2165 = vmatpush1.bf16.msra.mxu0 0
  %2166 = vmatprep.mubr.bf16.mxu0 0
  %2167 = vmatmul.mubr.bf16.gmra.mrb[0].mxu0 %v1783
  %v2168 = vpop.f32.mrb[0].mxu0
  %v2169 = vadd.f32 0.0, %v2168
  %v2170 = vpop.f32.mrb[0].mxu0
  %v2171 = vadd.f32 0.0, %v2170
  %v2172 = vpop.f32.mrb[0].mxu0
  %v2173 = vadd.f32 0.0, %v2172
  %v2174 = vpop.f32.mrb[0].mxu0
  %v2175 = vadd.f32 0.0, %v2174
  %2176 = vmatprep.mubr.bf16.mxu0 0
  %2177 = vmatmul.mubr.bf16.gmra.mrb[0].mxu0 %v1786
  %v2178 = vpop.f32.mrb[0].mxu0
  %v2179 = vadd.f32 0.0, %v2178
  %v2180 = vpop.f32.mrb[0].mxu0
  %v2181 = vadd.f32 0.0, %v2180
  %v2182 = vpop.f32.mrb[0].mxu0
  %v2183 = vadd.f32 0.0, %v2182
  %v2184 = vpop.f32.mrb[0].mxu0
  %v2185 = vadd.f32 0.0, %v2184
  %2186 = vmatprep.mubr.bf16.mxu0 0
  %2187 = vmatmul.mubr.bf16.gmra.mrb[0].mxu0 %v1789
  %v2188 = vpop.f32.mrb[0].mxu0
  %v2189 = vadd.f32 0.0, %v2188
  %v2190 = vpop.f32.mrb[0].mxu0
  %v2191 = vadd.f32 0.0, %v2190
  %v2192 = vpop.f32.mrb[0].mxu0
  %v2193 = vadd.f32 0.0, %v2192
  %v2194 = vpop.f32.mrb[0].mxu0
  %v2195 = vadd.f32 0.0, %v2194
  %2196 = vmatprep.mubr.bf16.mxu0 0
  %2197 = vmatmul.mubr.bf16.gmra.mrb[0].mxu0 %v1792
  %v2198 = vpop.f32.mrb[0].mxu0
  %v2199 = vadd.f32 0.0, %v2198
  %v2200 = vpop.f32.mrb[0].mxu0
  %v2201 = vadd.f32 0.0, %v2200
  %v2202 = vpop.f32.mrb[0].mxu0
  %v2203 = vpop.f32.mrb[0].mxu0
  %2204 = vdwg.mxu0
  %v2205 = vadd.f32 %v2120, %v2169
  %v2206 = vadd.f32 %v2121, %v2171
  %v2207 = vadd.f32 %v2122, %v2173
  %v2208 = vadd.f32 %v2123, %v2175
  %v2209 = vadd.f32 %v2124, %v2179
  %v2210 = vadd.f32 %v2125, %v2181
  %v2211 = vadd.f32 %v2126, %v2183
  %v2212 = vadd.f32 %v2127, %v2185
  %v2213 = vadd.f32 %v2128, %v2189
  %v2214 = vadd.f32 %v2129, %v2191
  %v2215 = vadd.f32 %v2130, %v2193
  %v2216 = vadd.f32 %v2131, %v2195
  %v2217 = vadd.f32 %v2132, %v2199
  %v2218 = vadd.f32 %v2133, %v2201
  %v2219 = vld [vmem:[%s568 + $0x8] sm:$0xff]
  %v2220 = vld [vmem:[%s568 + $0x10] sm:$0xff]
  %v2221 = vld [vmem:[%s568 + $0x18] sm:$0xff]
  %v2222 = vld [vmem:[%s568 + $0x20] sm:$0xff]
  %v2223 = vld [vmem:[%s568 + $0x28] sm:$0xff]
  %v2224 = vld [vmem:[%s568 + $0x30] sm:$0xff]
  %v2225 = vld [vmem:[%s568 + $0x38] sm:$0xff]
  %v2226 = vpack.c.bf16 %v2220, %v2219
  %v2227 = vpack.c.bf16 %v2222, %v2221
  %v2228 = vpack.c.bf16 %v2224, %v2223
  %v2229 = vpack.c.bf16 %v2225, %v2225
  %v2231 = vsel %vm159, %v2226, 0
  %v2234 = vsel %vm159, %v2227, 0
  %v2237 = vsel %vm159, %v2228, 0
  %v2240 = vsel %vm159, %v2229, 0
  %2242 = vmatprep.subr.bf16.mxu0 %v811
  %2243 = vmatpush1.bf16.msra.mxu0 %v810
  %2244 = vmatprep.subr.bf16.mxu0 %v813
  %2245 = vmatpush1.bf16.msra.mxu0 %v812
  %2246 = vmatprep.subr.bf16.mxu0 %v815
  %2247 = vmatpush1.bf16.msra.mxu0 %v814
  %2248 = vmatprep.subr.bf16.mxu0 %v817
  %2249 = vmatpush1.bf16.msra.mxu0 %v816
  %2250 = vmatprep.subr.bf16.mxu0 %v819
  %2251 = vmatpush1.bf16.msra.mxu0 %v818
  %2252 = vmatprep.subr.bf16.mxu0 %v821
  %2253 = vmatpush1.bf16.msra.mxu0 %v820
  %2254 = vmatprep.subr.bf16.mxu0 0
  %2255 = vmatpush1.bf16.msra.mxu0 0
  %2256 = vmatprep.subr.bf16.mxu0 0
  %2257 = vmatpush1.bf16.msra.mxu0 0
  %2258 = vmatprep.subr.bf16.mxu0 0
  %2259 = vmatpush1.bf16.msra.mxu0 0
  %2260 = vmatprep.subr.bf16.mxu0 0
  %2261 = vmatpush1.bf16.msra.mxu0 0
  %2262 = vmatprep.subr.bf16.mxu0 0
  %2263 = vmatpush1.bf16.msra.mxu0 0
  %2264 = vmatprep.subr.bf16.mxu0 0
  %2265 = vmatpush1.bf16.msra.mxu0 0
  %2266 = vmatprep.subr.bf16.mxu0 0
  %2267 = vmatpush1.bf16.msra.mxu0 0
  %2268 = vmatprep.subr.bf16.mxu0 0
  %2269 = vmatpush1.bf16.msra.mxu0 0
  %2270 = vmatprep.subr.bf16.mxu0 0
  %2271 = vmatpush1.bf16.msra.mxu0 0
  %2272 = vmatprep.subr.bf16.mxu0 0
  %2273 = vmatpush1.bf16.msra.mxu0 0
  %2274 = vmatprep.mubr.bf16.mxu0 0
  %2275 = vmatmul.mubr.bf16.gmra.mrb[0].mxu0 %v2231
  %v2276 = vpop.f32.mrb[0].mxu0
  %v2277 = vadd.f32 0.0, %v2276
  %v2278 = vpop.f32.mrb[0].mxu0
  %v2279 = vadd.f32 0.0, %v2278
  %v2280 = vpop.f32.mrb[0].mxu0
  %v2281 = vadd.f32 0.0, %v2280
  %v2282 = vpop.f32.mrb[0].mxu0
  %v2283 = vadd.f32 0.0, %v2282
  %2284 = vmatprep.mubr.bf16.mxu0 0
  %2285 = vmatmul.mubr.bf16.gmra.mrb[0].mxu0 %v2234
  %v2286 = vpop.f32.mrb[0].mxu0
  %v2287 = vadd.f32 0.0, %v2286
  %v2288 = vpop.f32.mrb[0].mxu0
  %v2289 = vadd.f32 0.0, %v2288
  %v2290 = vpop.f32.mrb[0].mxu0
  %v2291 = vadd.f32 0.0, %v2290
  %v2292 = vpop.f32.mrb[0].mxu0
  %v2293 = vadd.f32 0.0, %v2292
  %2294 = vmatprep.mubr.bf16.mxu0 0
  %2295 = vmatmul.mubr.bf16.gmra.mrb[0].mxu0 %v2237
  %v2296 = vpop.f32.mrb[0].mxu0
  %v2297 = vadd.f32 0.0, %v2296
  %v2298 = vpop.f32.mrb[0].mxu0
  %v2299 = vadd.f32 0.0, %v2298
  %v2300 = vpop.f32.mrb[0].mxu0
  %v2301 = vadd.f32 0.0, %v2300
  %v2302 = vpop.f32.mrb[0].mxu0
  %v2303 = vadd.f32 0.0, %v2302
  %2304 = vmatprep.mubr.bf16.mxu0 0
  %2305 = vmatmul.mubr.bf16.gmra.mrb[0].mxu0 %v2240
  %v2306 = vpop.f32.mrb[0].mxu0
  %v2307 = vadd.f32 0.0, %v2306
  %v2308 = vpop.f32.mrb[0].mxu0
  %v2309 = vadd.f32 0.0, %v2308
  %v2310 = vpop.f32.mrb[0].mxu0
  %v2311 = vpop.f32.mrb[0].mxu0
  %2312 = vdwg.mxu0
  %v2313 = vadd.f32 %v2205, %v2277
  %v2314 = vadd.f32 %v2206, %v2279
  %v2315 = vadd.f32 %v2207, %v2281
  %v2316 = vadd.f32 %v2208, %v2283
  %v2317 = vadd.f32 %v2209, %v2287
  %v2318 = vadd.f32 %v2210, %v2289
  %v2319 = vadd.f32 %v2211, %v2291
  %v2320 = vadd.f32 %v2212, %v2293
  %v2321 = vadd.f32 %v2213, %v2297
  %v2322 = vadd.f32 %v2214, %v2299
  %v2323 = vadd.f32 %v2215, %v2301
  %v2324 = vadd.f32 %v2216, %v2303
  %v2325 = vadd.f32 %v2217, %v2307
  %v2326 = vadd.f32 %v2218, %v2309
  %v2327 = vmul.f32 %v2313, %v936
  %v2328 = vmul.f32 %v2314, %v940
  %v2329 = vmul.f32 %v2315, %v936
  %v2330 = vmul.f32 %v2316, %v940
  %v2331 = vmul.f32 %v2317, %v936
  %v2332 = vmul.f32 %v2318, %v940
  %v2333 = vmul.f32 %v2319, %v936
  %v2334 = vmul.f32 %v2320, %v940
  %v2335 = vmul.f32 %v2321, %v936
  %v2336 = vmul.f32 %v2322, %v940
  %v2337 = vmul.f32 %v2323, %v936
  %v2338 = vmul.f32 %v2324, %v940
  %v2339 = vmul.f32 %v2325, %v936
  %v2340 = vmul.f32 %v2326, %v940
  %v2341 = vadd.f32 %v2327, %v962
  %v2342 = vadd.f32 %v2328, %v966
  %v2343 = vadd.f32 %v2329, %v962
  %v2344 = vadd.f32 %v2330, %v966
  %v2345 = vadd.f32 %v2331, %v962
  %v2346 = vadd.f32 %v2332, %v966
  %v2347 = vadd.f32 %v2333, %v962
  %v2348 = vadd.f32 %v2334, %v966
  %v2349 = vadd.f32 %v2335, %v962
  %v2350 = vadd.f32 %v2336, %v966
  %v2351 = vadd.f32 %v2337, %v962
  %v2352 = vadd.f32 %v2338, %v966
  %v2353 = vadd.f32 %v2339, %v962
  %v2354 = vadd.f32 %v2340, %v966
  %v2355 = vmax.f32 %v1893, %v2341
  %v2356 = vmax.f32 %v1894, %v2342
  %v2357 = vmax.f32 %v1895, %v2343
  %v2358 = vmax.f32 %v1896, %v2344
  %v2359 = vmax.f32 %v1897, %v2345
  %v2360 = vmax.f32 %v1898, %v2346
  %v2361 = vmax.f32 %v1899, %v2347
  %v2362 = vmax.f32 %v1900, %v2348
  %v2363 = vmax.f32 %v1901, %v2349
  %v2364 = vmax.f32 %v1902, %v2350
  %v2365 = vmax.f32 %v1903, %v2351
  %v2366 = vmax.f32 %v1904, %v2352
  %v2367 = vmax.f32 %v1905, %v2353
  %v2368 = vmax.f32 %v1906, %v2354
  %v2369 = vmax.f32 %v2355, %v2356
  %v2370 = vmax.f32 %v2357, %v2358
  %v2371 = vmax.f32 %v2359, %v2360
  %v2372 = vmax.f32 %v2361, %v2362
  %v2373 = vmax.f32 %v2363, %v2364
  %v2374 = vmax.f32 %v2365, %v2366
  %v2375 = vmax.f32 %v2367, %v2368
  %v2376 = vmax.f32 %v2369, 0.0
  %v2377 = vmax.f32 %v2370, 0.0
  %v2378 = vmax.f32 %v2371, 0.0
  %v2379 = vmax.f32 %v2372, 0.0
  %v2380 = vmax.f32 %v2373, 0.0
  %v2381 = vmax.f32 %v2374, 0.0
  %v2382 = vmax.f32 %v2375, 0.0
  %v2383 = vpack.c.bf16 %v1453, %v1452
  %v2384 = vpack.c.bf16 %v1455, %v1454
  %v2385 = vpack.c.bf16 %v1456, %v1456
  %v2386 = vld [vmem:[%s2] sm:$0xff]
  %v2387 = vld [vmem:[%s2 + $0x8] sm:$0xff]
  %v2388 = vld [vmem:[%s2 + $0x10] sm:$0xff]
  %v2389 = vld [vmem:[%s2 + $0x18] sm:$0xff]
  %v2390 = vld [vmem:[%s2 + $0x20] sm:$0xff]
  %v2391 = vld [vmem:[%s2 + $0x28] sm:$0xff]
  %v2392 = vld [vmem:[%s2 + $0x30] sm:$0xff]
  %v2393 = vld [vmem:[%s2 + $0x38] sm:$0xff]
  %v2394 = vld [vmem:[%s2 + $0x40] sm:$0xff]
  %v2395 = vld [vmem:[%s2 + $0x48] sm:$0xff]
  %v2396 = vld [vmem:[%s2 + $0x50] sm:$0xff]
  %v2397 = vld [vmem:[%s2 + $0x58] sm:$0xff]
  %v2398 = vld [vmem:[%s2 + $0x60] sm:$0xff]
  %v2399 = vld [vmem:[%s2 + $0x68] sm:$0xff]
  %v2400 = vld [vmem:[%s2 + $0x70] sm:$0xff]
  %v2401 = vld [vmem:[%s2 + $0x78] sm:$0xff]
  %v2402 = vpack.c.bf16 %v2377, %v2376
  %v2403 = vpack.c.bf16 %v2379, %v2378
  %v2404 = vpack.c.bf16 %v2380, %v2380
  %s2405 = scalar_lea.vmem %s2, 128
  %v2406 = vld [vmem:[%s2405] sm:$0xff]
  %v2407 = vld [vmem:[%s2405 + $0x8] sm:$0xff]
  %v2408 = vld [vmem:[%s2405 + $0x10] sm:$0xff]
  %v2409 = vld [vmem:[%s2405 + $0x18] sm:$0xff]
  %v2410 = vld [vmem:[%s2405 + $0x20] sm:$0xff]
  %v2411 = vld [vmem:[%s2405 + $0x28] sm:$0xff]
  %v2412 = vld [vmem:[%s2405 + $0x30] sm:$0xff]
  %v2413 = vld [vmem:[%s2405 + $0x38] sm:$0xff]
  %v2414 = vld [vmem:[%s2405 + $0x40] sm:$0xff]
  %v2415 = vld [vmem:[%s2405 + $0x48] sm:$0xff]
  %v2416 = vld [vmem:[%s2405 + $0x50] sm:$0xff]
  %v2417 = vld [vmem:[%s2405 + $0x58] sm:$0xff]
  %v2418 = vld [vmem:[%s2405 + $0x60] sm:$0xff]
  %v2419 = vld [vmem:[%s2405 + $0x68] sm:$0xff]
  %v2420 = vld [vmem:[%s2405 + $0x70] sm:$0xff]
  %v2421 = vld [vmem:[%s2405 + $0x78] sm:$0xff]
  %v2438 = vunpack.c.l.b16 %v2406
  %v2439 = vunpack.c.h.b16 %v2406
  %v2440 = vunpack.c.l.b16 %v2407
  %v2441 = vunpack.c.h.b16 %v2407
  %v2442 = vunpack.c.l.b16 %v2408
  %v2443 = vunpack.c.h.b16 %v2408
  %v2444 = vunpack.c.l.b16 %v2409
  %v2445 = vunpack.c.h.b16 %v2409
  %v2446 = vunpack.c.l.b16 %v2410
  %v2447 = vunpack.c.h.b16 %v2410
  %v2448 = vunpack.c.l.b16 %v2411
  %v2449 = vunpack.c.h.b16 %v2411
  %v2450 = vunpack.c.l.b16 %v2412
  %v2451 = vunpack.c.h.b16 %v2412
  %v2452 = vunpack.c.l.b16 %v2413
  %v2453 = vunpack.c.h.b16 %v2413
  %v2454 = vunpack.c.l.b16 %v2414
  %v2455 = vunpack.c.h.b16 %v2414
  %v2456 = vunpack.c.l.b16 %v2415
  %v2457 = vunpack.c.h.b16 %v2415
  %v2458 = vunpack.c.l.b16 %v2416
  %v2459 = vunpack.c.h.b16 %v2416
  %v2460 = vunpack.c.l.b16 %v2417
  %v2461 = vunpack.c.h.b16 %v2417
  %v2462 = vunpack.c.l.b16 %v2418
  %v2463 = vunpack.c.h.b16 %v2418
  %v2464 = vunpack.c.l.b16 %v2419
  %v2465 = vunpack.c.h.b16 %v2419
  %v2466 = vunpack.c.l.b16 %v2420
  %v2467 = vunpack.c.h.b16 %v2420
  %v2468 = vunpack.c.l.b16 %v2421
  %v2469 = vunpack.c.h.b16 %v2421
  %v2470 = vpack.c.b16 %v2440, %v2438
  %v2471 = vpack.c.b16 %v2441, %v2439
  %v2472 = vpack.c.b16 %v2444, %v2442
  %v2473 = vpack.c.b16 %v2445, %v2443
  %v2474 = vpack.c.b16 %v2448, %v2446
  %v2475 = vpack.c.b16 %v2449, %v2447
  %v2476 = vpack.c.b16 %v2452, %v2450
  %v2477 = vpack.c.b16 %v2453, %v2451
  %v2478 = vpack.c.b16 %v2456, %v2454
  %v2479 = vpack.c.b16 %v2457, %v2455
  %v2480 = vpack.c.b16 %v2460, %v2458
  %v2481 = vpack.c.b16 %v2461, %v2459
  %v2482 = vpack.c.b16 %v2464, %v2462
  %v2483 = vpack.c.b16 %v2465, %v2463
  %v2484 = vpack.c.b16 %v2468, %v2466
  %v2485 = vpack.c.b16 %v2469, %v2467
  %2502 = vmatprep.subr.bf16.mxu0 %v2471
  %2503 = vmatpush1.bf16.msra.mxu0 %v2470
  %2504 = vmatprep.subr.bf16.mxu0 %v2473
  %2505 = vmatpush1.bf16.msra.mxu0 %v2472
  %2506 = vmatprep.subr.bf16.mxu0 %v2475
  %2507 = vmatpush1.bf16.msra.mxu0 %v2474
  %2508 = vmatprep.subr.bf16.mxu0 %v2477
  %2509 = vmatpush1.bf16.msra.mxu0 %v2476
  %2510 = vmatprep.subr.bf16.mxu0 %v2479
  %2511 = vmatpush1.bf16.msra.mxu0 %v2478
  %2512 = vmatprep.subr.bf16.mxu0 %v2481
  %2513 = vmatpush1.bf16.msra.mxu0 %v2480
  %2514 = vmatprep.subr.bf16.mxu0 %v2483
  %2515 = vmatpush1.bf16.msra.mxu0 %v2482
  %2516 = vmatprep.subr.bf16.mxu0 %v2485
  %2517 = vmatpush1.bf16.msra.mxu0 %v2484
  %2518 = vmatprep.subr.bf16.mxu0 0
  %2519 = vmatpush1.bf16.msra.mxu0 0
  %2520 = vmatprep.subr.bf16.mxu0 0
  %2521 = vmatpush1.bf16.msra.mxu0 0
  %2522 = vmatprep.subr.bf16.mxu0 0
  %2523 = vmatpush1.bf16.msra.mxu0 0
  %2524 = vmatprep.subr.bf16.mxu0 0
  %2525 = vmatpush1.bf16.msra.mxu0 0
  %2526 = vmatprep.subr.bf16.mxu0 0
  %2527 = vmatpush1.bf16.msra.mxu0 0
  %2528 = vmatprep.subr.bf16.mxu0 0
  %2529 = vmatpush1.bf16.msra.mxu0 0
  %2530 = vmatprep.subr.bf16.mxu0 0
  %2531 = vmatpush1.bf16.msra.mxu0 0
  %2532 = vmatprep.subr.bf16.mxu0 0
  %2533 = vmatpush1.bf16.msra.mxu0 0
  %2534 = vmatprep.mubr.bf16.mxu0 0
  %2535 = vmatmul.mubr.bf16.gmra.mrb[0].mxu0 %v2402
  %v2536 = vpop.f32.mrb[0].mxu0
  %v2537 = vadd.f32 0.0, %v2536
  %v2538 = vpop.f32.mrb[0].mxu0
  %v2539 = vadd.f32 0.0, %v2538
  %v2540 = vpop.f32.mrb[0].mxu0
  %v2541 = vadd.f32 0.0, %v2540
  %v2542 = vpop.f32.mrb[0].mxu0
  %v2543 = vadd.f32 0.0, %v2542
  %2544 = vmatprep.mubr.bf16.mxu0 0
  %2545 = vmatmul.mubr.bf16.gmra.mrb[0].mxu0 %v2403
  %v2546 = vpop.f32.mrb[0].mxu0
  %v2547 = vadd.f32 0.0, %v2546
  %v2548 = vpop.f32.mrb[0].mxu0
  %v2549 = vadd.f32 0.0, %v2548
  %v2550 = vpop.f32.mrb[0].mxu0
  %v2551 = vadd.f32 0.0, %v2550
  %v2552 = vpop.f32.mrb[0].mxu0
  %v2553 = vadd.f32 0.0, %v2552
  %2554 = vmatprep.mubr.bf16.mxu0 0
  %2555 = vmatmul.mubr.bf16.gmra.mrb[0].mxu0 %v2404
  %v2556 = vpop.f32.mrb[0].mxu0
  %v2557 = vadd.f32 0.0, %v2556
  %v2558 = vpop.f32.mrb[0].mxu0
  %v2559 = vadd.f32 0.0, %v2558
  %v2560 = vpop.f32.mrb[0].mxu0
  %v2561 = vpop.f32.mrb[0].mxu0
  %2562 = vdwg.mxu0
  %v2579 = vunpack.c.l.b16 %v2386
  %v2580 = vunpack.c.h.b16 %v2386
  %v2581 = vunpack.c.l.b16 %v2387
  %v2582 = vunpack.c.h.b16 %v2387
  %v2583 = vunpack.c.l.b16 %v2388
  %v2584 = vunpack.c.h.b16 %v2388
  %v2585 = vunpack.c.l.b16 %v2389
  %v2586 = vunpack.c.h.b16 %v2389
  %v2587 = vunpack.c.l.b16 %v2390
  %v2588 = vunpack.c.h.b16 %v2390
  %v2589 = vunpack.c.l.b16 %v2391
  %v2590 = vunpack.c.h.b16 %v2391
  %v2591 = vunpack.c.l.b16 %v2392
  %v2592 = vunpack.c.h.b16 %v2392
  %v2593 = vunpack.c.l.b16 %v2393
  %v2594 = vunpack.c.h.b16 %v2393
  %v2595 = vunpack.c.l.b16 %v2394
  %v2596 = vunpack.c.h.b16 %v2394
  %v2597 = vunpack.c.l.b16 %v2395
  %v2598 = vunpack.c.h.b16 %v2395
  %v2599 = vunpack.c.l.b16 %v2396
  %v2600 = vunpack.c.h.b16 %v2396
  %v2601 = vunpack.c.l.b16 %v2397
  %v2602 = vunpack.c.h.b16 %v2397
  %v2603 = vunpack.c.l.b16 %v2398
  %v2604 = vunpack.c.h.b16 %v2398
  %v2605 = vunpack.c.l.b16 %v2399
  %v2606 = vunpack.c.h.b16 %v2399
  %v2607 = vunpack.c.l.b16 %v2400
  %v2608 = vunpack.c.h.b16 %v2400
  %v2609 = vunpack.c.l.b16 %v2401
  %v2610 = vunpack.c.h.b16 %v2401
  %v2611 = vpack.c.b16 %v2581, %v2579
  %v2612 = vpack.c.b16 %v2582, %v2580
  %v2613 = vpack.c.b16 %v2585, %v2583
  %v2614 = vpack.c.b16 %v2586, %v2584
  %v2615 = vpack.c.b16 %v2589, %v2587
  %v2616 = vpack.c.b16 %v2590, %v2588
  %v2617 = vpack.c.b16 %v2593, %v2591
  %v2618 = vpack.c.b16 %v2594, %v2592
  %v2619 = vpack.c.b16 %v2597, %v2595
  %v2620 = vpack.c.b16 %v2598, %v2596
  %v2621 = vpack.c.b16 %v2601, %v2599
  %v2622 = vpack.c.b16 %v2602, %v2600
  %v2623 = vpack.c.b16 %v2605, %v2603
  %v2624 = vpack.c.b16 %v2606, %v2604
  %v2625 = vpack.c.b16 %v2609, %v2607
  %v2626 = vpack.c.b16 %v2610, %v2608
  %2643 = vmatprep.subr.bf16.mxu0 %v2612
  %2644 = vmatpush1.bf16.msra.mxu0 %v2611
  %2645 = vmatprep.subr.bf16.mxu0 %v2614
  %2646 = vmatpush1.bf16.msra.mxu0 %v2613
  %2647 = vmatprep.subr.bf16.mxu0 %v2616
  %2648 = vmatpush1.bf16.msra.mxu0 %v2615
  %2649 = vmatprep.subr.bf16.mxu0 %v2618
  %2650 = vmatpush1.bf16.msra.mxu0 %v2617
  %2651 = vmatprep.subr.bf16.mxu0 %v2620
  %2652 = vmatpush1.bf16.msra.mxu0 %v2619
  %2653 = vmatprep.subr.bf16.mxu0 %v2622
  %2654 = vmatpush1.bf16.msra.mxu0 %v2621
  %2655 = vmatprep.subr.bf16.mxu0 %v2624
  %2656 = vmatpush1.bf16.msra.mxu0 %v2623
  %2657 = vmatprep.subr.bf16.mxu0 %v2626
  %2658 = vmatpush1.bf16.msra.mxu0 %v2625
  %2659 = vmatprep.subr.bf16.mxu0 0
  %2660 = vmatpush1.bf16.msra.mxu0 0
  %2661 = vmatprep.subr.bf16.mxu0 0
  %2662 = vmatpush1.bf16.msra.mxu0 0
  %2663 = vmatprep.subr.bf16.mxu0 0
  %2664 = vmatpush1.bf16.msra.mxu0 0
  %2665 = vmatprep.subr.bf16.mxu0 0
  %2666 = vmatpush1.bf16.msra.mxu0 0
  %2667 = vmatprep.subr.bf16.mxu0 0
  %2668 = vmatpush1.bf16.msra.mxu0 0
  %2669 = vmatprep.subr.bf16.mxu0 0
  %2670 = vmatpush1.bf16.msra.mxu0 0
  %2671 = vmatprep.subr.bf16.mxu0 0
  %2672 = vmatpush1.bf16.msra.mxu0 0
  %2673 = vmatprep.subr.bf16.mxu0 0
  %2674 = vmatpush1.bf16.msra.mxu0 0
  %2675 = vmatprep.mubr.bf16.mxu0 0
  %2676 = vmatmul.mubr.bf16.gmra.mrb[0].mxu0 %v2383
  %v2677 = vpop.f32.mrb[0].mxu0
  %v2678 = vadd.f32 %v2537, %v2677
  %v2679 = vpop.f32.mrb[0].mxu0
  %v2680 = vadd.f32 %v2539, %v2679
  %v2681 = vpop.f32.mrb[0].mxu0
  %v2682 = vadd.f32 %v2541, %v2681
  %v2683 = vpop.f32.mrb[0].mxu0
  %v2684 = vadd.f32 %v2543, %v2683
  %2685 = vmatprep.mubr.bf16.mxu0 0
  %2686 = vmatmul.mubr.bf16.gmra.mrb[0].mxu0 %v2384
  %v2687 = vpop.f32.mrb[0].mxu0
  %v2688 = vadd.f32 %v2547, %v2687
  %v2689 = vpop.f32.mrb[0].mxu0
  %v2690 = vadd.f32 %v2549, %v2689
  %v2691 = vpop.f32.mrb[0].mxu0
  %v2692 = vadd.f32 %v2551, %v2691
  %v2693 = vpop.f32.mrb[0].mxu0
  %v2694 = vadd.f32 %v2553, %v2693
  %2695 = vmatprep.mubr.bf16.mxu0 0
  %2696 = vmatmul.mubr.bf16.gmra.mrb[0].mxu0 %v2385
  %v2697 = vpop.f32.mrb[0].mxu0
  %v2698 = vadd.f32 %v2557, %v2697
  %v2699 = vpop.f32.mrb[0].mxu0
  %v2700 = vadd.f32 %v2559, %v2699
  %v2701 = vpop.f32.mrb[0].mxu0
  %v2702 = vpop.f32.mrb[0].mxu0
  %2703 = vdwg.mxu0
  %v2704 = vpack.c.bf16 %v1454, %v1453
  %v2705 = vpack.c.bf16 %v1456, %v1455
  %v2706 = vpack.c.bf16 %v1457, %v1457
  %s2707 = scalar_lea.vmem %s2, 256
  %v2708 = vld [vmem:[%s2707] sm:$0xff]
  %v2709 = vld [vmem:[%s2707 + $0x8] sm:$0xff]
  %v2710 = vld [vmem:[%s2707 + $0x10] sm:$0xff]
  %v2711 = vld [vmem:[%s2707 + $0x18] sm:$0xff]
  %v2712 = vld [vmem:[%s2707 + $0x20] sm:$0xff]
  %v2713 = vld [vmem:[%s2707 + $0x28] sm:$0xff]
  %v2714 = vld [vmem:[%s2707 + $0x30] sm:$0xff]
  %v2715 = vld [vmem:[%s2707 + $0x38] sm:$0xff]
  %v2716 = vld [vmem:[%s2707 + $0x40] sm:$0xff]
  %v2717 = vld [vmem:[%s2707 + $0x48] sm:$0xff]
  %v2718 = vld [vmem:[%s2707 + $0x50] sm:$0xff]
  %v2719 = vld [vmem:[%s2707 + $0x58] sm:$0xff]
  %v2720 = vld [vmem:[%s2707 + $0x60] sm:$0xff]
  %v2721 = vld [vmem:[%s2707 + $0x68] sm:$0xff]
  %v2722 = vld [vmem:[%s2707 + $0x70] sm:$0xff]
  %v2723 = vld [vmem:[%s2707 + $0x78] sm:$0xff]
  %v2740 = vunpack.c.l.b16 %v2708
  %v2741 = vunpack.c.h.b16 %v2708
  %v2742 = vunpack.c.l.b16 %v2709
  %v2743 = vunpack.c.h.b16 %v2709
  %v2744 = vunpack.c.l.b16 %v2710
  %v2745 = vunpack.c.h.b16 %v2710
  %v2746 = vunpack.c.l.b16 %v2711
  %v2747 = vunpack.c.h.b16 %v2711
  %v2748 = vunpack.c.l.b16 %v2712
  %v2749 = vunpack.c.h.b16 %v2712
  %v2750 = vunpack.c.l.b16 %v2713
  %v2751 = vunpack.c.h.b16 %v2713
  %v2752 = vunpack.c.l.b16 %v2714
  %v2753 = vunpack.c.h.b16 %v2714
  %v2754 = vunpack.c.l.b16 %v2715
  %v2755 = vunpack.c.h.b16 %v2715
  %v2756 = vunpack.c.l.b16 %v2716
  %v2757 = vunpack.c.h.b16 %v2716
  %v2758 = vunpack.c.l.b16 %v2717
  %v2759 = vunpack.c.h.b16 %v2717
  %v2760 = vunpack.c.l.b16 %v2718
  %v2761 = vunpack.c.h.b16 %v2718
  %v2762 = vunpack.c.l.b16 %v2719
  %v2763 = vunpack.c.h.b16 %v2719
  %v2764 = vunpack.c.l.b16 %v2720
  %v2765 = vunpack.c.h.b16 %v2720
  %v2766 = vunpack.c.l.b16 %v2721
  %v2767 = vunpack.c.h.b16 %v2721
  %v2768 = vunpack.c.l.b16 %v2722
  %v2769 = vunpack.c.h.b16 %v2722
  %v2770 = vunpack.c.l.b16 %v2723
  %v2771 = vunpack.c.h.b16 %v2723
  %v2772 = vpack.c.b16 %v2742, %v2740
  %v2773 = vpack.c.b16 %v2743, %v2741
  %v2774 = vpack.c.b16 %v2746, %v2744
  %v2775 = vpack.c.b16 %v2747, %v2745
  %v2776 = vpack.c.b16 %v2750, %v2748
  %v2777 = vpack.c.b16 %v2751, %v2749
  %v2778 = vpack.c.b16 %v2754, %v2752
  %v2779 = vpack.c.b16 %v2755, %v2753
  %v2780 = vpack.c.b16 %v2758, %v2756
  %v2781 = vpack.c.b16 %v2759, %v2757
  %v2782 = vpack.c.b16 %v2762, %v2760
  %v2783 = vpack.c.b16 %v2763, %v2761
  %v2784 = vpack.c.b16 %v2766, %v2764
  %v2785 = vpack.c.b16 %v2767, %v2765
  %v2786 = vpack.c.b16 %v2770, %v2768
  %v2787 = vpack.c.b16 %v2771, %v2769
  %2804 = vmatprep.subr.bf16.mxu0 %v2773
  %2805 = vmatpush1.bf16.msra.mxu0 %v2772
  %2806 = vmatprep.subr.bf16.mxu0 %v2775
  %2807 = vmatpush1.bf16.msra.mxu0 %v2774
  %2808 = vmatprep.subr.bf16.mxu0 %v2777
  %2809 = vmatpush1.bf16.msra.mxu0 %v2776
  %2810 = vmatprep.subr.bf16.mxu0 %v2779
  %2811 = vmatpush1.bf16.msra.mxu0 %v2778
  %2812 = vmatprep.subr.bf16.mxu0 %v2781
  %2813 = vmatpush1.bf16.msra.mxu0 %v2780
  %2814 = vmatprep.subr.bf16.mxu0 %v2783
  %2815 = vmatpush1.bf16.msra.mxu0 %v2782
  %2816 = vmatprep.subr.bf16.mxu0 %v2785
  %2817 = vmatpush1.bf16.msra.mxu0 %v2784
  %2818 = vmatprep.subr.bf16.mxu0 %v2787
  %2819 = vmatpush1.bf16.msra.mxu0 %v2786
  %2820 = vmatprep.subr.bf16.mxu0 0
  %2821 = vmatpush1.bf16.msra.mxu0 0
  %2822 = vmatprep.subr.bf16.mxu0 0
  %2823 = vmatpush1.bf16.msra.mxu0 0
  %2824 = vmatprep.subr.bf16.mxu0 0
  %2825 = vmatpush1.bf16.msra.mxu0 0
  %2826 = vmatprep.subr.bf16.mxu0 0
  %2827 = vmatpush1.bf16.msra.mxu0 0
  %2828 = vmatprep.subr.bf16.mxu0 0
  %2829 = vmatpush1.bf16.msra.mxu0 0
  %2830 = vmatprep.subr.bf16.mxu0 0
  %2831 = vmatpush1.bf16.msra.mxu0 0
  %2832 = vmatprep.subr.bf16.mxu0 0
  %2833 = vmatpush1.bf16.msra.mxu0 0
  %2834 = vmatprep.subr.bf16.mxu0 0
  %2835 = vmatpush1.bf16.msra.mxu0 0
  %2836 = vmatprep.mubr.bf16.mxu0 0
  %2837 = vmatmul.mubr.bf16.gmra.mrb[0].mxu0 %v2704
  %v2838 = vpop.f32.mrb[0].mxu0
  %v2839 = vadd.f32 0.0, %v2838
  %v2840 = vpop.f32.mrb[0].mxu0
  %v2841 = vadd.f32 0.0, %v2840
  %v2842 = vpop.f32.mrb[0].mxu0
  %v2843 = vadd.f32 0.0, %v2842
  %v2844 = vpop.f32.mrb[0].mxu0
  %v2845 = vadd.f32 0.0, %v2844
  %2846 = vmatprep.mubr.bf16.mxu0 0
  %2847 = vmatmul.mubr.bf16.gmra.mrb[0].mxu0 %v2705
  %v2848 = vpop.f32.mrb[0].mxu0
  %v2849 = vadd.f32 0.0, %v2848
  %v2850 = vpop.f32.mrb[0].mxu0
  %v2851 = vadd.f32 0.0, %v2850
  %v2852 = vpop.f32.mrb[0].mxu0
  %v2853 = vadd.f32 0.0, %v2852
  %v2854 = vpop.f32.mrb[0].mxu0
  %v2855 = vadd.f32 0.0, %v2854
  %2856 = vmatprep.mubr.bf16.mxu0 0
  %2857 = vmatmul.mubr.bf16.gmra.mrb[0].mxu0 %v2706
  %v2858 = vpop.f32.mrb[0].mxu0
  %v2859 = vadd.f32 0.0, %v2858
  %v2860 = vpop.f32.mrb[0].mxu0
  %v2861 = vadd.f32 0.0, %v2860
  %v2862 = vpop.f32.mrb[0].mxu0
  %v2863 = vpop.f32.mrb[0].mxu0
  %2864 = vdwg.mxu0
  %v2865 = vadd.f32 %v2678, %v2839
  %v2866 = vadd.f32 %v2680, %v2841
  %v2867 = vadd.f32 %v2682, %v2843
  %v2868 = vadd.f32 %v2684, %v2845
  %v2869 = vadd.f32 %v2688, %v2849
  %v2870 = vadd.f32 %v2690, %v2851
  %v2871 = vadd.f32 %v2692, %v2853
  %v2872 = vadd.f32 %v2694, %v2855
  %v2873 = vadd.f32 %v2698, %v2859
  %v2874 = vadd.f32 %v2700, %v2861
  %v2875 = vpack.c.bf16 %v2378, %v2377
  %v2876 = vpack.c.bf16 %v2380, %v2379
  %v2877 = vpack.c.bf16 %v2381, %v2381
  %s2878 = scalar_lea.vmem %s2, 384
  %v2879 = vld [vmem:[%s2878] sm:$0xff]
  %v2880 = vld [vmem:[%s2878 + $0x8] sm:$0xff]
  %v2881 = vld [vmem:[%s2878 + $0x10] sm:$0xff]
  %v2882 = vld [vmem:[%s2878 + $0x18] sm:$0xff]
  %v2883 = vld [vmem:[%s2878 + $0x20] sm:$0xff]
  %v2884 = vld [vmem:[%s2878 + $0x28] sm:$0xff]
  %v2885 = vld [vmem:[%s2878 + $0x30] sm:$0xff]
  %v2886 = vld [vmem:[%s2878 + $0x38] sm:$0xff]
  %v2887 = vld [vmem:[%s2878 + $0x40] sm:$0xff]
  %v2888 = vld [vmem:[%s2878 + $0x48] sm:$0xff]
  %v2889 = vld [vmem:[%s2878 + $0x50] sm:$0xff]
  %v2890 = vld [vmem:[%s2878 + $0x58] sm:$0xff]
  %v2891 = vld [vmem:[%s2878 + $0x60] sm:$0xff]
  %v2892 = vld [vmem:[%s2878 + $0x68] sm:$0xff]
  %v2893 = vld [vmem:[%s2878 + $0x70] sm:$0xff]
  %v2894 = vld [vmem:[%s2878 + $0x78] sm:$0xff]
  %v2911 = vunpack.c.l.b16 %v2879
  %v2912 = vunpack.c.h.b16 %v2879
  %v2913 = vunpack.c.l.b16 %v2880
  %v2914 = vunpack.c.h.b16 %v2880
  %v2915 = vunpack.c.l.b16 %v2881
  %v2916 = vunpack.c.h.b16 %v2881
  %v2917 = vunpack.c.l.b16 %v2882
  %v2918 = vunpack.c.h.b16 %v2882
  %v2919 = vunpack.c.l.b16 %v2883
  %v2920 = vunpack.c.h.b16 %v2883
  %v2921 = vunpack.c.l.b16 %v2884
  %v2922 = vunpack.c.h.b16 %v2884
  %v2923 = vunpack.c.l.b16 %v2885
  %v2924 = vunpack.c.h.b16 %v2885
  %v2925 = vunpack.c.l.b16 %v2886
  %v2926 = vunpack.c.h.b16 %v2886
  %v2927 = vunpack.c.l.b16 %v2887
  %v2928 = vunpack.c.h.b16 %v2887
  %v2929 = vunpack.c.l.b16 %v2888
  %v2930 = vunpack.c.h.b16 %v2888
  %v2931 = vunpack.c.l.b16 %v2889
  %v2932 = vunpack.c.h.b16 %v2889
  %v2933 = vunpack.c.l.b16 %v2890
  %v2934 = vunpack.c.h.b16 %v2890
  %v2935 = vunpack.c.l.b16 %v2891
  %v2936 = vunpack.c.h.b16 %v2891
  %v2937 = vunpack.c.l.b16 %v2892
  %v2938 = vunpack.c.h.b16 %v2892
  %v2939 = vunpack.c.l.b16 %v2893
  %v2940 = vunpack.c.h.b16 %v2893
  %v2941 = vunpack.c.l.b16 %v2894
  %v2942 = vunpack.c.h.b16 %v2894
  %v2943 = vpack.c.b16 %v2913, %v2911
  %v2944 = vpack.c.b16 %v2914, %v2912
  %v2945 = vpack.c.b16 %v2917, %v2915
  %v2946 = vpack.c.b16 %v2918, %v2916
  %v2947 = vpack.c.b16 %v2921, %v2919
  %v2948 = vpack.c.b16 %v2922, %v2920
  %v2949 = vpack.c.b16 %v2925, %v2923
  %v2950 = vpack.c.b16 %v2926, %v2924
  %v2951 = vpack.c.b16 %v2929, %v2927
  %v2952 = vpack.c.b16 %v2930, %v2928
  %v2953 = vpack.c.b16 %v2933, %v2931
  %v2954 = vpack.c.b16 %v2934, %v2932
  %v2955 = vpack.c.b16 %v2937, %v2935
  %v2956 = vpack.c.b16 %v2938, %v2936
  %v2957 = vpack.c.b16 %v2941, %v2939
  %v2958 = vpack.c.b16 %v2942, %v2940
  %2975 = vmatprep.subr.bf16.mxu0 %v2944
  %2976 = vmatpush1.bf16.msra.mxu0 %v2943
  %2977 = vmatprep.subr.bf16.mxu0 %v2946
  %2978 = vmatpush1.bf16.msra.mxu0 %v2945
  %2979 = vmatprep.subr.bf16.mxu0 %v2948
  %2980 = vmatpush1.bf16.msra.mxu0 %v2947
  %2981 = vmatprep.subr.bf16.mxu0 %v2950
  %2982 = vmatpush1.bf16.msra.mxu0 %v2949
  %2983 = vmatprep.subr.bf16.mxu0 %v2952
  %2984 = vmatpush1.bf16.msra.mxu0 %v2951
  %2985 = vmatprep.subr.bf16.mxu0 %v2954
  %2986 = vmatpush1.bf16.msra.mxu0 %v2953
  %2987 = vmatprep.subr.bf16.mxu0 %v2956
  %2988 = vmatpush1.bf16.msra.mxu0 %v2955
  %2989 = vmatprep.subr.bf16.mxu0 %v2958
  %2990 = vmatpush1.bf16.msra.mxu0 %v2957
  %2991 = vmatprep.subr.bf16.mxu0 0
  %2992 = vmatpush1.bf16.msra.mxu0 0
  %2993 = vmatprep.subr.bf16.mxu0 0
  %2994 = vmatpush1.bf16.msra.mxu0 0
  %2995 = vmatprep.subr.bf16.mxu0 0
  %2996 = vmatpush1.bf16.msra.mxu0 0
  %2997 = vmatprep.subr.bf16.mxu0 0
  %2998 = vmatpush1.bf16.msra.mxu0 0
  %2999 = vmatprep.subr.bf16.mxu0 0
  %3000 = vmatpush1.bf16.msra.mxu0 0
  %3001 = vmatprep.subr.bf16.mxu0 0
  %3002 = vmatpush1.bf16.msra.mxu0 0
  %3003 = vmatprep.subr.bf16.mxu0 0
  %3004 = vmatpush1.bf16.msra.mxu0 0
  %3005 = vmatprep.subr.bf16.mxu0 0
  %3006 = vmatpush1.bf16.msra.mxu0 0
  %3007 = vmatprep.mubr.bf16.mxu0 0
  %3008 = vmatmul.mubr.bf16.gmra.mrb[0].mxu0 %v2875
  %v3009 = vpop.f32.mrb[0].mxu0
  %v3010 = vadd.f32 0.0, %v3009
  %v3011 = vpop.f32.mrb[0].mxu0
  %v3012 = vadd.f32 0.0, %v3011
  %v3013 = vpop.f32.mrb[0].mxu0
  %v3014 = vadd.f32 0.0, %v3013
  %v3015 = vpop.f32.mrb[0].mxu0
  %v3016 = vadd.f32 0.0, %v3015
  %3017 = vmatprep.mubr.bf16.mxu0 0
  %3018 = vmatmul.mubr.bf16.gmra.mrb[0].mxu0 %v2876
  %v3019 = vpop.f32.mrb[0].mxu0
  %v3020 = vadd.f32 0.0, %v3019
  %v3021 = vpop.f32.mrb[0].mxu0
  %v3022 = vadd.f32 0.0, %v3021
  %v3023 = vpop.f32.mrb[0].mxu0
  %v3024 = vadd.f32 0.0, %v3023
  %v3025 = vpop.f32.mrb[0].mxu0
  %v3026 = vadd.f32 0.0, %v3025
  %3027 = vmatprep.mubr.bf16.mxu0 0
  %3028 = vmatmul.mubr.bf16.gmra.mrb[0].mxu0 %v2877
  %v3029 = vpop.f32.mrb[0].mxu0
  %v3030 = vadd.f32 0.0, %v3029
  %v3031 = vpop.f32.mrb[0].mxu0
  %v3032 = vadd.f32 0.0, %v3031
  %v3033 = vpop.f32.mrb[0].mxu0
  %v3034 = vpop.f32.mrb[0].mxu0
  %3035 = vdwg.mxu0
  %v3036 = vadd.f32 %v2865, %v3010
  %v3037 = vadd.f32 %v2866, %v3012
  %v3038 = vadd.f32 %v2867, %v3014
  %v3039 = vadd.f32 %v2868, %v3016
  %v3040 = vadd.f32 %v2869, %v3020
  %v3041 = vadd.f32 %v2870, %v3022
  %v3042 = vadd.f32 %v2871, %v3024
  %v3043 = vadd.f32 %v2872, %v3026
  %v3044 = vadd.f32 %v2873, %v3030
  %v3045 = vadd.f32 %v2874, %v3032
  %v3046 = vpack.c.bf16 %v1457, %v1456
  %v3047 = vpack.c.bf16 %v1458, %v1458
  %s3048 = scalar_lea.vmem %s2, 512
  %v3049 = vld [vmem:[%s3048] sm:$0xff]
  %v3050 = vld [vmem:[%s3048 + $0x8] sm:$0xff]
  %v3051 = vld [vmem:[%s3048 + $0x10] sm:$0xff]
  %v3052 = vld [vmem:[%s3048 + $0x18] sm:$0xff]
  %v3053 = vld [vmem:[%s3048 + $0x20] sm:$0xff]
  %v3054 = vld [vmem:[%s3048 + $0x28] sm:$0xff]
  %v3055 = vld [vmem:[%s3048 + $0x30] sm:$0xff]
  %v3056 = vld [vmem:[%s3048 + $0x38] sm:$0xff]
  %v3057 = vld [vmem:[%s3048 + $0x40] sm:$0xff]
  %v3058 = vld [vmem:[%s3048 + $0x48] sm:$0xff]
  %v3059 = vld [vmem:[%s3048 + $0x50] sm:$0xff]
  %v3060 = vld [vmem:[%s3048 + $0x58] sm:$0xff]
  %v3061 = vld [vmem:[%s3048 + $0x60] sm:$0xff]
  %v3062 = vld [vmem:[%s3048 + $0x68] sm:$0xff]
  %v3063 = vld [vmem:[%s3048 + $0x70] sm:$0xff]
  %v3064 = vld [vmem:[%s3048 + $0x78] sm:$0xff]
  %v3081 = vunpack.c.l.b16 %v3049
  %v3082 = vunpack.c.h.b16 %v3049
  %v3083 = vunpack.c.l.b16 %v3050
  %v3084 = vunpack.c.h.b16 %v3050
  %v3085 = vunpack.c.l.b16 %v3051
  %v3086 = vunpack.c.h.b16 %v3051
  %v3087 = vunpack.c.l.b16 %v3052
  %v3088 = vunpack.c.h.b16 %v3052
  %v3089 = vunpack.c.l.b16 %v3053
  %v3090 = vunpack.c.h.b16 %v3053
  %v3091 = vunpack.c.l.b16 %v3054
  %v3092 = vunpack.c.h.b16 %v3054
  %v3093 = vunpack.c.l.b16 %v3055
  %v3094 = vunpack.c.h.b16 %v3055
  %v3095 = vunpack.c.l.b16 %v3056
  %v3096 = vunpack.c.h.b16 %v3056
  %v3097 = vunpack.c.l.b16 %v3057
  %v3098 = vunpack.c.h.b16 %v3057
  %v3099 = vunpack.c.l.b16 %v3058
  %v3100 = vunpack.c.h.b16 %v3058
  %v3101 = vunpack.c.l.b16 %v3059
  %v3102 = vunpack.c.h.b16 %v3059
  %v3103 = vunpack.c.l.b16 %v3060
  %v3104 = vunpack.c.h.b16 %v3060
  %v3105 = vunpack.c.l.b16 %v3061
  %v3106 = vunpack.c.h.b16 %v3061
  %v3107 = vunpack.c.l.b16 %v3062
  %v3108 = vunpack.c.h.b16 %v3062
  %v3109 = vunpack.c.l.b16 %v3063
  %v3110 = vunpack.c.h.b16 %v3063
  %v3111 = vunpack.c.l.b16 %v3064
  %v3112 = vunpack.c.h.b16 %v3064
  %v3113 = vpack.c.b16 %v3083, %v3081
  %v3114 = vpack.c.b16 %v3084, %v3082
  %v3115 = vpack.c.b16 %v3087, %v3085
  %v3116 = vpack.c.b16 %v3088, %v3086
  %v3117 = vpack.c.b16 %v3091, %v3089
  %v3118 = vpack.c.b16 %v3092, %v3090
  %v3119 = vpack.c.b16 %v3095, %v3093
  %v3120 = vpack.c.b16 %v3096, %v3094
  %v3121 = vpack.c.b16 %v3099, %v3097
  %v3122 = vpack.c.b16 %v3100, %v3098
  %v3123 = vpack.c.b16 %v3103, %v3101
  %v3124 = vpack.c.b16 %v3104, %v3102
  %v3125 = vpack.c.b16 %v3107, %v3105
  %v3126 = vpack.c.b16 %v3108, %v3106
  %v3127 = vpack.c.b16 %v3111, %v3109
  %v3128 = vpack.c.b16 %v3112, %v3110
  %3145 = vmatprep.subr.bf16.mxu0 %v3114
  %3146 = vmatpush1.bf16.msra.mxu0 %v3113
  %3147 = vmatprep.subr.bf16.mxu0 %v3116
  %3148 = vmatpush1.bf16.msra.mxu0 %v3115
  %3149 = vmatprep.subr.bf16.mxu0 %v3118
  %3150 = vmatpush1.bf16.msra.mxu0 %v3117
  %3151 = vmatprep.subr.bf16.mxu0 %v3120
  %3152 = vmatpush1.bf16.msra.mxu0 %v3119
  %3153 = vmatprep.subr.bf16.mxu0 %v3122
  %3154 = vmatpush1.bf16.msra.mxu0 %v3121
  %3155 = vmatprep.subr.bf16.mxu0 %v3124
  %3156 = vmatpush1.bf16.msra.mxu0 %v3123
  %3157 = vmatprep.subr.bf16.mxu0 %v3126
  %3158 = vmatpush1.bf16.msra.mxu0 %v3125
  %3159 = vmatprep.subr.bf16.mxu0 %v3128
  %3160 = vmatpush1.bf16.msra.mxu0 %v3127
  %3161 = vmatprep.subr.bf16.mxu0 0
  %3162 = vmatpush1.bf16.msra.mxu0 0
  %3163 = vmatprep.subr.bf16.mxu0 0
  %3164 = vmatpush1.bf16.msra.mxu0 0
  %3165 = vmatprep.subr.bf16.mxu0 0
  %3166 = vmatpush1.bf16.msra.mxu0 0
  %3167 = vmatprep.subr.bf16.mxu0 0
  %3168 = vmatpush1.bf16.msra.mxu0 0
  %3169 = vmatprep.subr.bf16.mxu0 0
  %3170 = vmatpush1.bf16.msra.mxu0 0
  %3171 = vmatprep.subr.bf16.mxu0 0
  %3172 = vmatpush1.bf16.msra.mxu0 0
  %3173 = vmatprep.subr.bf16.mxu0 0
  %3174 = vmatpush1.bf16.msra.mxu0 0
  %3175 = vmatprep.subr.bf16.mxu0 0
  %3176 = vmatpush1.bf16.msra.mxu0 0
  %3177 = vmatprep.mubr.bf16.mxu0 0
  %3178 = vmatmul.mubr.bf16.gmra.mrb[0].mxu0 %v2384
  %v3179 = vpop.f32.mrb[0].mxu0
  %v3180 = vadd.f32 0.0, %v3179
  %v3181 = vpop.f32.mrb[0].mxu0
  %v3182 = vadd.f32 0.0, %v3181
  %v3183 = vpop.f32.mrb[0].mxu0
  %v3184 = vadd.f32 0.0, %v3183
  %v3185 = vpop.f32.mrb[0].mxu0
  %v3186 = vadd.f32 0.0, %v3185
  %3187 = vmatprep.mubr.bf16.mxu0 0
  %3188 = vmatmul.mubr.bf16.gmra.mrb[0].mxu0 %v3046
  %v3189 = vpop.f32.mrb[0].mxu0
  %v3190 = vadd.f32 0.0, %v3189
  %v3191 = vpop.f32.mrb[0].mxu0
  %v3192 = vadd.f32 0.0, %v3191
  %v3193 = vpop.f32.mrb[0].mxu0
  %v3194 = vadd.f32 0.0, %v3193
  %v3195 = vpop.f32.mrb[0].mxu0
  %v3196 = vadd.f32 0.0, %v3195
  %3197 = vmatprep.mubr.bf16.mxu0 0
  %3198 = vmatmul.mubr.bf16.gmra.mrb[0].mxu0 %v3047
  %v3199 = vpop.f32.mrb[0].mxu0
  %v3200 = vadd.f32 0.0, %v3199
  %v3201 = vpop.f32.mrb[0].mxu0
  %v3202 = vadd.f32 0.0, %v3201
  %v3203 = vpop.f32.mrb[0].mxu0
  %v3204 = vpop.f32.mrb[0].mxu0
  %3205 = vdwg.mxu0
  %v3206 = vadd.f32 %v3036, %v3180
  %v3207 = vadd.f32 %v3037, %v3182
  %v3208 = vadd.f32 %v3038, %v3184
  %v3209 = vadd.f32 %v3039, %v3186
  %v3210 = vadd.f32 %v3040, %v3190
  %v3211 = vadd.f32 %v3041, %v3192
  %v3212 = vadd.f32 %v3042, %v3194
  %v3213 = vadd.f32 %v3043, %v3196
  %v3214 = vadd.f32 %v3044, %v3200
  %v3215 = vadd.f32 %v3045, %v3202
  %v3216 = vld [vmem:[%s8] sm:$0x3]
  %v3218 = vlaneseq
  %v3219 = vshrl.u32 %v3218, 7
  %v3220 = vsub.s32 0, %v3219
  %v3221 = vrot.slane %v3216, %v3220
  %v3222 = vlaneseq
  %v3223 = vshrl.u32 %v3222, 7
  %v3224 = vsub.s32 1, %v3223
  %v3225 = vrot.slane %v3216, %v3224
  %v3228 = vmul.f32 %v3206, %v3221
  %v3229 = vmul.f32 %v3207, %v3225
  %v3230 = vmul.f32 %v3208, %v3221
  %v3231 = vmul.f32 %v3209, %v3225
  %v3232 = vmul.f32 %v3210, %v3221
  %v3233 = vmul.f32 %v3211, %v3225
  %v3234 = vmul.f32 %v3212, %v3221
  %v3235 = vmul.f32 %v3213, %v3225
  %v3236 = vmul.f32 %v3214, %v3221
  %v3237 = vmul.f32 %v3215, %v3225
  %v3238 = vld [vmem:[%s9] sm:$0x3]
  %v3240 = vlaneseq
  %v3241 = vshrl.u32 %v3240, 7
  %v3242 = vsub.s32 0, %v3241
  %v3243 = vrot.slane %v3238, %v3242
  %v3244 = vlaneseq
  %v3245 = vshrl.u32 %v3244, 7
  %v3246 = vsub.s32 1, %v3245
  %v3247 = vrot.slane %v3238, %v3246
  %v3250 = vadd.f32 %v3228, %v3243
  %v3251 = vadd.f32 %v3229, %v3247
  %v3252 = vadd.f32 %v3230, %v3243
  %v3253 = vadd.f32 %v3231, %v3247
  %v3254 = vadd.f32 %v3232, %v3243
  %v3255 = vadd.f32 %v3233, %v3247
  %v3256 = vadd.f32 %v3234, %v3243
  %v3257 = vadd.f32 %v3235, %v3247
  %v3258 = vadd.f32 %v3236, %v3243
  %v3259 = vadd.f32 %v3237, %v3247
  %3260 = vmatprep.subr.bf16.mxu0 %v2471
  %3261 = vmatpush1.bf16.msra.mxu0 %v2470
  %3262 = vmatprep.subr.bf16.mxu0 %v2473
  %3263 = vmatpush1.bf16.msra.mxu0 %v2472
  %3264 = vmatprep.subr.bf16.mxu0 %v2475
  %3265 = vmatpush1.bf16.msra.mxu0 %v2474
  %3266 = vmatprep.subr.bf16.mxu0 %v2477
  %3267 = vmatpush1.bf16.msra.mxu0 %v2476
  %3268 = vmatprep.subr.bf16.mxu0 %v2479
  %3269 = vmatpush1.bf16.msra.mxu0 %v2478
  %3270 = vmatprep.subr.bf16.mxu0 %v2481
  %3271 = vmatpush1.bf16.msra.mxu0 %v2480
  %3272 = vmatprep.subr.bf16.mxu0 %v2483
  %3273 = vmatpush1.bf16.msra.mxu0 %v2482
  %3274 = vmatprep.subr.bf16.mxu0 %v2485
  %3275 = vmatpush1.bf16.msra.mxu0 %v2484
  %3276 = vmatprep.subr.bf16.mxu0 0
  %3277 = vmatpush1.bf16.msra.mxu0 0
  %3278 = vmatprep.subr.bf16.mxu0 0
  %3279 = vmatpush1.bf16.msra.mxu0 0
  %3280 = vmatprep.subr.bf16.mxu0 0
  %3281 = vmatpush1.bf16.msra.mxu0 0
  %3282 = vmatprep.subr.bf16.mxu0 0
  %3283 = vmatpush1.bf16.msra.mxu0 0
  %3284 = vmatprep.subr.bf16.mxu0 0
  %3285 = vmatpush1.bf16.msra.mxu0 0
  %3286 = vmatprep.subr.bf16.mxu0 0
  %3287 = vmatpush1.bf16.msra.mxu0 0
  %3288 = vmatprep.subr.bf16.mxu0 0
  %3289 = vmatpush1.bf16.msra.mxu0 0
  %3290 = vmatprep.subr.bf16.mxu0 0
  %3291 = vmatpush1.bf16.msra.mxu0 0
  %3292 = vmatprep.mubr.bf16.mxu0 0
  %3293 = vmatmul.mubr.bf16.gmra.mrb[0].mxu0 %v2704
  %v3294 = vpop.f32.mrb[0].mxu0
  %v3295 = vadd.f32 0.0, %v3294
  %v3296 = vpop.f32.mrb[0].mxu0
  %v3297 = vadd.f32 0.0, %v3296
  %v3298 = vpop.f32.mrb[0].mxu0
  %v3299 = vadd.f32 0.0, %v3298
  %v3300 = vpop.f32.mrb[0].mxu0
  %v3301 = vadd.f32 0.0, %v3300
  %3302 = vmatprep.mubr.bf16.mxu0 0
  %3303 = vmatmul.mubr.bf16.gmra.mrb[0].mxu0 %v2705
  %v3304 = vpop.f32.mrb[0].mxu0
  %v3305 = vadd.f32 0.0, %v3304
  %v3306 = vpop.f32.mrb[0].mxu0
  %v3307 = vadd.f32 0.0, %v3306
  %v3308 = vpop.f32.mrb[0].mxu0
  %v3309 = vadd.f32 0.0, %v3308
  %v3310 = vpop.f32.mrb[0].mxu0
  %v3311 = vadd.f32 0.0, %v3310
  %3312 = vmatprep.mubr.bf16.mxu0 0
  %3313 = vmatmul.mubr.bf16.gmra.mrb[0].mxu0 %v2706
  %v3314 = vpop.f32.mrb[0].mxu0
  %v3315 = vadd.f32 0.0, %v3314
  %v3316 = vpop.f32.mrb[0].mxu0
  %v3317 = vadd.f32 0.0, %v3316
  %v3318 = vpop.f32.mrb[0].mxu0
  %v3319 = vpop.f32.mrb[0].mxu0
  %3320 = vdwg.mxu0
  %3321 = vmatprep.subr.bf16.mxu0 %v2612
  %3322 = vmatpush1.bf16.msra.mxu0 %v2611
  %3323 = vmatprep.subr.bf16.mxu0 %v2614
  %3324 = vmatpush1.bf16.msra.mxu0 %v2613
  %3325 = vmatprep.subr.bf16.mxu0 %v2616
  %3326 = vmatpush1.bf16.msra.mxu0 %v2615
  %3327 = vmatprep.subr.bf16.mxu0 %v2618
  %3328 = vmatpush1.bf16.msra.mxu0 %v2617
  %3329 = vmatprep.subr.bf16.mxu0 %v2620
  %3330 = vmatpush1.bf16.msra.mxu0 %v2619
  %3331 = vmatprep.subr.bf16.mxu0 %v2622
  %3332 = vmatpush1.bf16.msra.mxu0 %v2621
  %3333 = vmatprep.subr.bf16.mxu0 %v2624
  %3334 = vmatpush1.bf16.msra.mxu0 %v2623
  %3335 = vmatprep.subr.bf16.mxu0 %v2626
  %3336 = vmatpush1.bf16.msra.mxu0 %v2625
  %3337 = vmatprep.subr.bf16.mxu0 0
  %3338 = vmatpush1.bf16.msra.mxu0 0
  %3339 = vmatprep.subr.bf16.mxu0 0
  %3340 = vmatpush1.bf16.msra.mxu0 0
  %3341 = vmatprep.subr.bf16.mxu0 0
  %3342 = vmatpush1.bf16.msra.mxu0 0
  %3343 = vmatprep.subr.bf16.mxu0 0
  %3344 = vmatpush1.bf16.msra.mxu0 0
  %3345 = vmatprep.subr.bf16.mxu0 0
  %3346 = vmatpush1.bf16.msra.mxu0 0
  %3347 = vmatprep.subr.bf16.mxu0 0
  %3348 = vmatpush1.bf16.msra.mxu0 0
  %3349 = vmatprep.subr.bf16.mxu0 0
  %3350 = vmatpush1.bf16.msra.mxu0 0
  %3351 = vmatprep.subr.bf16.mxu0 0
  %3352 = vmatpush1.bf16.msra.mxu0 0
  %3353 = vmatprep.mubr.bf16.mxu0 0
  %3354 = vmatmul.mubr.bf16.gmra.mrb[0].mxu0 %v2402
  %v3355 = vpop.f32.mrb[0].mxu0
  %v3356 = vadd.f32 %v3295, %v3355
  %v3357 = vpop.f32.mrb[0].mxu0
  %v3358 = vadd.f32 %v3297, %v3357
  %v3359 = vpop.f32.mrb[0].mxu0
  %v3360 = vadd.f32 %v3299, %v3359
  %v3361 = vpop.f32.mrb[0].mxu0
  %v3362 = vadd.f32 %v3301, %v3361
  %3363 = vmatprep.mubr.bf16.mxu0 0
  %3364 = vmatmul.mubr.bf16.gmra.mrb[0].mxu0 %v2403
  %v3365 = vpop.f32.mrb[0].mxu0
  %v3366 = vadd.f32 %v3305, %v3365
  %v3367 = vpop.f32.mrb[0].mxu0
  %v3368 = vadd.f32 %v3307, %v3367
  %v3369 = vpop.f32.mrb[0].mxu0
  %v3370 = vadd.f32 %v3309, %v3369
  %v3371 = vpop.f32.mrb[0].mxu0
  %v3372 = vadd.f32 %v3311, %v3371
  %3373 = vmatprep.mubr.bf16.mxu0 0
  %3374 = vmatmul.mubr.bf16.gmra.mrb[0].mxu0 %v2404
  %v3375 = vpop.f32.mrb[0].mxu0
  %v3376 = vadd.f32 %v3315, %v3375
  %v3377 = vpop.f32.mrb[0].mxu0
  %v3378 = vadd.f32 %v3317, %v3377
  %v3379 = vpop.f32.mrb[0].mxu0
  %v3380 = vpop.f32.mrb[0].mxu0
  %3381 = vdwg.mxu0
  %3382 = vmatprep.subr.bf16.mxu0 %v2773
  %3383 = vmatpush1.bf16.msra.mxu0 %v2772
  %3384 = vmatprep.subr.bf16.mxu0 %v2775
  %3385 = vmatpush1.bf16.msra.mxu0 %v2774
  %3386 = vmatprep.subr.bf16.mxu0 %v2777
  %3387 = vmatpush1.bf16.msra.mxu0 %v2776
  %3388 = vmatprep.subr.bf16.mxu0 %v2779
  %3389 = vmatpush1.bf16.msra.mxu0 %v2778
  %3390 = vmatprep.subr.bf16.mxu0 %v2781
  %3391 = vmatpush1.bf16.msra.mxu0 %v2780
  %3392 = vmatprep.subr.bf16.mxu0 %v2783
  %3393 = vmatpush1.bf16.msra.mxu0 %v2782
  %3394 = vmatprep.subr.bf16.mxu0 %v2785
  %3395 = vmatpush1.bf16.msra.mxu0 %v2784
  %3396 = vmatprep.subr.bf16.mxu0 %v2787
  %3397 = vmatpush1.bf16.msra.mxu0 %v2786
  %3398 = vmatprep.subr.bf16.mxu0 0
  %3399 = vmatpush1.bf16.msra.mxu0 0
  %3400 = vmatprep.subr.bf16.mxu0 0
  %3401 = vmatpush1.bf16.msra.mxu0 0
  %3402 = vmatprep.subr.bf16.mxu0 0
  %3403 = vmatpush1.bf16.msra.mxu0 0
  %3404 = vmatprep.subr.bf16.mxu0 0
  %3405 = vmatpush1.bf16.msra.mxu0 0
  %3406 = vmatprep.subr.bf16.mxu0 0
  %3407 = vmatpush1.bf16.msra.mxu0 0
  %3408 = vmatprep.subr.bf16.mxu0 0
  %3409 = vmatpush1.bf16.msra.mxu0 0
  %3410 = vmatprep.subr.bf16.mxu0 0
  %3411 = vmatpush1.bf16.msra.mxu0 0
  %3412 = vmatprep.subr.bf16.mxu0 0
  %3413 = vmatpush1.bf16.msra.mxu0 0
  %3414 = vmatprep.mubr.bf16.mxu0 0
  %3415 = vmatmul.mubr.bf16.gmra.mrb[0].mxu0 %v2875
  %v3416 = vpop.f32.mrb[0].mxu0
  %v3417 = vadd.f32 0.0, %v3416
  %v3418 = vpop.f32.mrb[0].mxu0
  %v3419 = vadd.f32 0.0, %v3418
  %v3420 = vpop.f32.mrb[0].mxu0
  %v3421 = vadd.f32 0.0, %v3420
  %v3422 = vpop.f32.mrb[0].mxu0
  %v3423 = vadd.f32 0.0, %v3422
  %3424 = vmatprep.mubr.bf16.mxu0 0
  %3425 = vmatmul.mubr.bf16.gmra.mrb[0].mxu0 %v2876
  %v3426 = vpop.f32.mrb[0].mxu0
  %v3427 = vadd.f32 0.0, %v3426
  %v3428 = vpop.f32.mrb[0].mxu0
  %v3429 = vadd.f32 0.0, %v3428
  %v3430 = vpop.f32.mrb[0].mxu0
  %v3431 = vadd.f32 0.0, %v3430
  %v3432 = vpop.f32.mrb[0].mxu0
  %v3433 = vadd.f32 0.0, %v3432
  %3434 = vmatprep.mubr.bf16.mxu0 0
  %3435 = vmatmul.mubr.bf16.gmra.mrb[0].mxu0 %v2877
  %v3436 = vpop.f32.mrb[0].mxu0
  %v3437 = vadd.f32 0.0, %v3436
  %v3438 = vpop.f32.mrb[0].mxu0
  %v3439 = vadd.f32 0.0, %v3438
  %v3440 = vpop.f32.mrb[0].mxu0
  %v3441 = vpop.f32.mrb[0].mxu0
  %3442 = vdwg.mxu0
  %v3443 = vadd.f32 %v3356, %v3417
  %v3444 = vadd.f32 %v3358, %v3419
  %v3445 = vadd.f32 %v3360, %v3421
  %v3446 = vadd.f32 %v3362, %v3423
  %v3447 = vadd.f32 %v3366, %v3427
  %v3448 = vadd.f32 %v3368, %v3429
  %v3449 = vadd.f32 %v3370, %v3431
  %v3450 = vadd.f32 %v3372, %v3433
  %v3451 = vadd.f32 %v3376, %v3437
  %v3452 = vadd.f32 %v3378, %v3439
  %3453 = vmatprep.subr.bf16.mxu0 %v2944
  %3454 = vmatpush1.bf16.msra.mxu0 %v2943
  %3455 = vmatprep.subr.bf16.mxu0 %v2946
  %3456 = vmatpush1.bf16.msra.mxu0 %v2945
  %3457 = vmatprep.subr.bf16.mxu0 %v2948
  %3458 = vmatpush1.bf16.msra.mxu0 %v2947
  %3459 = vmatprep.subr.bf16.mxu0 %v2950
  %3460 = vmatpush1.bf16.msra.mxu0 %v2949
  %3461 = vmatprep.subr.bf16.mxu0 %v2952
  %3462 = vmatpush1.bf16.msra.mxu0 %v2951
  %3463 = vmatprep.subr.bf16.mxu0 %v2954
  %3464 = vmatpush1.bf16.msra.mxu0 %v2953
  %3465 = vmatprep.subr.bf16.mxu0 %v2956
  %3466 = vmatpush1.bf16.msra.mxu0 %v2955
  %3467 = vmatprep.subr.bf16.mxu0 %v2958
  %3468 = vmatpush1.bf16.msra.mxu0 %v2957
  %3469 = vmatprep.subr.bf16.mxu0 0
  %3470 = vmatpush1.bf16.msra.mxu0 0
  %3471 = vmatprep.subr.bf16.mxu0 0
  %3472 = vmatpush1.bf16.msra.mxu0 0
  %3473 = vmatprep.subr.bf16.mxu0 0
  %3474 = vmatpush1.bf16.msra.mxu0 0
  %3475 = vmatprep.subr.bf16.mxu0 0
  %3476 = vmatpush1.bf16.msra.mxu0 0
  %3477 = vmatprep.subr.bf16.mxu0 0
  %3478 = vmatpush1.bf16.msra.mxu0 0
  %3479 = vmatprep.subr.bf16.mxu0 0
  %3480 = vmatpush1.bf16.msra.mxu0 0
  %3481 = vmatprep.subr.bf16.mxu0 0
  %3482 = vmatpush1.bf16.msra.mxu0 0
  %3483 = vmatprep.subr.bf16.mxu0 0
  %3484 = vmatpush1.bf16.msra.mxu0 0
  %3485 = vmatprep.mubr.bf16.mxu0 0
  %3486 = vmatmul.mubr.bf16.gmra.mrb[0].mxu0 %v2384
  %v3487 = vpop.f32.mrb[0].mxu0
  %v3488 = vadd.f32 0.0, %v3487
  %v3489 = vpop.f32.mrb[0].mxu0
  %v3490 = vadd.f32 0.0, %v3489
  %v3491 = vpop.f32.mrb[0].mxu0
  %v3492 = vadd.f32 0.0, %v3491
  %v3493 = vpop.f32.mrb[0].mxu0
  %v3494 = vadd.f32 0.0, %v3493
  %3495 = vmatprep.mubr.bf16.mxu0 0
  %3496 = vmatmul.mubr.bf16.gmra.mrb[0].mxu0 %v3046
  %v3497 = vpop.f32.mrb[0].mxu0
  %v3498 = vadd.f32 0.0, %v3497
  %v3499 = vpop.f32.mrb[0].mxu0
  %v3500 = vadd.f32 0.0, %v3499
  %v3501 = vpop.f32.mrb[0].mxu0
  %v3502 = vadd.f32 0.0, %v3501
  %v3503 = vpop.f32.mrb[0].mxu0
  %v3504 = vadd.f32 0.0, %v3503
  %3505 = vmatprep.mubr.bf16.mxu0 0
  %3506 = vmatmul.mubr.bf16.gmra.mrb[0].mxu0 %v3047
  %v3507 = vpop.f32.mrb[0].mxu0
  %v3508 = vadd.f32 0.0, %v3507
  %v3509 = vpop.f32.mrb[0].mxu0
  %v3510 = vadd.f32 0.0, %v3509
  %v3511 = vpop.f32.mrb[0].mxu0
  %v3512 = vpop.f32.mrb[0].mxu0
  %3513 = vdwg.mxu0
  %v3514 = vadd.f32 %v3443, %v3488
  %v3515 = vadd.f32 %v3444, %v3490
  %v3516 = vadd.f32 %v3445, %v3492
  %v3517 = vadd.f32 %v3446, %v3494
  %v3518 = vadd.f32 %v3447, %v3498
  %v3519 = vadd.f32 %v3448, %v3500
  %v3520 = vadd.f32 %v3449, %v3502
  %v3521 = vadd.f32 %v3450, %v3504
  %v3522 = vadd.f32 %v3451, %v3508
  %v3523 = vadd.f32 %v3452, %v3510
  %v3524 = vpack.c.bf16 %v2381, %v2380
  %v3525 = vpack.c.bf16 %v2382, %v2382
  %3526 = vmatprep.subr.bf16.mxu0 %v3114
  %3527 = vmatpush1.bf16.msra.mxu0 %v3113
  %3528 = vmatprep.subr.bf16.mxu0 %v3116
  %3529 = vmatpush1.bf16.msra.mxu0 %v3115
  %3530 = vmatprep.subr.bf16.mxu0 %v3118
  %3531 = vmatpush1.bf16.msra.mxu0 %v3117
  %3532 = vmatprep.subr.bf16.mxu0 %v3120
  %3533 = vmatpush1.bf16.msra.mxu0 %v3119
  %3534 = vmatprep.subr.bf16.mxu0 %v3122
  %3535 = vmatpush1.bf16.msra.mxu0 %v3121
  %3536 = vmatprep.subr.bf16.mxu0 %v3124
  %3537 = vmatpush1.bf16.msra.mxu0 %v3123
  %3538 = vmatprep.subr.bf16.mxu0 %v3126
  %3539 = vmatpush1.bf16.msra.mxu0 %v3125
  %3540 = vmatprep.subr.bf16.mxu0 %v3128
  %3541 = vmatpush1.bf16.msra.mxu0 %v3127
  %3542 = vmatprep.subr.bf16.mxu0 0
  %3543 = vmatpush1.bf16.msra.mxu0 0
  %3544 = vmatprep.subr.bf16.mxu0 0
  %3545 = vmatpush1.bf16.msra.mxu0 0
  %3546 = vmatprep.subr.bf16.mxu0 0
  %3547 = vmatpush1.bf16.msra.mxu0 0
  %3548 = vmatprep.subr.bf16.mxu0 0
  %3549 = vmatpush1.bf16.msra.mxu0 0
  %3550 = vmatprep.subr.bf16.mxu0 0
  %3551 = vmatpush1.bf16.msra.mxu0 0
  %3552 = vmatprep.subr.bf16.mxu0 0
  %3553 = vmatpush1.bf16.msra.mxu0 0
  %3554 = vmatprep.subr.bf16.mxu0 0
  %3555 = vmatpush1.bf16.msra.mxu0 0
  %3556 = vmatprep.subr.bf16.mxu0 0
  %3557 = vmatpush1.bf16.msra.mxu0 0
  %3558 = vmatprep.mubr.bf16.mxu0 0
  %3559 = vmatmul.mubr.bf16.gmra.mrb[0].mxu0 %v2403
  %v3560 = vpop.f32.mrb[0].mxu0
  %v3561 = vadd.f32 0.0, %v3560
  %v3562 = vpop.f32.mrb[0].mxu0
  %v3563 = vadd.f32 0.0, %v3562
  %v3564 = vpop.f32.mrb[0].mxu0
  %v3565 = vadd.f32 0.0, %v3564
  %v3566 = vpop.f32.mrb[0].mxu0
  %v3567 = vadd.f32 0.0, %v3566
  %3568 = vmatprep.mubr.bf16.mxu0 0
  %3569 = vmatmul.mubr.bf16.gmra.mrb[0].mxu0 %v3524
  %v3570 = vpop.f32.mrb[0].mxu0
  %v3571 = vadd.f32 0.0, %v3570
  %v3572 = vpop.f32.mrb[0].mxu0
  %v3573 = vadd.f32 0.0, %v3572
  %v3574 = vpop.f32.mrb[0].mxu0
  %v3575 = vadd.f32 0.0, %v3574
  %v3576 = vpop.f32.mrb[0].mxu0
  %v3577 = vadd.f32 0.0, %v3576
  %3578 = vmatprep.mubr.bf16.mxu0 0
  %3579 = vmatmul.mubr.bf16.gmra.mrb[0].mxu0 %v3525
  %v3580 = vpop.f32.mrb[0].mxu0
  %v3581 = vadd.f32 0.0, %v3580
  %v3582 = vpop.f32.mrb[0].mxu0
  %v3583 = vadd.f32 0.0, %v3582
  %v3584 = vpop.f32.mrb[0].mxu0
  %v3585 = vpop.f32.mrb[0].mxu0
  %3586 = vdwg.mxu0
  %v3587 = vadd.f32 %v3514, %v3561
  %v3588 = vadd.f32 %v3515, %v3563
  %v3589 = vadd.f32 %v3516, %v3565
  %v3590 = vadd.f32 %v3517, %v3567
  %v3591 = vadd.f32 %v3518, %v3571
  %v3592 = vadd.f32 %v3519, %v3573
  %v3593 = vadd.f32 %v3520, %v3575
  %v3594 = vadd.f32 %v3521, %v3577
  %v3595 = vadd.f32 %v3522, %v3581
  %v3596 = vadd.f32 %v3523, %v3583
  %v3597 = vmul.f32 %v3587, %v3221
  %v3598 = vmul.f32 %v3588, %v3225
  %v3599 = vmul.f32 %v3589, %v3221
  %v3600 = vmul.f32 %v3590, %v3225
  %v3601 = vmul.f32 %v3591, %v3221
  %v3602 = vmul.f32 %v3592, %v3225
  %v3603 = vmul.f32 %v3593, %v3221
  %v3604 = vmul.f32 %v3594, %v3225
  %v3605 = vmul.f32 %v3595, %v3221
  %v3606 = vmul.f32 %v3596, %v3225
  %v3607 = vadd.f32 %v3597, %v3243
  %v3608 = vadd.f32 %v3598, %v3247
  %v3609 = vadd.f32 %v3599, %v3243
  %v3610 = vadd.f32 %v3600, %v3247
  %v3611 = vadd.f32 %v3601, %v3243
  %v3612 = vadd.f32 %v3602, %v3247
  %v3613 = vadd.f32 %v3603, %v3243
  %v3614 = vadd.f32 %v3604, %v3247
  %v3615 = vadd.f32 %v3605, %v3243
  %v3616 = vadd.f32 %v3606, %v3247
  %v3617 = vmax.f32 %v3250, %v3607
  %v3618 = vmax.f32 %v3251, %v3608
  %v3619 = vmax.f32 %v3252, %v3609
  %v3620 = vmax.f32 %v3253, %v3610
  %v3621 = vmax.f32 %v3254, %v3611
  %v3622 = vmax.f32 %v3255, %v3612
  %v3623 = vmax.f32 %v3256, %v3613
  %v3624 = vmax.f32 %v3257, %v3614
  %v3625 = vmax.f32 %v3258, %v3615
  %v3626 = vmax.f32 %v3259, %v3616
  %v3627 = vmax.f32 %v3617, %v3618
  %v3628 = vmax.f32 %v3619, %v3620
  %v3629 = vmax.f32 %v3621, %v3622
  %v3630 = vmax.f32 %v3623, %v3624
  %v3631 = vmax.f32 %v3625, %v3626
  %v3632 = vmax.f32 %v3627, 0.0
  %v3633 = vmax.f32 %v3628, 0.0
  %v3634 = vmax.f32 %v3629, 0.0
  %v3635 = vmax.f32 %v3630, 0.0
  %v3636 = vmax.f32 %v3631, 0.0
  %v3637 = vpack.c.bf16 %v3632, %v3632
  %v3638 = vld [vmem:[%s3] sm:$0xf]
  %v3639 = vld [vmem:[%s3 + $0x4] sm:$0xf]
  %v3640 = vld [vmem:[%s3 + $0x8] sm:$0xf]
  %v3641 = vld [vmem:[%s3 + $0xc] sm:$0xf]
  %v3642 = vld [vmem:[%s3 + $0x10] sm:$0xf]
  %v3643 = vld [vmem:[%s3 + $0x14] sm:$0xf]
  %v3644 = vld [vmem:[%s3 + $0x18] sm:$0xf]
  %v3645 = vld [vmem:[%s3 + $0x1c] sm:$0xf]
  %v3646 = vld [vmem:[%s3 + $0x20] sm:$0xf]
  %v3647 = vld [vmem:[%s3 + $0x24] sm:$0xf]
  %v3648 = vld [vmem:[%s3 + $0x28] sm:$0xf]
  %v3649 = vld [vmem:[%s3 + $0x2c] sm:$0xf]
  %v3650 = vld [vmem:[%s3 + $0x30] sm:$0xf]
  %v3651 = vld [vmem:[%s3 + $0x34] sm:$0xf]
  %v3652 = vld [vmem:[%s3 + $0x38] sm:$0xf]
  %v3653 = vld [vmem:[%s3 + $0x3c] sm:$0xf]
  %v3654 = vpack.c.bf16 %v3633, %v3633
  %v3655 = vld [vmem:[%s3 + $0x40] sm:$0xf]
  %v3656 = vld [vmem:[%s3 + $0x44] sm:$0xf]
  %v3657 = vld [vmem:[%s3 + $0x48] sm:$0xf]
  %v3658 = vld [vmem:[%s3 + $0x4c] sm:$0xf]
  %v3659 = vld [vmem:[%s3 + $0x50] sm:$0xf]
  %v3660 = vld [vmem:[%s3 + $0x54] sm:$0xf]
  %v3661 = vld [vmem:[%s3 + $0x58] sm:$0xf]
  %v3662 = vld [vmem:[%s3 + $0x5c] sm:$0xf]
  %v3663 = vld [vmem:[%s3 + $0x60] sm:$0xf]
  %v3664 = vld [vmem:[%s3 + $0x64] sm:$0xf]
  %v3665 = vld [vmem:[%s3 + $0x68] sm:$0xf]
  %v3666 = vld [vmem:[%s3 + $0x6c] sm:$0xf]
  %v3667 = vld [vmem:[%s3 + $0x70] sm:$0xf]
  %v3668 = vld [vmem:[%s3 + $0x74] sm:$0xf]
  %v3669 = vld [vmem:[%s3 + $0x78] sm:$0xf]
  %v3670 = vld [vmem:[%s3 + $0x7c] sm:$0xf]
  %v3687 = vunpack.c.l.b16 %v3655
  %v3688 = vunpack.c.l.b16 %v3656
  %v3689 = vunpack.c.l.b16 %v3657
  %v3690 = vunpack.c.l.b16 %v3658
  %v3691 = vunpack.c.l.b16 %v3659
  %v3692 = vunpack.c.l.b16 %v3660
  %v3693 = vunpack.c.l.b16 %v3661
  %v3694 = vunpack.c.l.b16 %v3662
  %v3695 = vunpack.c.l.b16 %v3663
  %v3696 = vunpack.c.l.b16 %v3664
  %v3697 = vunpack.c.l.b16 %v3665
  %v3698 = vunpack.c.l.b16 %v3666
  %v3699 = vunpack.c.l.b16 %v3667
  %v3700 = vunpack.c.l.b16 %v3668
  %v3701 = vunpack.c.l.b16 %v3669
  %v3702 = vunpack.c.l.b16 %v3670
  %v3703 = vpack.c.b16 %v3688, %v3687
  %v3704 = vpack.c.b16 %v3690, %v3689
  %v3705 = vpack.c.b16 %v3692, %v3691
  %v3706 = vpack.c.b16 %v3694, %v3693
  %v3707 = vpack.c.b16 %v3696, %v3695
  %v3708 = vpack.c.b16 %v3698, %v3697
  %v3709 = vpack.c.b16 %v3700, %v3699
  %v3710 = vpack.c.b16 %v3702, %v3701
  %3719 = vmatprep.subr.bf16.mxu0 0
  %3720 = vmatpush1.bf16.msra.mxu0 %v3703
  %3721 = vmatprep.subr.bf16.mxu0 0
  %3722 = vmatpush1.bf16.msra.mxu0 %v3704
  %3723 = vmatprep.subr.bf16.mxu0 0
  %3724 = vmatpush1.bf16.msra.mxu0 %v3705
  %3725 = vmatprep.subr.bf16.mxu0 0
  %3726 = vmatpush1.bf16.msra.mxu0 %v3706
  %3727 = vmatprep.subr.bf16.mxu0 0
  %3728 = vmatpush1.bf16.msra.mxu0 %v3707
  %3729 = vmatprep.subr.bf16.mxu0 0
  %3730 = vmatpush1.bf16.msra.mxu0 %v3708
  %3731 = vmatprep.subr.bf16.mxu0 0
  %3732 = vmatpush1.bf16.msra.mxu0 %v3709
  %3733 = vmatprep.subr.bf16.mxu0 0
  %3734 = vmatpush1.bf16.msra.mxu0 %v3710
  %3735 = vmatprep.subr.bf16.mxu0 0
  %3736 = vmatpush1.bf16.msra.mxu0 0
  %3737 = vmatprep.subr.bf16.mxu0 0
  %3738 = vmatpush1.bf16.msra.mxu0 0
  %3739 = vmatprep.subr.bf16.mxu0 0
  %3740 = vmatpush1.bf16.msra.mxu0 0
  %3741 = vmatprep.subr.bf16.mxu0 0
  %3742 = vmatpush1.bf16.msra.mxu0 0
  %3743 = vmatprep.subr.bf16.mxu0 0
  %3744 = vmatpush1.bf16.msra.mxu0 0
  %3745 = vmatprep.subr.bf16.mxu0 0
  %3746 = vmatpush1.bf16.msra.mxu0 0
  %3747 = vmatprep.subr.bf16.mxu0 0
  %3748 = vmatpush1.bf16.msra.mxu0 0
  %3749 = vmatprep.subr.bf16.mxu0 0
  %3750 = vmatpush1.bf16.msra.mxu0 0
  %3751 = vmatprep.mubr.bf16.mxu0 0
  %3752 = vmatmul.mubr.bf16.gmra.mrb[0].mxu0 %v3654
  %v3753 = vpop.f32.mrb[0].mxu0
  %v3754 = vadd.f32 0.0, %v3753
  %v3755 = vpop.f32.mrb[0].mxu0
  %v3756 = vpop.f32.mrb[0].mxu0
  %v3757 = vpop.f32.mrb[0].mxu0
  %3758 = vdwg.mxu0
  %v3775 = vunpack.c.l.b16 %v3638
  %v3776 = vunpack.c.l.b16 %v3639
  %v3777 = vunpack.c.l.b16 %v3640
  %v3778 = vunpack.c.l.b16 %v3641
  %v3779 = vunpack.c.l.b16 %v3642
  %v3780 = vunpack.c.l.b16 %v3643
  %v3781 = vunpack.c.l.b16 %v3644
  %v3782 = vunpack.c.l.b16 %v3645
  %v3783 = vunpack.c.l.b16 %v3646
  %v3784 = vunpack.c.l.b16 %v3647
  %v3785 = vunpack.c.l.b16 %v3648
  %v3786 = vunpack.c.l.b16 %v3649
  %v3787 = vunpack.c.l.b16 %v3650
  %v3788 = vunpack.c.l.b16 %v3651
  %v3789 = vunpack.c.l.b16 %v3652
  %v3790 = vunpack.c.l.b16 %v3653
  %v3791 = vpack.c.b16 %v3776, %v3775
  %v3792 = vpack.c.b16 %v3778, %v3777
  %v3793 = vpack.c.b16 %v3780, %v3779
  %v3794 = vpack.c.b16 %v3782, %v3781
  %v3795 = vpack.c.b16 %v3784, %v3783
  %v3796 = vpack.c.b16 %v3786, %v3785
  %v3797 = vpack.c.b16 %v3788, %v3787
  %v3798 = vpack.c.b16 %v3790, %v3789
  %3807 = vmatprep.subr.bf16.mxu0 0
  %3808 = vmatpush1.bf16.msra.mxu0 %v3791
  %3809 = vmatprep.subr.bf16.mxu0 0
  %3810 = vmatpush1.bf16.msra.mxu0 %v3792
  %3811 = vmatprep.subr.bf16.mxu0 0
  %3812 = vmatpush1.bf16.msra.mxu0 %v3793
  %3813 = vmatprep.subr.bf16.mxu0 0
  %3814 = vmatpush1.bf16.msra.mxu0 %v3794
  %3815 = vmatprep.subr.bf16.mxu0 0
  %3816 = vmatpush1.bf16.msra.mxu0 %v3795
  %3817 = vmatprep.subr.bf16.mxu0 0
  %3818 = vmatpush1.bf16.msra.mxu0 %v3796
  %3819 = vmatprep.subr.bf16.mxu0 0
  %3820 = vmatpush1.bf16.msra.mxu0 %v3797
  %3821 = vmatprep.subr.bf16.mxu0 0
  %3822 = vmatpush1.bf16.msra.mxu0 %v3798
  %3823 = vmatprep.subr.bf16.mxu0 0
  %3824 = vmatpush1.bf16.msra.mxu0 0
  %3825 = vmatprep.subr.bf16.mxu0 0
  %3826 = vmatpush1.bf16.msra.mxu0 0
  %3827 = vmatprep.subr.bf16.mxu0 0
  %3828 = vmatpush1.bf16.msra.mxu0 0
  %3829 = vmatprep.subr.bf16.mxu0 0
  %3830 = vmatpush1.bf16.msra.mxu0 0
  %3831 = vmatprep.subr.bf16.mxu0 0
  %3832 = vmatpush1.bf16.msra.mxu0 0
  %3833 = vmatprep.subr.bf16.mxu0 0
  %3834 = vmatpush1.bf16.msra.mxu0 0
  %3835 = vmatprep.subr.bf16.mxu0 0
  %3836 = vmatpush1.bf16.msra.mxu0 0
  %3837 = vmatprep.subr.bf16.mxu0 0
  %3838 = vmatpush1.bf16.msra.mxu0 0
  %3839 = vmatprep.mubr.bf16.mxu0 0
  %3840 = vmatmul.mubr.bf16.gmra.mrb[0].mxu0 %v3637
  %v3841 = vpop.f32.mrb[0].mxu0
  %v3842 = vadd.f32 %v3754, %v3841
  %v3843 = vpop.f32.mrb[0].mxu0
  %v3844 = vpop.f32.mrb[0].mxu0
  %v3845 = vpop.f32.mrb[0].mxu0
  %3846 = vdwg.mxu0
  %v3847 = vpack.c.bf16 %v3634, %v3634
  %v3848 = vld [vmem:[%s3 + $0x80] sm:$0xf]
  %v3849 = vld [vmem:[%s3 + $0x84] sm:$0xf]
  %v3850 = vld [vmem:[%s3 + $0x88] sm:$0xf]
  %v3851 = vld [vmem:[%s3 + $0x8c] sm:$0xf]
  %v3852 = vld [vmem:[%s3 + $0x90] sm:$0xf]
  %v3853 = vld [vmem:[%s3 + $0x94] sm:$0xf]
  %v3854 = vld [vmem:[%s3 + $0x98] sm:$0xf]
  %v3855 = vld [vmem:[%s3 + $0x9c] sm:$0xf]
  %v3856 = vld [vmem:[%s3 + $0xa0] sm:$0xf]
  %v3857 = vld [vmem:[%s3 + $0xa4] sm:$0xf]
  %v3858 = vld [vmem:[%s3 + $0xa8] sm:$0xf]
  %v3859 = vld [vmem:[%s3 + $0xac] sm:$0xf]
  %v3860 = vld [vmem:[%s3 + $0xb0] sm:$0xf]
  %v3861 = vld [vmem:[%s3 + $0xb4] sm:$0xf]
  %v3862 = vld [vmem:[%s3 + $0xb8] sm:$0xf]
  %v3863 = vld [vmem:[%s3 + $0xbc] sm:$0xf]
  %v3880 = vunpack.c.l.b16 %v3848
  %v3881 = vunpack.c.l.b16 %v3849
  %v3882 = vunpack.c.l.b16 %v3850
  %v3883 = vunpack.c.l.b16 %v3851
  %v3884 = vunpack.c.l.b16 %v3852
  %v3885 = vunpack.c.l.b16 %v3853
  %v3886 = vunpack.c.l.b16 %v3854
  %v3887 = vunpack.c.l.b16 %v3855
  %v3888 = vunpack.c.l.b16 %v3856
  %v3889 = vunpack.c.l.b16 %v3857
  %v3890 = vunpack.c.l.b16 %v3858
  %v3891 = vunpack.c.l.b16 %v3859
  %v3892 = vunpack.c.l.b16 %v3860
  %v3893 = vunpack.c.l.b16 %v3861
  %v3894 = vunpack.c.l.b16 %v3862
  %v3895 = vunpack.c.l.b16 %v3863
  %v3896 = vpack.c.b16 %v3881, %v3880
  %v3897 = vpack.c.b16 %v3883, %v3882
  %v3898 = vpack.c.b16 %v3885, %v3884
  %v3899 = vpack.c.b16 %v3887, %v3886
  %v3900 = vpack.c.b16 %v3889, %v3888
  %v3901 = vpack.c.b16 %v3891, %v3890
  %v3902 = vpack.c.b16 %v3893, %v3892
  %v3903 = vpack.c.b16 %v3895, %v3894
  %3912 = vmatprep.subr.bf16.mxu0 0
  %3913 = vmatpush1.bf16.msra.mxu0 %v3896
  %3914 = vmatprep.subr.bf16.mxu0 0
  %3915 = vmatpush1.bf16.msra.mxu0 %v3897
  %3916 = vmatprep.subr.bf16.mxu0 0
  %3917 = vmatpush1.bf16.msra.mxu0 %v3898
  %3918 = vmatprep.subr.bf16.mxu0 0
  %3919 = vmatpush1.bf16.msra.mxu0 %v3899
  %3920 = vmatprep.subr.bf16.mxu0 0
  %3921 = vmatpush1.bf16.msra.mxu0 %v3900
  %3922 = vmatprep.subr.bf16.mxu0 0
  %3923 = vmatpush1.bf16.msra.mxu0 %v3901
  %3924 = vmatprep.subr.bf16.mxu0 0
  %3925 = vmatpush1.bf16.msra.mxu0 %v3902
  %3926 = vmatprep.subr.bf16.mxu0 0
  %3927 = vmatpush1.bf16.msra.mxu0 %v3903
  %3928 = vmatprep.subr.bf16.mxu0 0
  %3929 = vmatpush1.bf16.msra.mxu0 0
  %3930 = vmatprep.subr.bf16.mxu0 0
  %3931 = vmatpush1.bf16.msra.mxu0 0
  %3932 = vmatprep.subr.bf16.mxu0 0
  %3933 = vmatpush1.bf16.msra.mxu0 0
  %3934 = vmatprep.subr.bf16.mxu0 0
  %3935 = vmatpush1.bf16.msra.mxu0 0
  %3936 = vmatprep.subr.bf16.mxu0 0
  %3937 = vmatpush1.bf16.msra.mxu0 0
  %3938 = vmatprep.subr.bf16.mxu0 0
  %3939 = vmatpush1.bf16.msra.mxu0 0
  %3940 = vmatprep.subr.bf16.mxu0 0
  %3941 = vmatpush1.bf16.msra.mxu0 0
  %3942 = vmatprep.subr.bf16.mxu0 0
  %3943 = vmatpush1.bf16.msra.mxu0 0
  %3944 = vmatprep.mubr.bf16.mxu0 0
  %3945 = vmatmul.mubr.bf16.gmra.mrb[0].mxu0 %v3847
  %v3946 = vpop.f32.mrb[0].mxu0
  %v3947 = vadd.f32 0.0, %v3946
  %v3948 = vpop.f32.mrb[0].mxu0
  %v3949 = vpop.f32.mrb[0].mxu0
  %v3950 = vpop.f32.mrb[0].mxu0
  %3951 = vdwg.mxu0
  %v3952 = vadd.f32 %v3842, %v3947
  %v3953 = vpack.c.bf16 %v3635, %v3635
  %v3954 = vld [vmem:[%s3 + $0xc0] sm:$0xf]
  %v3955 = vld [vmem:[%s3 + $0xc4] sm:$0xf]
  %v3956 = vld [vmem:[%s3 + $0xc8] sm:$0xf]
  %v3957 = vld [vmem:[%s3 + $0xcc] sm:$0xf]
  %v3958 = vld [vmem:[%s3 + $0xd0] sm:$0xf]
  %v3959 = vld [vmem:[%s3 + $0xd4] sm:$0xf]
  %v3960 = vld [vmem:[%s3 + $0xd8] sm:$0xf]
  %v3961 = vld [vmem:[%s3 + $0xdc] sm:$0xf]
  %v3962 = vld [vmem:[%s3 + $0xe0] sm:$0xf]
  %v3963 = vld [vmem:[%s3 + $0xe4] sm:$0xf]
  %v3964 = vld [vmem:[%s3 + $0xe8] sm:$0xf]
  %v3965 = vld [vmem:[%s3 + $0xec] sm:$0xf]
  %v3966 = vld [vmem:[%s3 + $0xf0] sm:$0xf]
  %v3967 = vld [vmem:[%s3 + $0xf4] sm:$0xf]
  %v3968 = vld [vmem:[%s3 + $0xf8] sm:$0xf]
  %v3969 = vld [vmem:[%s3 + $0xfc] sm:$0xf]
  %v3986 = vunpack.c.l.b16 %v3954
  %v3987 = vunpack.c.l.b16 %v3955
  %v3988 = vunpack.c.l.b16 %v3956
  %v3989 = vunpack.c.l.b16 %v3957
  %v3990 = vunpack.c.l.b16 %v3958
  %v3991 = vunpack.c.l.b16 %v3959
  %v3992 = vunpack.c.l.b16 %v3960
  %v3993 = vunpack.c.l.b16 %v3961
  %v3994 = vunpack.c.l.b16 %v3962
  %v3995 = vunpack.c.l.b16 %v3963
  %v3996 = vunpack.c.l.b16 %v3964
  %v3997 = vunpack.c.l.b16 %v3965
  %v3998 = vunpack.c.l.b16 %v3966
  %v3999 = vunpack.c.l.b16 %v3967
  %v4000 = vunpack.c.l.b16 %v3968
  %v4001 = vunpack.c.l.b16 %v3969
  %v4002 = vpack.c.b16 %v3987, %v3986
  %v4003 = vpack.c.b16 %v3989, %v3988
  %v4004 = vpack.c.b16 %v3991, %v3990
  %v4005 = vpack.c.b16 %v3993, %v3992
  %v4006 = vpack.c.b16 %v3995, %v3994
  %v4007 = vpack.c.b16 %v3997, %v3996
  %v4008 = vpack.c.b16 %v3999, %v3998
  %v4009 = vpack.c.b16 %v4001, %v4000
  %4018 = vmatprep.subr.bf16.mxu0 0
  %4019 = vmatpush1.bf16.msra.mxu0 %v4002
  %4020 = vmatprep.subr.bf16.mxu0 0
  %4021 = vmatpush1.bf16.msra.mxu0 %v4003
  %4022 = vmatprep.subr.bf16.mxu0 0
  %4023 = vmatpush1.bf16.msra.mxu0 %v4004
  %4024 = vmatprep.subr.bf16.mxu0 0
  %4025 = vmatpush1.bf16.msra.mxu0 %v4005
  %4026 = vmatprep.subr.bf16.mxu0 0
  %4027 = vmatpush1.bf16.msra.mxu0 %v4006
  %4028 = vmatprep.subr.bf16.mxu0 0
  %4029 = vmatpush1.bf16.msra.mxu0 %v4007
  %4030 = vmatprep.subr.bf16.mxu0 0
  %4031 = vmatpush1.bf16.msra.mxu0 %v4008
  %4032 = vmatprep.subr.bf16.mxu0 0
  %4033 = vmatpush1.bf16.msra.mxu0 %v4009
  %4034 = vmatprep.subr.bf16.mxu0 0
  %4035 = vmatpush1.bf16.msra.mxu0 0
  %4036 = vmatprep.subr.bf16.mxu0 0
  %4037 = vmatpush1.bf16.msra.mxu0 0
  %4038 = vmatprep.subr.bf16.mxu0 0
  %4039 = vmatpush1.bf16.msra.mxu0 0
  %4040 = vmatprep.subr.bf16.mxu0 0
  %4041 = vmatpush1.bf16.msra.mxu0 0
  %4042 = vmatprep.subr.bf16.mxu0 0
  %4043 = vmatpush1.bf16.msra.mxu0 0
  %4044 = vmatprep.subr.bf16.mxu0 0
  %4045 = vmatpush1.bf16.msra.mxu0 0
  %4046 = vmatprep.subr.bf16.mxu0 0
  %4047 = vmatpush1.bf16.msra.mxu0 0
  %4048 = vmatprep.subr.bf16.mxu0 0
  %4049 = vmatpush1.bf16.msra.mxu0 0
  %4050 = vmatprep.mubr.bf16.mxu0 0
  %4051 = vmatmul.mubr.bf16.gmra.mrb[0].mxu0 %v3953
  %v4052 = vpop.f32.mrb[0].mxu0
  %v4053 = vadd.f32 0.0, %v4052
  %v4054 = vpop.f32.mrb[0].mxu0
  %v4055 = vpop.f32.mrb[0].mxu0
  %v4056 = vpop.f32.mrb[0].mxu0
  %4057 = vdwg.mxu0
  %v4058 = vadd.f32 %v3952, %v4053
  %v4059 = vpack.c.bf16 %v3636, %v3636
  %v4060 = vld [vmem:[%s3 + $0x100] sm:$0xf]
  %v4061 = vld [vmem:[%s3 + $0x104] sm:$0xf]
  %v4062 = vld [vmem:[%s3 + $0x108] sm:$0xf]
  %v4063 = vld [vmem:[%s3 + $0x10c] sm:$0xf]
  %v4064 = vld [vmem:[%s3 + $0x110] sm:$0xf]
  %v4065 = vld [vmem:[%s3 + $0x114] sm:$0xf]
  %v4066 = vld [vmem:[%s3 + $0x118] sm:$0xf]
  %v4067 = vld [vmem:[%s3 + $0x11c] sm:$0xf]
  %v4068 = vld [vmem:[%s3 + $0x120] sm:$0xf]
  %v4069 = vld [vmem:[%s3 + $0x124] sm:$0xf]
  %v4070 = vld [vmem:[%s3 + $0x128] sm:$0xf]
  %v4071 = vld [vmem:[%s3 + $0x12c] sm:$0xf]
  %v4072 = vld [vmem:[%s3 + $0x130] sm:$0xf]
  %v4073 = vld [vmem:[%s3 + $0x134] sm:$0xf]
  %v4074 = vld [vmem:[%s3 + $0x138] sm:$0xf]
  %v4075 = vld [vmem:[%s3 + $0x13c] sm:$0xf]
  %v4092 = vunpack.c.l.b16 %v4060
  %v4093 = vunpack.c.l.b16 %v4061
  %v4094 = vunpack.c.l.b16 %v4062
  %v4095 = vunpack.c.l.b16 %v4063
  %v4096 = vunpack.c.l.b16 %v4064
  %v4097 = vunpack.c.l.b16 %v4065
  %v4098 = vunpack.c.l.b16 %v4066
  %v4099 = vunpack.c.l.b16 %v4067
  %v4100 = vunpack.c.l.b16 %v4068
  %v4101 = vunpack.c.l.b16 %v4069
  %v4102 = vunpack.c.l.b16 %v4070
  %v4103 = vunpack.c.l.b16 %v4071
  %v4104 = vunpack.c.l.b16 %v4072
  %v4105 = vunpack.c.l.b16 %v4073
  %v4106 = vunpack.c.l.b16 %v4074
  %v4107 = vunpack.c.l.b16 %v4075
  %v4108 = vpack.c.b16 %v4093, %v4092
  %v4109 = vpack.c.b16 %v4095, %v4094
  %v4110 = vpack.c.b16 %v4097, %v4096
  %v4111 = vpack.c.b16 %v4099, %v4098
  %v4112 = vpack.c.b16 %v4101, %v4100
  %v4113 = vpack.c.b16 %v4103, %v4102
  %v4114 = vpack.c.b16 %v4105, %v4104
  %v4115 = vpack.c.b16 %v4107, %v4106
  %4124 = vmatprep.subr.bf16.mxu0 0
  %4125 = vmatpush1.bf16.msra.mxu0 %v4108
  %4126 = vmatprep.subr.bf16.mxu0 0
  %4127 = vmatpush1.bf16.msra.mxu0 %v4109
  %4128 = vmatprep.subr.bf16.mxu0 0
  %4129 = vmatpush1.bf16.msra.mxu0 %v4110
  %4130 = vmatprep.subr.bf16.mxu0 0
  %4131 = vmatpush1.bf16.msra.mxu0 %v4111
  %4132 = vmatprep.subr.bf16.mxu0 0
  %4133 = vmatpush1.bf16.msra.mxu0 %v4112
  %4134 = vmatprep.subr.bf16.mxu0 0
  %4135 = vmatpush1.bf16.msra.mxu0 %v4113
  %4136 = vmatprep.subr.bf16.mxu0 0
  %4137 = vmatpush1.bf16.msra.mxu0 %v4114
  %4138 = vmatprep.subr.bf16.mxu0 0
  %4139 = vmatpush1.bf16.msra.mxu0 %v4115
  %4140 = vmatprep.subr.bf16.mxu0 0
  %4141 = vmatpush1.bf16.msra.mxu0 0
  %4142 = vmatprep.subr.bf16.mxu0 0
  %4143 = vmatpush1.bf16.msra.mxu0 0
  %4144 = vmatprep.subr.bf16.mxu0 0
  %4145 = vmatpush1.bf16.msra.mxu0 0
  %4146 = vmatprep.subr.bf16.mxu0 0
  %4147 = vmatpush1.bf16.msra.mxu0 0
  %4148 = vmatprep.subr.bf16.mxu0 0
  %4149 = vmatpush1.bf16.msra.mxu0 0
  %4150 = vmatprep.subr.bf16.mxu0 0
  %4151 = vmatpush1.bf16.msra.mxu0 0
  %4152 = vmatprep.subr.bf16.mxu0 0
  %4153 = vmatpush1.bf16.msra.mxu0 0
  %4154 = vmatprep.subr.bf16.mxu0 0
  %4155 = vmatpush1.bf16.msra.mxu0 0
  %4156 = vmatprep.mubr.bf16.mxu0 0
  %4157 = vmatmul.mubr.bf16.gmra.mrb[0].mxu0 %v4059
  %v4158 = vpop.f32.mrb[0].mxu0
  %v4159 = vadd.f32 0.0, %v4158
  %v4160 = vpop.f32.mrb[0].mxu0
  %v4161 = vpop.f32.mrb[0].mxu0
  %v4162 = vpop.f32.mrb[0].mxu0
  %4163 = vdwg.mxu0
  %v4164 = vadd.f32 %v4058, %v4159
  %v4165 = vld [vmem:[%s10] sm:$0x1]
  %v4167 = vlaneseq
  %v4168 = vshrl.u32 %v4167, 7
  %v4169 = vsub.s32 0, %v4168
  %v4170 = vrot.slane %v4165, %v4169
  %v4172 = vmul.f32 %v4164, %v4170
  %v4173 = vld [vmem:[%s11] sm:$0x1]
  %v4175 = vlaneseq
  %v4176 = vshrl.u32 %v4175, 7
  %v4177 = vsub.s32 0, %v4176
  %v4178 = vrot.slane %v4173, %v4177
  %v4180 = vadd.f32 %v4172, %v4178
  %v4181 = vmax.f32 %v4180, 0.0
  %v4182 = vpack.c.bf16 %v4181, %v4181
  %v4183 = vld [vmem:[%s4] sm:$0xf]
  %v4184 = vld [vmem:[%s4 + $0x4] sm:$0xf]
  %v4185 = vld [vmem:[%s4 + $0x8] sm:$0xf]
  %v4186 = vld [vmem:[%s4 + $0xc] sm:$0xf]
  %v4187 = vld [vmem:[%s4 + $0x10] sm:$0xf]
  %v4188 = vld [vmem:[%s4 + $0x14] sm:$0xf]
  %v4189 = vld [vmem:[%s4 + $0x18] sm:$0xf]
  %v4190 = vld [vmem:[%s4 + $0x1c] sm:$0xf]
  %v4191 = vld [vmem:[%s4 + $0x20] sm:$0xf]
  %v4192 = vld [vmem:[%s4 + $0x24] sm:$0xf]
  %v4193 = vld [vmem:[%s4 + $0x28] sm:$0xf]
  %v4194 = vld [vmem:[%s4 + $0x2c] sm:$0xf]
  %v4195 = vld [vmem:[%s4 + $0x30] sm:$0xf]
  %v4196 = vld [vmem:[%s4 + $0x34] sm:$0xf]
  %v4197 = vld [vmem:[%s4 + $0x38] sm:$0xf]
  %v4198 = vld [vmem:[%s4 + $0x3c] sm:$0xf]
  %v4215 = vunpack.c.l.b16 %v4183
  %v4216 = vunpack.c.l.b16 %v4184
  %v4217 = vunpack.c.l.b16 %v4185
  %v4218 = vunpack.c.l.b16 %v4186
  %v4219 = vunpack.c.l.b16 %v4187
  %v4220 = vunpack.c.l.b16 %v4188
  %v4221 = vunpack.c.l.b16 %v4189
  %v4222 = vunpack.c.l.b16 %v4190
  %v4223 = vunpack.c.l.b16 %v4191
  %v4224 = vunpack.c.l.b16 %v4192
  %v4225 = vunpack.c.l.b16 %v4193
  %v4226 = vunpack.c.l.b16 %v4194
  %v4227 = vunpack.c.l.b16 %v4195
  %v4228 = vunpack.c.l.b16 %v4196
  %v4229 = vunpack.c.l.b16 %v4197
  %v4230 = vunpack.c.l.b16 %v4198
  %v4231 = vpack.c.b16 %v4216, %v4215
  %v4232 = vpack.c.b16 %v4218, %v4217
  %v4233 = vpack.c.b16 %v4220, %v4219
  %v4234 = vpack.c.b16 %v4222, %v4221
  %v4235 = vpack.c.b16 %v4224, %v4223
  %v4236 = vpack.c.b16 %v4226, %v4225
  %v4237 = vpack.c.b16 %v4228, %v4227
  %v4238 = vpack.c.b16 %v4230, %v4229
  %4247 = vmatprep.subr.bf16.mxu0 0
  %4248 = vmatpush1.bf16.msra.mxu0 %v4231
  %4249 = vmatprep.subr.bf16.mxu0 0
  %4250 = vmatpush1.bf16.msra.mxu0 %v4232
  %4251 = vmatprep.subr.bf16.mxu0 0
  %4252 = vmatpush1.bf16.msra.mxu0 %v4233
  %4253 = vmatprep.subr.bf16.mxu0 0
  %4254 = vmatpush1.bf16.msra.mxu0 %v4234
  %4255 = vmatprep.subr.bf16.mxu0 0
  %4256 = vmatpush1.bf16.msra.mxu0 %v4235
  %4257 = vmatprep.subr.bf16.mxu0 0
  %4258 = vmatpush1.bf16.msra.mxu0 %v4236
  %4259 = vmatprep.subr.bf16.mxu0 0
  %4260 = vmatpush1.bf16.msra.mxu0 %v4237
  %4261 = vmatprep.subr.bf16.mxu0 0
  %4262 = vmatpush1.bf16.msra.mxu0 %v4238
  %4263 = vmatprep.subr.bf16.mxu0 0
  %4264 = vmatpush1.bf16.msra.mxu0 0
  %4265 = vmatprep.subr.bf16.mxu0 0
  %4266 = vmatpush1.bf16.msra.mxu0 0
  %4267 = vmatprep.subr.bf16.mxu0 0
  %4268 = vmatpush1.bf16.msra.mxu0 0
  %4269 = vmatprep.subr.bf16.mxu0 0
  %4270 = vmatpush1.bf16.msra.mxu0 0
  %4271 = vmatprep.subr.bf16.mxu0 0
  %4272 = vmatpush1.bf16.msra.mxu0 0
  %4273 = vmatprep.subr.bf16.mxu0 0
  %4274 = vmatpush1.bf16.msra.mxu0 0
  %4275 = vmatprep.subr.bf16.mxu0 0
  %4276 = vmatpush1.bf16.msra.mxu0 0
  %4277 = vmatprep.subr.bf16.mxu0 0
  %4278 = vmatpush1.bf16.msra.mxu0 0
  %4279 = vmatprep.mubr.bf16.mxu0 0
  %4280 = vmatmul.mubr.bf16.gmra.mrb[0].mxu0 %v4182
  %v4281 = vpop.f32.mrb[0].mxu0
  %v4282 = vadd.f32 0.0, %v4281
  %v4283 = vpop.f32.mrb[0].mxu0
  %v4284 = vpop.f32.mrb[0].mxu0
  %v4285 = vpop.f32.mrb[0].mxu0
  %4286 = vdwg.mxu0
  %v4287 = vld [vmem:[%s12] sm:$0x1]
  %v4289 = vlaneseq
  %v4290 = vshrl.u32 %v4289, 7
  %v4291 = vsub.s32 0, %v4290
  %v4292 = vrot.slane %v4287, %v4291
  %v4294 = vmul.f32 %v4282, %v4292
  %v4295 = vld [vmem:[%s13] sm:$0x1]
  %v4297 = vlaneseq
  %v4298 = vshrl.u32 %v4297, 7
  %v4299 = vsub.s32 0, %v4298
  %v4300 = vrot.slane %v4295, %v4299
  %v4302 = vadd.f32 %v4294, %v4300
  %v4303 = vmax.f32 %v4302, 0.0
  %v4304 = vpack.c.bf16 %v4303, %v4303
  %v4305 = vld [vmem:[%s5] sm:$0xf]
  %v4306 = vld [vmem:[%s5 + $0x4] sm:$0xf]
  %v4307 = vld [vmem:[%s5 + $0x8] sm:$0xf]
  %v4308 = vld [vmem:[%s5 + $0xc] sm:$0xf]
  %v4309 = vld [vmem:[%s5 + $0x10] sm:$0xf]
  %v4310 = vld [vmem:[%s5 + $0x14] sm:$0xf]
  %v4311 = vld [vmem:[%s5 + $0x18] sm:$0xf]
  %v4312 = vld [vmem:[%s5 + $0x1c] sm:$0xf]
  %v4313 = vld [vmem:[%s5 + $0x20] sm:$0xf]
  %v4314 = vld [vmem:[%s5 + $0x24] sm:$0xf]
  %v4315 = vld [vmem:[%s5 + $0x28] sm:$0xf]
  %v4316 = vld [vmem:[%s5 + $0x2c] sm:$0xf]
  %v4317 = vld [vmem:[%s5 + $0x30] sm:$0xf]
  %v4318 = vld [vmem:[%s5 + $0x34] sm:$0xf]
  %v4319 = vld [vmem:[%s5 + $0x38] sm:$0xf]
  %v4320 = vld [vmem:[%s5 + $0x3c] sm:$0xf]
  %v4321 = vld [vmem:[%s14] sm:$0x1]
  %v4323 = vlaneseq
  %v4324 = vshrl.u32 %v4323, 7
  %v4325 = vsub.s32 0, %v4324
  %v4326 = vrot.slane %v4321, %v4325
  %v4344 = vunpack.c.l.b16 %v4305
  %v4345 = vunpack.c.l.b16 %v4306
  %v4346 = vunpack.c.l.b16 %v4307
  %v4347 = vunpack.c.l.b16 %v4308
  %v4348 = vunpack.c.l.b16 %v4309
  %v4349 = vunpack.c.l.b16 %v4310
  %v4350 = vunpack.c.l.b16 %v4311
  %v4351 = vunpack.c.l.b16 %v4312
  %v4352 = vunpack.c.l.b16 %v4313
  %v4353 = vunpack.c.l.b16 %v4314
  %v4354 = vunpack.c.l.b16 %v4315
  %v4355 = vunpack.c.l.b16 %v4316
  %v4356 = vunpack.c.l.b16 %v4317
  %v4357 = vunpack.c.l.b16 %v4318
  %v4358 = vunpack.c.l.b16 %v4319
  %v4359 = vunpack.c.l.b16 %v4320
  %v4360 = vpack.c.b16 %v4345, %v4344
  %v4361 = vpack.c.b16 %v4347, %v4346
  %v4362 = vpack.c.b16 %v4349, %v4348
  %v4363 = vpack.c.b16 %v4351, %v4350
  %v4364 = vpack.c.b16 %v4353, %v4352
  %v4365 = vpack.c.b16 %v4355, %v4354
  %v4366 = vpack.c.b16 %v4357, %v4356
  %v4367 = vpack.c.b16 %v4359, %v4358
  %4376 = vmatprep.subr.bf16.mxu0 0
  %4377 = vmatpush1.bf16.msra.mxu0 %v4360
  %4378 = vmatprep.subr.bf16.mxu0 0
  %4379 = vmatpush1.bf16.msra.mxu0 %v4361
  %4380 = vmatprep.subr.bf16.mxu0 0
  %4381 = vmatpush1.bf16.msra.mxu0 %v4362
  %4382 = vmatprep.subr.bf16.mxu0 0
  %4383 = vmatpush1.bf16.msra.mxu0 %v4363
  %4384 = vmatprep.subr.bf16.mxu0 0
  %4385 = vmatpush1.bf16.msra.mxu0 %v4364
  %4386 = vmatprep.subr.bf16.mxu0 0
  %4387 = vmatpush1.bf16.msra.mxu0 %v4365
  %4388 = vmatprep.subr.bf16.mxu0 0
  %4389 = vmatpush1.bf16.msra.mxu0 %v4366
  %4390 = vmatprep.subr.bf16.mxu0 0
  %4391 = vmatpush1.bf16.msra.mxu0 %v4367
  %4392 = vmatprep.subr.bf16.mxu0 0
  %4393 = vmatpush1.bf16.msra.mxu0 0
  %4394 = vmatprep.subr.bf16.mxu0 0
  %4395 = vmatpush1.bf16.msra.mxu0 0
  %4396 = vmatprep.subr.bf16.mxu0 0
  %4397 = vmatpush1.bf16.msra.mxu0 0
  %4398 = vmatprep.subr.bf16.mxu0 0
  %4399 = vmatpush1.bf16.msra.mxu0 0
  %4400 = vmatprep.subr.bf16.mxu0 0
  %4401 = vmatpush1.bf16.msra.mxu0 0
  %4402 = vmatprep.subr.bf16.mxu0 0
  %4403 = vmatpush1.bf16.msra.mxu0 0
  %4404 = vmatprep.subr.bf16.mxu0 0
  %4405 = vmatpush1.bf16.msra.mxu0 0
  %4406 = vmatprep.subr.bf16.mxu0 0
  %4407 = vmatpush1.bf16.msra.mxu0 0
  %4408 = vmatprep.mubr.bf16.mxu0 0
  %4409 = vmatmul.mubr.bf16.gmra.mrb[0].mxu0 %v4304
  %v4410 = vpop.f32.mrb[0].mxu0
  %v4411 = vadd.f32 %v4326, %v4410
  %v4412 = vpop.f32.mrb[0].mxu0
  %v4413 = vpop.f32.mrb[0].mxu0
  %v4414 = vpop.f32.mrb[0].mxu0
  %4415 = vdwg.mxu0
  %4416 = vst [vmem:[%s15] sm:$0xff] %v4411
  // Predicated region
  $region62: #{lenet_forward.1} parent=0 // pred_check
    _
  $region63: #{lenet_forward.1} parent=0 // pred_check_branch
    %4418 = sbr.rel (0) target = $region65
  $region64: #{lenet_forward.1} parent=0 // pred_region
    _
  $region65: #{lenet_forward.1} parent=0 // pred_fallthru
    _
  // Predicated region
  $region66: #{lenet_forward.1} parent=0 // pred_check
    _
  $region67: #{lenet_forward.1} parent=0 // pred_check_branch
    %4420 = sbr.rel (0) target = $region69
  $region68: #{lenet_forward.1} parent=0 // pred_region
    _
  $region69: #{lenet_forward.1} parent=0 // pred_fallthru
    _

</llo_original>
